<compile_context>
chip_gen: v7x
topology: tpu7x:2x2x1
jax: 0.10.0
libtpu: 0.0.40
codegen_flags: <defaults>
</compile_context>

<pallas_src>
import jax
import jax.numpy as jnp
from jax.experimental import pallas as pl
from jax.experimental.pallas import tpu as pltpu

LN_EPS = 1e-5        # torch.nn.LayerNorm default
LANE = 128
NEG = -1e30          # additive mask value (finite; matches previous where(-1e30) semantics)


def _rep(shape):
    """BlockSpec for an operand that is identical for every grid step (weights)."""
    nd = len(shape)
    return pl.BlockSpec(tuple(shape), lambda b, _nd=nd: (0,) * _nd)


def _per_batch(shape_tail):
    """BlockSpec selecting batch element b of a (B, *shape_tail) array."""
    nd = len(shape_tail)
    return pl.BlockSpec((1,) + tuple(shape_tail), lambda b, _nd=nd: (b,) + (0,) * _nd)


# ----------------------------------------------------------------------------
# Kernel 1: fused visual front-end
#   TemporalConv (K5+ReLU+P2, K5+ReLU+P2, fc) -> BiLSTM x2 -> classifier -> KV slab
# ----------------------------------------------------------------------------

def pallas_encoder(xt, params):
    """xt: (B, T_in, C_in) f32.

    Returns (visual (B,T',H), conv_logits (B,T',NCp), seq_logits (B,T',NCp),
             kv_all (B,T',2*H*n_dec_layers))."""
    cfg = params['cfg']
    B, T_in, C_in = xt.shape
    tp = params['tconv']
    K = tp['w1'].shape[0]
    H = cfg['hidden']
    Hd = H // 2
    G = 8 * Hd
    NCp = tp['fc_w'].shape[1]
    KVW = params['kv_w'].shape[1]
    T1c = T_in - (K - 1); T1p = T1c // 2
    T2c = T1p - (K - 1); T2p = T2c // 2
    l1, l2 = params['lstm']

    def kern(x_ref, w1_ref, b1_ref, w2_ref, b2_ref, fw_ref, fb_ref,
             wih1_ref, whh1_ref, lb1_ref, wih2_ref, whh2_ref, lb2_ref,
             cw_ref, cb_ref, kvw_ref, kvb_ref,
             vis_ref, clog_ref, slog_ref, kv_ref,
             scr1, scr2, ls1, ls2):
        x0 = x_ref[0]                                            # (T_in, C_in)

        # ---- conv stage 1: 5-tap conv as shifted matmuls, bias + ReLU ----
        acc = jnp.zeros((T1c, H), jnp.float32)
        for k in range(K):
            acc = acc + jnp.dot(x0[k:k + T1c, :], w1_ref[k],
                                preferred_element_type=jnp.float32)
        scr1[...] = jnp.maximum(acc + b1_ref[...], 0.0)
        p1 = jnp.maximum(scr1[pl.ds(0, T1p, 2), :],              # MaxPool1d(2), floor mode
                         scr1[pl.ds(1, T1p, 2), :])

        # ---- conv stage 2 ----
        acc2 = jnp.zeros((T2c, H), jnp.float32)
        for k in range(K):
            acc2 = acc2 + jnp.dot(p1[k:k + T2c, :], w2_ref[k],
                                  preferred_element_type=jnp.float32)
        scr2[...] = jnp.maximum(acc2 + b2_ref[...], 0.0)
        p2 = jnp.maximum(scr2[pl.ds(0, T2p, 2), :], scr2[pl.ds(1, T2p, 2), :])  # (T', H)

        vis_ref[0] = p2
        clog_ref[0] = jnp.dot(p2, fw_ref[...],
                              preferred_element_type=jnp.float32) + fb_ref[...]

        # ---- fused bidirectional LSTM layer (both directions, all gates) ----
        # gate lanes: [i_f f_f g_f o_f | i_b f_b g_b o_b], Hd each; whh is block-diagonal
        # so one (1,2Hd)@(2Hd,8Hd) matmul drives both directions' recurrences.
        def bilstm(x_seq, wih_ref, whh_ref, lb_ref, out_scr):
            xp = jnp.dot(x_seq, wih_ref[...],
                         preferred_element_type=jnp.float32) + lb_ref[...]   # (T', 8Hd)
            h = jnp.zeros((1, 2 * Hd), jnp.float32)
            c_f = jnp.zeros((1, Hd), jnp.float32)
            c_b = jnp.zeros((1, Hd), jnp.float32)
            for t in range(T2p):                                 # static unroll (T'=5)
                rec = jnp.dot(h, whh_ref[...], preferred_element_type=jnp.float32)
                gf = xp[t:t + 1, 0:4 * Hd] + rec[:, 0:4 * Hd]
                gb = xp[T2p - 1 - t:T2p - t, 4 * Hd:8 * Hd] + rec[:, 4 * Hd:8 * Hd]
                i_f = jax.nn.sigmoid(gf[:, 0:Hd])
                f_f = jax.nn.sigmoid(gf[:, Hd:2 * Hd])
                g_f = jnp.tanh(gf[:, 2 * Hd:3 * Hd])
                o_f = jax.nn.sigmoid(gf[:, 3 * Hd:4 * Hd])
                i_b = jax.nn.sigmoid(gb[:, 0:Hd])
                f_b = jax.nn.sigmoid(gb[:, Hd:2 * Hd])
                g_b = jnp.tanh(gb[:, 2 * Hd:3 * Hd])
                o_b = jax.nn.sigmoid(gb[:, 3 * Hd:4 * Hd])
                c_f = f_f * c_f + i_f * g_f
                h_f = o_f * jnp.tanh(c_f)
                c_b = f_b * c_b + i_b * g_b
                h_b = o_b * jnp.tanh(c_b)
                # write each direction to its FINAL time slot (no wrapper reverse needed)
                out_scr[t:t + 1, 0:Hd] = h_f
                out_scr[T2p - 1 - t:T2p - t, Hd:2 * Hd] = h_b
                h = jnp.concatenate([h_f, h_b], axis=1)
            return out_scr[...]

        o1 = bilstm(p2, wih1_ref, whh1_ref, lb1_ref, ls1)        # (T', 2Hd=H)
        tm = bilstm(o1, wih2_ref, whh2_ref, lb2_ref, ls2)        # (T', H)

        slog_ref[0] = jnp.dot(tm, cw_ref[...],
                              preferred_element_type=jnp.float32) + cb_ref[...]
        # cross-attention K/V of the encoder memory for ALL decoder layers (128-lane slab)
        kv_ref[0] = jnp.dot(tm, kvw_ref[...],
                            preferred_element_type=jnp.float32) + kvb_ref[...]

    return pl.pallas_call(
        kern,
        out_shape=(jax.ShapeDtypeStruct((B, T2p, H), jnp.float32),
                   jax.ShapeDtypeStruct((B, T2p, NCp), jnp.float32),
                   jax.ShapeDtypeStruct((B, T2p, NCp), jnp.float32),
                   jax.ShapeDtypeStruct((B, T2p, KVW), jnp.float32)),
        grid=(B,),
        in_specs=[
            _per_batch((T_in, C_in)),
            _rep(tp['w1'].shape), _rep(tp['b1'].shape),
            _rep(tp['w2'].shape), _rep(tp['b2'].shape),
            _rep(tp['fc_w'].shape), _rep(tp['fc_b'].shape),
            _rep(l1['wih'].shape), _rep(l1['whh'].shape), _rep(l1['b'].shape),
            _rep(l2['wih'].shape), _rep(l2['whh'].shape), _rep(l2['b'].shape),
            _rep(params['cls_w'].shape), _rep(params['cls_b'].shape),
            _rep(params['kv_w'].shape), _rep(params['kv_b'].shape),
        ],
        out_specs=(_per_batch((T2p, H)),
                   _per_batch((T2p, NCp)),
                   _per_batch((T2p, NCp)),
                   _per_batch((T2p, KVW))),
        scratch_shapes=[pltpu.VMEM((T1c, H), jnp.float32),
                        pltpu.VMEM((T2c, H), jnp.float32),
                        pltpu.VMEM((T2p, 2 * Hd), jnp.float32),
                        pltpu.VMEM((T2p, 2 * Hd), jnp.float32)],
        compiler_params=pltpu.CompilerParams(dimension_semantics=("parallel",)),
    )(xt, tp['w1'], tp['b1'], tp['w2'], tp['b2'], tp['fc_w'], tp['fc_b'],
      l1['wih'], l1['whh'], l1['b'], l2['wih'], l2['whh'], l2['b'],
      params['cls_w'], params['cls_b'], params['kv_w'], params['kv_b'])


# ----------------------------------------------------------------------------
# Kernel 2: fully fused Transformer decoder (all layers + emb proj + final LN/out)
# ----------------------------------------------------------------------------

def pallas_decoder(emb, kv_all, self_bias, cross_bias, params):
    """emb: (B,L,E), kv_all: (B,Tp,2H*nl), self_bias: (B,L,L), cross_bias: (B,1,Tp).

    Returns sentence logits padded to 128 vocab lanes: (B, L, Vpad)."""
    cfg = params['cfg']
    dec = params['dec']
    H, nh, nl = cfg['hidden'], cfg['heads'], cfg['dec_layers']
    d = H // nh
    scale = 1.0 / float(d) ** 0.5
    B, L, E = emb.shape
    Tp = kv_all.shape[1]
    KVW = kv_all.shape[2]
    Vp = dec['out_w'].shape[1]
    FF = dec['ffw1'].shape[-1]
    pe_slice = params['pe'][:L]                                   # (L, H)

    def kern(emb_ref, kv_ref, sb_ref, cb_ref, pe_ref, pw_ref, pb_ref,
             lnp_ref, wqkv_ref, bqkv_ref, wos_ref, bos_ref,
             wqc_ref, bqc_ref, woc_ref, boc_ref,
             ffw1_ref, ffb1_ref, ffw2_ref, ffb2_ref,
             lnf_ref, ow_ref, ob_ref, out_ref):

        self_b = sb_ref[0]                                        # (L, L)
        cross_b = cb_ref[0]                                       # (1, Tp) -> broadcasts

        def layer_norm(z, g, beta):
            mu = jnp.mean(z, axis=-1, keepdims=True)
            var = jnp.mean((z - mu) ** 2, axis=-1, keepdims=True)
            return (z - mu) * jax.lax.rsqrt(var + LN_EPS) * g + beta

        def mha(q, k, v, bias):
            # heads are lane slices; contexts lane-concatenated, one output proj outside
            ctxs = []
            for hh in range(nh):
                sl = slice(hh * d, (hh + 1) * d)
                s = jax.lax.dot_general(q[:, sl] * scale, k[:, sl],
                                        (((1,), (1,)), ((), ())),
                                        preferred_element_type=jnp.float32) + bias
                p = jax.nn.softmax(s, axis=-1)
                ctxs.append(jnp.dot(p, v[:, sl], preferred_element_type=jnp.float32))
            return jnp.concatenate(ctxs, axis=-1)                 # (Lq, H)

        # word embedding projection + positional encoding
        dx = (jnp.dot(emb_ref[0], pw_ref[...], preferred_element_type=jnp.float32)
              + pb_ref[...] + pe_ref[...])                        # (L, H)
        mem = kv_ref[0]                                           # (Tp, 2H*nl)

        for li in range(nl):                                      # static unroll over layers
            lnpl = lnp_ref[li]                                    # (6, H)
            # --- self attention (pre-LN, fused QKV) ---
            xn = layer_norm(dx, lnpl[0:1, :], lnpl[1:2, :])
            qkv = jnp.dot(xn, wqkv_ref[li],
                          preferred_element_type=jnp.float32) + bqkv_ref[li]
            ctx = mha(qkv[:, 0:H], qkv[:, H:2 * H], qkv[:, 2 * H:3 * H], self_b)
            h1 = jnp.dot(ctx, wos_ref[li],
                         preferred_element_type=jnp.float32) + bos_ref[li] + dx
            # --- cross attention (K/V precomputed in the encoder kernel) ---
            xn2 = layer_norm(h1, lnpl[2:3, :], lnpl[3:4, :])
            q2 = jnp.dot(xn2, wqc_ref[li],
                         preferred_element_type=jnp.float32) + bqc_ref[li]
            k2 = mem[:, 2 * H * li:2 * H * li + H]
            v2 = mem[:, 2 * H * li + H:2 * H * (li + 1)]
            ctx2 = mha(q2, k2, v2, cross_b)
            u = jnp.dot(ctx2, woc_ref[li],
                        preferred_element_type=jnp.float32) + boc_ref[li] + h1
            # --- position-wise feed forward + residual ---
            xn3 = layer_norm(u, lnpl[4:5, :], lnpl[5:6, :])
            ff = jnp.maximum(
                jnp.dot(xn3, ffw1_ref[li],
                        preferred_element_type=jnp.float32) + ffb1_ref[li], 0.0)
            dx = jnp.dot(ff, ffw2_ref[li],
                         preferred_element_type=jnp.float32) + ffb2_ref[li] + u

        xnf = layer_norm(dx, lnf_ref[0:1, :], lnf_ref[1:2, :])
        out_ref[0] = jnp.dot(xnf, ow_ref[...],
                             preferred_element_type=jnp.float32) + ob_ref[...]

    return pl.pallas_call(
        kern,
        out_shape=jax.ShapeDtypeStruct((B, L, Vp), jnp.float32),
        grid=(B,),
        in_specs=[
            _per_batch((L, E)),
            _per_batch((Tp, KVW)),
            _per_batch((L, L)),
            _per_batch((1, Tp)),
            _rep((L, H)),
            _rep(dec['proj_w'].shape), _rep(dec['proj_b'].shape),
            _rep(dec['lnp'].shape),
            _rep(dec['wqkv'].shape), _rep(dec['bqkv'].shape),
            _rep(dec['wos'].shape), _rep(dec['bos'].shape),
            _rep(dec['wqc'].shape), _rep(dec['bqc'].shape),
            _rep(dec['woc'].shape), _rep(dec['boc'].shape),
            _rep(dec['ffw1'].shape), _rep(dec['ffb1'].shape),
            _rep(dec['ffw2'].shape), _rep(dec['ffb2'].shape),
            _rep(dec['lnf'].shape),
            _rep(dec['out_w'].shape), _rep(dec['out_b'].shape),
        ],
        out_specs=_per_batch((L, Vp)),
        compiler_params=pltpu.CompilerParams(dimension_semantics=("parallel",)),
    )(emb.astype(jnp.float32), kv_all, self_bias, cross_bias, pe_slice,
      dec['proj_w'], dec['proj_b'],
      dec['lnp'], dec['wqkv'], dec['bqkv'], dec['wos'], dec['bos'],
      dec['wqc'], dec['bqc'], dec['woc'], dec['boc'],
      dec['ffw1'], dec['ffb1'], dec['ffw2'], dec['ffb2'],
      dec['lnf'], dec['out_w'], dec['out_b'])


# ----------------------------------------------------------------------------
# Forward pass (2 pallas_call launches; wrapper does only tiny glue on final outputs)
# ----------------------------------------------------------------------------

def positional_encoding(length, dim):
    pos = jnp.arange(length, dtype=jnp.float32)[:, None]
    i = jnp.arange(0, dim, 2, dtype=jnp.float32)
    angle = pos / jnp.power(10000.0, i / dim)
    pe = jnp.zeros((length, dim), jnp.float32)
    pe = pe.at[:, 0::2].set(jnp.sin(angle))
    pe = pe.at[:, 1::2].set(jnp.cos(angle))
    return pe


def sltvac_forward(params, x, len_x, sentence, sentence_len):
    cfg = params['cfg']
    NC, V = cfg['num_classes'], cfg['vocab']
    B, C_in, T = x.shape
    L = sentence.shape[1]

    framewise = x                                         # (B, C_in, T), PyTorch 3-D path
    xt = jnp.transpose(x, (0, 2, 1)).astype(jnp.float32)  # (B, T, C_in)

    # ---------------- fused encoder kernel ----------------
    vis_b, clog_b, slog_b, kv_all = pallas_encoder(xt, params)
    Tp = vis_b.shape[1]

    visual = jnp.transpose(vis_b, (1, 0, 2))                       # (T', B, H)
    conv_logits = jnp.transpose(clog_b, (1, 0, 2))[..., :NC]       # (T', B, NC)
    sequence_logits = jnp.transpose(slog_b, (1, 0, 2))[..., :NC]   # (T', B, NC)
    feat_len = ((len_x - 4) // 2 - 4) // 2                         # K5 -> -4, P2 -> //2, twice

    # ---------------- additive attention biases (built once, tiny) ----------------
    self_bias = jnp.where(
        (jnp.arange(L)[None, None, :] < sentence_len[:, None, None]) &
        (jnp.arange(L)[None, :, None] >= jnp.arange(L)[None, None, :]),
        0.0, NEG).astype(jnp.float32)                              # (B, L, L)
    cross_bias = jnp.where(
        jnp.arange(Tp)[None, None, :] < feat_len[:, None, None],
        0.0, NEG).astype(jnp.float32)                              # (B, 1, Tp)

    # ---------------- fused decoder kernel ----------------
    emb = jnp.take(params['emb']['table'], sentence, axis=0)       # (B, L, E)
    sent_pad = pallas_decoder(emb, kv_all, self_bias, cross_bias, params)
    sentence_logits = sent_pad[..., :V]                            # (B, L, V)

    return {
        'feature_maps': None,    # TODO(synk): ResNet-2D feature maps (5-D path) not implemented
        'framewise_features': framewise,
        'visual_features': visual,
        'feat_len': feat_len,
        'conv_logits': conv_logits,
        'sequence_logits': sequence_logits,
        'sentence_logits': sentence_logits,
    }


# ----------------------------------------------------------------------------
# Deterministic synthetic parameters (kernel-friendly fused layouts)
# ----------------------------------------------------------------------------

def init_params(cfg):
    keys = iter(jax.random.split(jax.random.PRNGKey(42), 512))

    def nrm(shape, s=0.05):
        return s * jax.random.normal(next(keys), shape, dtype=jnp.float32)

    H = cfg['hidden']; Hd = H // 2
    C, NC, V, E, FF = cfg['c_in'], cfg['num_classes'], cfg['vocab'], cfg['emb'], cfg['ff']
    nl = cfg['dec_layers']

    def pad_cols(w, b):
        """Zero-pad output dim to a multiple of 128 lanes (lane-dense stores)."""
        dout = w.shape[1]
        dp = ((dout + LANE - 1) // LANE) * LANE
        return jnp.pad(w, ((0, 0), (0, dp - dout))), jnp.pad(b, (0, dp - dout)).reshape(1, dp)

    params = {'cfg': cfg}

    fc_w, fc_b = pad_cols(nrm((H, NC)), nrm((NC,)))
    params['tconv'] = dict(w1=nrm((5, C, H)), b1=nrm((H,)).reshape(1, H),
                           w2=nrm((5, H, H)), b2=nrm((H,)).reshape(1, H),
                           fc_w=fc_w, fc_b=fc_b)

    def bilstm_layer(In):
        # per-direction, per-gate weights (PyTorch gate order i,f,g,o) packed so both
        # directions' gates come out of a single 128-lane matmul:
        #   columns [i_f f_f g_f o_f | i_b f_b g_b o_b], whh block-diagonal over directions.
        wih_f, whh_f, b_f = nrm((4, In, Hd)), nrm((4, Hd, Hd)), nrm((4, Hd))
        wih_b, whh_b, b_b = nrm((4, In, Hd)), nrm((4, Hd, Hd)), nrm((4, Hd))
        wih = jnp.concatenate([wih_f[g] for g in range(4)] +
                              [wih_b[g] for g in range(4)], axis=1)          # (In, 8Hd)
        whh = jnp.zeros((2 * Hd, 8 * Hd), jnp.float32)
        whh = whh.at[:Hd, :4 * Hd].set(jnp.concatenate([whh_f[g] for g in range(4)], axis=1))
        whh = whh.at[Hd:, 4 * Hd:].set(jnp.concatenate([whh_b[g] for g in range(4)], axis=1))
        bias = jnp.concatenate([b_f.reshape(-1), b_b.reshape(-1)]).reshape(1, 8 * Hd)
        return dict(wih=wih, whh=whh, b=bias)

    params['lstm'] = [bilstm_layer(H), bilstm_layer(2 * Hd)]
    params['cls_w'], params['cls_b'] = pad_cols(nrm((H, NC)), nrm((NC,)))
    params['emb'] = dict(table=nrm((V, E)))

    one = lambda s: jnp.ones(s, jnp.float32)
    zero = lambda s: jnp.zeros(s, jnp.float32)

    lnp, wqkv, bqkv, wos, bos = [], [], [], [], []
    wqc, bqc, woc, boc = [], [], [], []
    ffw1, ffb1, ffw2, ffb2 = [], [], [], []
    kw, kb, vw, vb = [], [], [], []
    for _ in range(nl):
        wq, bq = nrm((H, H)), nrm((H,))
        wk, bk = nrm((H, H)), nrm((H,))
        wv, bv = nrm((H, H)), nrm((H,))
        wo, bo = nrm((H, H)), nrm((H,))
        cwq, cbq = nrm((H, H)), nrm((H,))
        cwk, cbk = nrm((H, H)), nrm((H,))
        cwv, cbv = nrm((H, H)), nrm((H,))
        cwo, cbo = nrm((H, H)), nrm((H,))
        lnp.append(jnp.stack([one((H,)), zero((H,)), one((H,)), zero((H,)),
                              one((H,)), zero((H,))]))
        wqkv.append(jnp.concatenate([wq, wk, wv], axis=1))
        bqkv.append(jnp.concatenate([bq, bk, bv]).reshape(1, 3 * H))
        wos.append(wo); bos.append(bo.reshape(1, H))
        wqc.append(cwq); bqc.append(cbq.reshape(1, H))
        woc.append(cwo); boc.append(cbo.reshape(1, H))
        ffw1.append(nrm((H, FF))); ffb1.append(nrm((FF,)).reshape(1, FF))
        ffw2.append(nrm((FF, H))); ffb2.append(nrm((H,)).reshape(1, H))
        kw.append(cwk); kb.append(cbk); vw.append(cwv); vb.append(cbv)

    out_w, out_b = pad_cols(nrm((H, V)), zero((V,)))
    params['dec'] = dict(
        proj_w=nrm((E, H)), proj_b=nrm((H,)).reshape(1, H),
        lnp=jnp.stack(lnp), wqkv=jnp.stack(wqkv), bqkv=jnp.stack(bqkv),
        wos=jnp.stack(wos), bos=jnp.stack(bos),
        wqc=jnp.stack(wqc), bqc=jnp.stack(bqc),
        woc=jnp.stack(woc), boc=jnp.stack(boc),
        ffw1=jnp.stack(ffw1), ffb1=jnp.stack(ffb1),
        ffw2=jnp.stack(ffw2), ffb2=jnp.stack(ffb2),
        lnf=jnp.stack([one((H,)), zero((H,))]),
        out_w=out_w, out_b=out_b)

    # every layer's cross-attention K/V projection packed into one (H, 2H*n_layers) slab
    params['kv_w'] = jnp.concatenate([jnp.concatenate([kw[l], vw[l]], axis=1)
                                      for l in range(nl)], axis=1)
    params['kv_b'] = jnp.concatenate([jnp.concatenate([kb[l], vb[l]])
                                      for l in range(nl)]).reshape(1, 2 * H * nl)

    # hoisted constants (computed once, not per forward)
    params['pe'] = positional_encoding(cfg['max_len'], H)
    return params


# ----------------------------------------------------------------------------
# Main
# ----------------------------------------------------------------------------

if __name__ == "__main__":
    cfg = dict(c_in=64, hidden=32, num_classes=40, vocab=50, emb=48,
               heads=4, ff=64, dec_layers=2, max_len=64)
    B, T, L = 2, 32, 8

    key = jax.random.PRNGKey(0)
    kx, ks = jax.random.split(key)
    x = jax.random.normal(kx, (B, cfg['c_in'], T), jnp.float32)     # framewise features (B,C,T)
    len_x = jnp.array([T, T], jnp.int32)   # TODO(synk): variable-length packing assumed equal
    sentence = jax.random.randint(ks, (B, L), 0, cfg['vocab'], dtype=jnp.int32)
    sentence_len = jnp.array([L, L - 2], jnp.int32)

    params = init_params(cfg)
    out = sltvac_forward(params, x, len_x, sentence, sentence_len)
    jax.block_until_ready(out)

    assert out['sequence_logits'].shape == (5, B, cfg['num_classes'])
    assert out['conv_logits'].shape == (5, B, cfg['num_classes'])
    assert out['visual_features'].shape == (5, B, cfg['hidden'])
    assert out['sentence_logits'].shape == (B, L, cfg['vocab'])
    print("KERNEL_OK")
</pallas_src>

<mosaic_0001>
module attributes {stable_mosaic.version = 11 : i64} {
  func.func @kern(%arg0: i32, %arg1: memref<1x32x64xf32, #tpu.memory_space<vmem>>, %arg2: memref<5x64x32xf32, #tpu.memory_space<vmem>>, %arg3: memref<1x32xf32, #tpu.memory_space<vmem>>, %arg4: memref<5x32x32xf32, #tpu.memory_space<vmem>>, %arg5: memref<1x32xf32, #tpu.memory_space<vmem>>, %arg6: memref<32x128xf32, #tpu.memory_space<vmem>>, %arg7: memref<1x128xf32, #tpu.memory_space<vmem>>, %arg8: memref<32x128xf32, #tpu.memory_space<vmem>>, %arg9: memref<32x128xf32, #tpu.memory_space<vmem>>, %arg10: memref<1x128xf32, #tpu.memory_space<vmem>>, %arg11: memref<32x128xf32, #tpu.memory_space<vmem>>, %arg12: memref<32x128xf32, #tpu.memory_space<vmem>>, %arg13: memref<1x128xf32, #tpu.memory_space<vmem>>, %arg14: memref<32x128xf32, #tpu.memory_space<vmem>>, %arg15: memref<1x128xf32, #tpu.memory_space<vmem>>, %arg16: memref<32x128xf32, #tpu.memory_space<vmem>>, %arg17: memref<1x128xf32, #tpu.memory_space<vmem>>, %arg18: memref<1x5x32xf32, #tpu.memory_space<vmem>>, %arg19: memref<1x5x128xf32, #tpu.memory_space<vmem>>, %arg20: memref<1x5x128xf32, #tpu.memory_space<vmem>>, %arg21: memref<1x5x128xf32, #tpu.memory_space<vmem>>, %arg22: memref<28x32xf32, #tpu.memory_space<vmem>>, %arg23: memref<10x32xf32, #tpu.memory_space<vmem>>, %arg24: memref<5x32xf32, #tpu.memory_space<vmem>>, %arg25: memref<5x32xf32, #tpu.memory_space<vmem>>) attributes {dimension_semantics = [#tpu.dimension_semantics<parallel>], iteration_bounds = array<i64: 2>, scalar_prefetch = 0 : i64, scratch_operands = 4 : i64, tpu.core_type = #tpu.core_type<tc>, window_params = [{transform_indices = @transform_0, window_bounds = array<i64: 1, 32, 64>}, {pipeline_mode = #tpu.pipeline_mode<synchronous>, transform_indices = @transform_1, window_bounds = array<i64: 5, 64, 32>}, {pipeline_mode = #tpu.pipeline_mode<synchronous>, transform_indices = @transform_2, window_bounds = array<i64: 1, 32>}, {pipeline_mode = #tpu.pipeline_mode<synchronous>, transform_indices = @transform_3, window_bounds = array<i64: 5, 32, 32>}, {pipeline_mode = #tpu.pipeline_mode<synchronous>, transform_indices = @transform_4, window_bounds = array<i64: 1, 32>}, {pipeline_mode = #tpu.pipeline_mode<synchronous>, transform_indices = @transform_5, window_bounds = array<i64: 32, 128>}, {pipeline_mode = #tpu.pipeline_mode<synchronous>, transform_indices = @transform_6, window_bounds = array<i64: 1, 128>}, {pipeline_mode = #tpu.pipeline_mode<synchronous>, transform_indices = @transform_7, window_bounds = array<i64: 32, 128>}, {pipeline_mode = #tpu.pipeline_mode<synchronous>, transform_indices = @transform_8, window_bounds = array<i64: 32, 128>}, {pipeline_mode = #tpu.pipeline_mode<synchronous>, transform_indices = @transform_9, window_bounds = array<i64: 1, 128>}, {pipeline_mode = #tpu.pipeline_mode<synchronous>, transform_indices = @transform_10, window_bounds = array<i64: 32, 128>}, {pipeline_mode = #tpu.pipeline_mode<synchronous>, transform_indices = @transform_11, window_bounds = array<i64: 32, 128>}, {pipeline_mode = #tpu.pipeline_mode<synchronous>, transform_indices = @transform_12, window_bounds = array<i64: 1, 128>}, {pipeline_mode = #tpu.pipeline_mode<synchronous>, transform_indices = @transform_13, window_bounds = array<i64: 32, 128>}, {pipeline_mode = #tpu.pipeline_mode<synchronous>, transform_indices = @transform_14, window_bounds = array<i64: 1, 128>}, {pipeline_mode = #tpu.pipeline_mode<synchronous>, transform_indices = @transform_15, window_bounds = array<i64: 32, 128>}, {pipeline_mode = #tpu.pipeline_mode<synchronous>, transform_indices = @transform_16, window_bounds = array<i64: 1, 128>}, {transform_indices = @transform_17, window_bounds = array<i64: 1, 5, 32>}, {transform_indices = @transform_18, window_bounds = array<i64: 1, 5, 128>}, {transform_indices = @transform_19, window_bounds = array<i64: 1, 5, 128>}, {transform_indices = @transform_20, window_bounds = array<i64: 1, 5, 128>}]} {
    %c0 = arith.constant 0 : index
    %c0_0 = arith.constant 0 : index
    %c0_1 = arith.constant 0 : index
    %0 = vector.load %arg1[%c0, %c0_0, %c0_1] : memref<1x32x64xf32, #tpu.memory_space<vmem>>, vector<1x32x64xf32>
    %1 = vector.shape_cast %0 : vector<1x32x64xf32> to vector<32x64xf32>
    %cst = arith.constant 0.000000e+00 : f32
    %2 = vector.broadcast %cst : f32 to vector<28x32xf32>
    %3 = vector.extract_strided_slice %1 {offsets = [0, 0], sizes = [28, 64], strides = [1, 1]} : vector<32x64xf32> to vector<28x64xf32>
    %c0_2 = arith.constant 0 : index
    %c0_3 = arith.constant 0 : index
    %c0_4 = arith.constant 0 : index
    %4 = vector.load %arg2[%c0_2, %c0_3, %c0_4] : memref<5x64x32xf32, #tpu.memory_space<vmem>>, vector<1x64x32xf32>
    %5 = vector.shape_cast %4 : vector<1x64x32xf32> to vector<64x32xf32>
    %cst_5 = arith.constant dense<0.000000e+00> : vector<28x32xf32>
    %6 = tpu.matmul %3, %5, %cst_5 {dimension_numbers = #tpu.dot_dimension_numbers<[1], [0], [0], [1], [0, 0, 1, 1], [], []>} : vector<28x64xf32>, vector<64x32xf32>, vector<28x32xf32> -> vector<28x32xf32>
    %7 = arith.addf %2, %6 : vector<28x32xf32>
    %8 = vector.extract_strided_slice %1 {offsets = [1, 0], sizes = [28, 64], strides = [1, 1]} : vector<32x64xf32> to vector<28x64xf32>
    %c1 = arith.constant 1 : index
    %c0_6 = arith.constant 0 : index
    %c0_7 = arith.constant 0 : index
    %9 = vector.load %arg2[%c1, %c0_6, %c0_7] : memref<5x64x32xf32, #tpu.memory_space<vmem>>, vector<1x64x32xf32>
    %10 = vector.shape_cast %9 : vector<1x64x32xf32> to vector<64x32xf32>
    %cst_8 = arith.constant dense<0.000000e+00> : vector<28x32xf32>
    %11 = tpu.matmul %8, %10, %cst_8 {dimension_numbers = #tpu.dot_dimension_numbers<[1], [0], [0], [1], [0, 0, 1, 1], [], []>} : vector<28x64xf32>, vector<64x32xf32>, vector<28x32xf32> -> vector<28x32xf32>
    %12 = arith.addf %7, %11 : vector<28x32xf32>
    %13 = vector.extract_strided_slice %1 {offsets = [2, 0], sizes = [28, 64], strides = [1, 1]} : vector<32x64xf32> to vector<28x64xf32>
    %c2 = arith.constant 2 : index
    %c0_9 = arith.constant 0 : index
    %c0_10 = arith.constant 0 : index
    %14 = vector.load %arg2[%c2, %c0_9, %c0_10] : memref<5x64x32xf32, #tpu.memory_space<vmem>>, vector<1x64x32xf32>
    %15 = vector.shape_cast %14 : vector<1x64x32xf32> to vector<64x32xf32>
    %cst_11 = arith.constant dense<0.000000e+00> : vector<28x32xf32>
    %16 = tpu.matmul %13, %15, %cst_11 {dimension_numbers = #tpu.dot_dimension_numbers<[1], [0], [0], [1], [0, 0, 1, 1], [], []>} : vector<28x64xf32>, vector<64x32xf32>, vector<28x32xf32> -> vector<28x32xf32>
    %17 = arith.addf %12, %16 : vector<28x32xf32>
    %18 = vector.extract_strided_slice %1 {offsets = [3, 0], sizes = [28, 64], strides = [1, 1]} : vector<32x64xf32> to vector<28x64xf32>
    %c3 = arith.constant 3 : index
    %c0_12 = arith.constant 0 : index
    %c0_13 = arith.constant 0 : index
    %19 = vector.load %arg2[%c3, %c0_12, %c0_13] : memref<5x64x32xf32, #tpu.memory_space<vmem>>, vector<1x64x32xf32>
    %20 = vector.shape_cast %19 : vector<1x64x32xf32> to vector<64x32xf32>
    %cst_14 = arith.constant dense<0.000000e+00> : vector<28x32xf32>
    %21 = tpu.matmul %18, %20, %cst_14 {dimension_numbers = #tpu.dot_dimension_numbers<[1], [0], [0], [1], [0, 0, 1, 1], [], []>} : vector<28x64xf32>, vector<64x32xf32>, vector<28x32xf32> -> vector<28x32xf32>
    %22 = arith.addf %17, %21 : vector<28x32xf32>
    %23 = vector.extract_strided_slice %1 {offsets = [4, 0], sizes = [28, 64], strides = [1, 1]} : vector<32x64xf32> to vector<28x64xf32>
    %c4 = arith.constant 4 : index
    %c0_15 = arith.constant 0 : index
    %c0_16 = arith.constant 0 : index
    %24 = vector.load %arg2[%c4, %c0_15, %c0_16] : memref<5x64x32xf32, #tpu.memory_space<vmem>>, vector<1x64x32xf32>
    %25 = vector.shape_cast %24 : vector<1x64x32xf32> to vector<64x32xf32>
    %cst_17 = arith.constant dense<0.000000e+00> : vector<28x32xf32>
    %26 = tpu.matmul %23, %25, %cst_17 {dimension_numbers = #tpu.dot_dimension_numbers<[1], [0], [0], [1], [0, 0, 1, 1], [], []>} : vector<28x64xf32>, vector<64x32xf32>, vector<28x32xf32> -> vector<28x32xf32>
    %27 = arith.addf %22, %26 : vector<28x32xf32>
    %c0_18 = arith.constant 0 : index
    %c0_19 = arith.constant 0 : index
    %28 = vector.load %arg3[%c0_18, %c0_19] : memref<1x32xf32, #tpu.memory_space<vmem>>, vector<1x32xf32>
    %29 = vector.broadcast %28 : vector<1x32xf32> to vector<28x32xf32>
    %30 = arith.addf %27, %29 : vector<28x32xf32>
    %cst_20 = arith.constant 0.000000e+00 : f32
    %31 = vector.broadcast %cst_20 : f32 to vector<28x32xf32>
    %32 = arith.maximumf %30, %31 : vector<28x32xf32>
    %c0_21 = arith.constant 0 : index
    %c0_22 = arith.constant 0 : index
    %33 = vector.load %arg22[%c0_21, %c0_22] : memref<28x32xf32, #tpu.memory_space<vmem>>, vector<28x32xf32>
    tpu.vector_store %arg22[%c0_21, %c0_22], %32 {strides = array<i32>} : memref<28x32xf32, #tpu.memory_space<vmem>>, vector<28x32xf32>,
    %c0_23 = arith.constant 0 : index
    %c0_24 = arith.constant 0 : index
    %34 = tpu.strided_load %arg22[%c0_23, %c0_24] {strides = array<i32: 2, 1>} : memref<28x32xf32, #tpu.memory_space<vmem>>, vector<14x32xf32>
    %c1_25 = arith.constant 1 : index
    %c0_26 = arith.constant 0 : index
    %35 = tpu.strided_load %arg22[%c1_25, %c0_26] {strides = array<i32: 2, 1>} : memref<28x32xf32, #tpu.memory_space<vmem>>, vector<14x32xf32>
    %36 = arith.maximumf %34, %35 : vector<14x32xf32>
    %cst_27 = arith.constant 0.000000e+00 : f32
    %37 = vector.broadcast %cst_27 : f32 to vector<10x32xf32>
    %38 = vector.extract_strided_slice %36 {offsets = [0, 0], sizes = [10, 32], strides = [1, 1]} : vector<14x32xf32> to vector<10x32xf32>
    %c0_28 = arith.constant 0 : index
    %c0_29 = arith.constant 0 : index
    %c0_30 = arith.constant 0 : index
    %39 = vector.load %arg4[%c0_28, %c0_29, %c0_30] : memref<5x32x32xf32, #tpu.memory_space<vmem>>, vector<1x32x32xf32>
    %40 = vector.shape_cast %39 : vector<1x32x32xf32> to vector<32x32xf32>
    %cst_31 = arith.constant dense<0.000000e+00> : vector<10x32xf32>
    %41 = tpu.matmul %38, %40, %cst_31 {dimension_numbers = #tpu.dot_dimension_numbers<[1], [0], [0], [1], [0, 0, 1, 1], [], []>} : vector<10x32xf32>, vector<32x32xf32>, vector<10x32xf32> -> vector<10x32xf32>
    %42 = arith.addf %37, %41 : vector<10x32xf32>
    %43 = vector.extract_strided_slice %36 {offsets = [1, 0], sizes = [10, 32], strides = [1, 1]} : vector<14x32xf32> to vector<10x32xf32>
    %c1_32 = arith.constant 1 : index
    %c0_33 = arith.constant 0 : index
    %c0_34 = arith.constant 0 : index
    %44 = vector.load %arg4[%c1_32, %c0_33, %c0_34] : memref<5x32x32xf32, #tpu.memory_space<vmem>>, vector<1x32x32xf32>
    %45 = vector.shape_cast %44 : vector<1x32x32xf32> to vector<32x32xf32>
    %cst_35 = arith.constant dense<0.000000e+00> : vector<10x32xf32>
    %46 = tpu.matmul %43, %45, %cst_35 {dimension_numbers = #tpu.dot_dimension_numbers<[1], [0], [0], [1], [0, 0, 1, 1], [], []>} : vector<10x32xf32>, vector<32x32xf32>, vector<10x32xf32> -> vector<10x32xf32>
    %47 = arith.addf %42, %46 : vector<10x32xf32>
    %48 = vector.extract_strided_slice %36 {offsets = [2, 0], sizes = [10, 32], strides = [1, 1]} : vector<14x32xf32> to vector<10x32xf32>
    %c2_36 = arith.constant 2 : index
    %c0_37 = arith.constant 0 : index
    %c0_38 = arith.constant 0 : index
    %49 = vector.load %arg4[%c2_36, %c0_37, %c0_38] : memref<5x32x32xf32, #tpu.memory_space<vmem>>, vector<1x32x32xf32>
    %50 = vector.shape_cast %49 : vector<1x32x32xf32> to vector<32x32xf32>
    %cst_39 = arith.constant dense<0.000000e+00> : vector<10x32xf32>
    %51 = tpu.matmul %48, %50, %cst_39 {dimension_numbers = #tpu.dot_dimension_numbers<[1], [0], [0], [1], [0, 0, 1, 1], [], []>} : vector<10x32xf32>, vector<32x32xf32>, vector<10x32xf32> -> vector<10x32xf32>
    %52 = arith.addf %47, %51 : vector<10x32xf32>
    %53 = vector.extract_strided_slice %36 {offsets = [3, 0], sizes = [10, 32], strides = [1, 1]} : vector<14x32xf32> to vector<10x32xf32>
    %c3_40 = arith.constant 3 : index
    %c0_41 = arith.constant 0 : index
    %c0_42 = arith.constant 0 : index
    %54 = vector.load %arg4[%c3_40, %c0_41, %c0_42] : memref<5x32x32xf32, #tpu.memory_space<vmem>>, vector<1x32x32xf32>
    %55 = vector.shape_cast %54 : vector<1x32x32xf32> to vector<32x32xf32>
    %cst_43 = arith.constant dense<0.000000e+00> : vector<10x32xf32>
    %56 = tpu.matmul %53, %55, %cst_43 {dimension_numbers = #tpu.dot_dimension_numbers<[1], [0], [0], [1], [0, 0, 1, 1], [], []>} : vector<10x32xf32>, vector<32x32xf32>, vector<10x32xf32> -> vector<10x32xf32>
    %57 = arith.addf %52, %56 : vector<10x32xf32>
    %58 = vector.extract_strided_slice %36 {offsets = [4, 0], sizes = [10, 32], strides = [1, 1]} : vector<14x32xf32> to vector<10x32xf32>
    %c4_44 = arith.constant 4 : index
    %c0_45 = arith.constant 0 : index
    %c0_46 = arith.constant 0 : index
    %59 = vector.load %arg4[%c4_44, %c0_45, %c0_46] : memref<5x32x32xf32, #tpu.memory_space<vmem>>, vector<1x32x32xf32>
    %60 = vector.shape_cast %59 : vector<1x32x32xf32> to vector<32x32xf32>
    %cst_47 = arith.constant dense<0.000000e+00> : vector<10x32xf32>
    %61 = tpu.matmul %58, %60, %cst_47 {dimension_numbers = #tpu.dot_dimension_numbers<[1], [0], [0], [1], [0, 0, 1, 1], [], []>} : vector<10x32xf32>, vector<32x32xf32>, vector<10x32xf32> -> vector<10x32xf32>
    %62 = arith.addf %57, %61 : vector<10x32xf32>
    %c0_48 = arith.constant 0 : index
    %c0_49 = arith.constant 0 : index
    %63 = vector.load %arg5[%c0_48, %c0_49] : memref<1x32xf32, #tpu.memory_space<vmem>>, vector<1x32xf32>
    %64 = vector.broadcast %63 : vector<1x32xf32> to vector<10x32xf32>
    %65 = arith.addf %62, %64 : vector<10x32xf32>
    %cst_50 = arith.constant 0.000000e+00 : f32
    %66 = vector.broadcast %cst_50 : f32 to vector<10x32xf32>
    %67 = arith.maximumf %65, %66 : vector<10x32xf32>
    %c0_51 = arith.constant 0 : index
    %c0_52 = arith.constant 0 : index
    %68 = vector.load %arg23[%c0_51, %c0_52] : memref<10x32xf32, #tpu.memory_space<vmem>>, vector<10x32xf32>
    tpu.vector_store %arg23[%c0_51, %c0_52], %67 {strides = array<i32>} : memref<10x32xf32, #tpu.memory_space<vmem>>, vector<10x32xf32>,
    %c0_53 = arith.constant 0 : index
    %c0_54 = arith.constant 0 : index
    %69 = tpu.strided_load %arg23[%c0_53, %c0_54] {strides = array<i32: 2, 1>} : memref<10x32xf32, #tpu.memory_space<vmem>>, vector<5x32xf32>
    %c1_55 = arith.constant 1 : index
    %c0_56 = arith.constant 0 : index
    %70 = tpu.strided_load %arg23[%c1_55, %c0_56] {strides = array<i32: 2, 1>} : memref<10x32xf32, #tpu.memory_space<vmem>>, vector<5x32xf32>
    %71 = arith.maximumf %69, %70 : vector<5x32xf32>
    %c0_57 = arith.constant 0 : index
    %c0_58 = arith.constant 0 : index
    %c0_59 = arith.constant 0 : index
    %72 = vector.load %arg18[%c0_57, %c0_58, %c0_59] : memref<1x5x32xf32, #tpu.memory_space<vmem>>, vector<1x5x32xf32>
    %73 = vector.shape_cast %72 : vector<1x5x32xf32> to vector<5x32xf32>
    %74 = vector.shape_cast %71 : vector<5x32xf32> to vector<1x5x32xf32>
    tpu.vector_store %arg18[%c0_57, %c0_58, %c0_59], %74 {strides = array<i32>} : memref<1x5x32xf32, #tpu.memory_space<vmem>>, vector<1x5x32xf32>,
    %c0_60 = arith.constant 0 : index
    %c0_61 = arith.constant 0 : index
    %75 = vector.load %arg6[%c0_60, %c0_61] : memref<32x128xf32, #tpu.memory_space<vmem>>, vector<32x128xf32>
    %cst_62 = arith.constant dense<0.000000e+00> : vector<5x128xf32>
    %76 = tpu.matmul %71, %75, %cst_62 {dimension_numbers = #tpu.dot_dimension_numbers<[1], [0], [0], [1], [0, 0, 1, 1], [], []>} : vector<5x32xf32>, vector<32x128xf32>, vector<5x128xf32> -> vector<5x128xf32>
    %c0_63 = arith.constant 0 : index
    %c0_64 = arith.constant 0 : index
    %77 = vector.load %arg7[%c0_63, %c0_64] : memref<1x128xf32, #tpu.memory_space<vmem>>, vector<1x128xf32>
    %78 = vector.broadcast %77 : vector<1x128xf32> to vector<5x128xf32>
    %79 = arith.addf %76, %78 : vector<5x128xf32>
    %c0_65 = arith.constant 0 : index
    %c0_66 = arith.constant 0 : index
    %c0_67 = arith.constant 0 : index
    %80 = vector.load %arg19[%c0_65, %c0_66, %c0_67] : memref<1x5x128xf32, #tpu.memory_space<vmem>>, vector<1x5x128xf32>
    %81 = vector.shape_cast %80 : vector<1x5x128xf32> to vector<5x128xf32>
    %82 = vector.shape_cast %79 : vector<5x128xf32> to vector<1x5x128xf32>
    tpu.vector_store %arg19[%c0_65, %c0_66, %c0_67], %82 {strides = array<i32>} : memref<1x5x128xf32, #tpu.memory_space<vmem>>, vector<1x5x128xf32>,
    %c0_68 = arith.constant 0 : index
    %c0_69 = arith.constant 0 : index
    %83 = vector.load %arg8[%c0_68, %c0_69] : memref<32x128xf32, #tpu.memory_space<vmem>>, vector<32x128xf32>
    %cst_70 = arith.constant dense<0.000000e+00> : vector<5x128xf32>
    %84 = tpu.matmul %71, %83, %cst_70 {dimension_numbers = #tpu.dot_dimension_numbers<[1], [0], [0], [1], [0, 0, 1, 1], [], []>} : vector<5x32xf32>, vector<32x128xf32>, vector<5x128xf32> -> vector<5x128xf32>
    %c0_71 = arith.constant 0 : index
    %c0_72 = arith.constant 0 : index
    %85 = vector.load %arg10[%c0_71, %c0_72] : memref<1x128xf32, #tpu.memory_space<vmem>>, vector<1x128xf32>
    %86 = vector.broadcast %85 : vector<1x128xf32> to vector<5x128xf32>
    %87 = arith.addf %84, %86 : vector<5x128xf32>
    %cst_73 = arith.constant 0.000000e+00 : f32
    %88 = vector.broadcast %cst_73 : f32 to vector<1x32xf32>
    %cst_74 = arith.constant 0.000000e+00 : f32
    %89 = vector.broadcast %cst_74 : f32 to vector<1x16xf32>
    %cst_75 = arith.constant 0.000000e+00 : f32
    %90 = vector.broadcast %cst_75 : f32 to vector<1x16xf32>
    %c0_76 = arith.constant 0 : index
    %c0_77 = arith.constant 0 : index
    %91 = vector.load %arg9[%c0_76, %c0_77] : memref<32x128xf32, #tpu.memory_space<vmem>>, vector<32x128xf32>
    %cst_78 = arith.constant dense<0.000000e+00> : vector<1x128xf32>
    %92 = tpu.matmul %88, %91, %cst_78 {dimension_numbers = #tpu.dot_dimension_numbers<[1], [0], [0], [1], [0, 0, 1, 1], [], []>} : vector<1x32xf32>, vector<32x128xf32>, vector<1x128xf32> -> vector<1x128xf32>
    %93 = vector.extract_strided_slice %87 {offsets = [0, 0], sizes = [1, 64], strides = [1, 1]} : vector<5x128xf32> to vector<1x64xf32>
    %94 = vector.extract_strided_slice %92 {offsets = [0, 0], sizes = [1, 64], strides = [1, 1]} : vector<1x128xf32> to vector<1x64xf32>
    %95 = arith.addf %93, %94 : vector<1x64xf32>
    %96 = vector.extract_strided_slice %87 {offsets = [4, 64], sizes = [1, 64], strides = [1, 1]} : vector<5x128xf32> to vector<1x64xf32>
    %97 = vector.extract_strided_slice %92 {offsets = [0, 64], sizes = [1, 64], strides = [1, 1]} : vector<1x128xf32> to vector<1x64xf32>
    %98 = arith.addf %96, %97 : vector<1x64xf32>
    %99 = vector.extract_strided_slice %95 {offsets = [0, 0], sizes = [1, 16], strides = [1, 1]} : vector<1x64xf32> to vector<1x16xf32>
    %100 = arith.negf %99 : vector<1x16xf32>
    %101 = math.exp %100 : vector<1x16xf32>
    %cst_79 = arith.constant 1.000000e+00 : f32
    %102 = vector.broadcast %cst_79 : f32 to vector<1x16xf32>
    %103 = arith.addf %102, %101 : vector<1x16xf32>
    %104 = arith.divf %102, %103 : vector<1x16xf32>
    %105 = vector.extract_strided_slice %95 {offsets = [0, 16], sizes = [1, 16], strides = [1, 1]} : vector<1x64xf32> to vector<1x16xf32>
    %106 = arith.negf %105 : vector<1x16xf32>
    %107 = math.exp %106 : vector<1x16xf32>
    %cst_80 = arith.constant 1.000000e+00 : f32
    %108 = vector.broadcast %cst_80 : f32 to vector<1x16xf32>
    %109 = arith.addf %108, %107 : vector<1x16xf32>
    %110 = arith.divf %108, %109 : vector<1x16xf32>
    %111 = vector.extract_strided_slice %95 {offsets = [0, 32], sizes = [1, 16], strides = [1, 1]} : vector<1x64xf32> to vector<1x16xf32>
    %112 = math.tanh %111 : vector<1x16xf32>
    %113 = vector.extract_strided_slice %95 {offsets = [0, 48], sizes = [1, 16], strides = [1, 1]} : vector<1x64xf32> to vector<1x16xf32>
    %114 = arith.negf %113 : vector<1x16xf32>
    %115 = math.exp %114 : vector<1x16xf32>
    %cst_81 = arith.constant 1.000000e+00 : f32
    %116 = vector.broadcast %cst_81 : f32 to vector<1x16xf32>
    %117 = arith.addf %116, %115 : vector<1x16xf32>
    %118 = arith.divf %116, %117 : vector<1x16xf32>
    %119 = vector.extract_strided_slice %98 {offsets = [0, 0], sizes = [1, 16], strides = [1, 1]} : vector<1x64xf32> to vector<1x16xf32>
    %120 = arith.negf %119 : vector<1x16xf32>
    %121 = math.exp %120 : vector<1x16xf32>
    %cst_82 = arith.constant 1.000000e+00 : f32
    %122 = vector.broadcast %cst_82 : f32 to vector<1x16xf32>
    %123 = arith.addf %122, %121 : vector<1x16xf32>
    %124 = arith.divf %122, %123 : vector<1x16xf32>
    %125 = vector.extract_strided_slice %98 {offsets = [0, 16], sizes = [1, 16], strides = [1, 1]} : vector<1x64xf32> to vector<1x16xf32>
    %126 = arith.negf %125 : vector<1x16xf32>
    %127 = math.exp %126 : vector<1x16xf32>
    %cst_83 = arith.constant 1.000000e+00 : f32
    %128 = vector.broadcast %cst_83 : f32 to vector<1x16xf32>
    %129 = arith.addf %128, %127 : vector<1x16xf32>
    %130 = arith.divf %128, %129 : vector<1x16xf32>
    %131 = vector.extract_strided_slice %98 {offsets = [0, 32], sizes = [1, 16], strides = [1, 1]} : vector<1x64xf32> to vector<1x16xf32>
    %132 = math.tanh %131 : vector<1x16xf32>
    %133 = vector.extract_strided_slice %98 {offsets = [0, 48], sizes = [1, 16], strides = [1, 1]} : vector<1x64xf32> to vector<1x16xf32>
    %134 = arith.negf %133 : vector<1x16xf32>
    %135 = math.exp %134 : vector<1x16xf32>
    %cst_84 = arith.constant 1.000000e+00 : f32
    %136 = vector.broadcast %cst_84 : f32 to vector<1x16xf32>
    %137 = arith.addf %136, %135 : vector<1x16xf32>
    %138 = arith.divf %136, %137 : vector<1x16xf32>
    %139 = arith.mulf %110, %89 : vector<1x16xf32>
    %140 = arith.mulf %104, %112 : vector<1x16xf32>
    %141 = arith.addf %139, %140 : vector<1x16xf32>
    %142 = math.tanh %141 : vector<1x16xf32>
    %143 = arith.mulf %118, %142 : vector<1x16xf32>
    %144 = arith.mulf %130, %90 : vector<1x16xf32>
    %145 = arith.mulf %124, %132 : vector<1x16xf32>
    %146 = arith.addf %144, %145 : vector<1x16xf32>
    %147 = math.tanh %146 : vector<1x16xf32>
    %148 = arith.mulf %138, %147 : vector<1x16xf32>
    %c0_85 = arith.constant 0 : index
    %c0_86 = arith.constant 0 : index
    %149 = vector.load %arg24[%c0_85, %c0_86] : memref<5x32xf32, #tpu.memory_space<vmem>>, vector<1x16xf32>
    tpu.vector_store %arg24[%c0_85, %c0_86], %143 {strides = array<i32>} : memref<5x32xf32, #tpu.memory_space<vmem>>, vector<1x16xf32>,
    %c4_87 = arith.constant 4 : index
    %c16 = arith.constant 16 : index
    %150 = vector.load %arg24[%c4_87, %c16] : memref<5x32xf32, #tpu.memory_space<vmem>>, vector<1x16xf32>
    tpu.vector_store %arg24[%c4_87, %c16], %148 {strides = array<i32>} : memref<5x32xf32, #tpu.memory_space<vmem>>, vector<1x16xf32>,
    %151 = tpu.concatenate %143, %148 in 1 : vector<1x16xf32>, vector<1x16xf32> -> vector<1x32xf32>
    %c0_88 = arith.constant 0 : index
    %c0_89 = arith.constant 0 : index
    %152 = vector.load %arg9[%c0_88, %c0_89] : memref<32x128xf32, #tpu.memory_space<vmem>>, vector<32x128xf32>
    %cst_90 = arith.constant dense<0.000000e+00> : vector<1x128xf32>
    %153 = tpu.matmul %151, %152, %cst_90 {dimension_numbers = #tpu.dot_dimension_numbers<[1], [0], [0], [1], [0, 0, 1, 1], [], []>} : vector<1x32xf32>, vector<32x128xf32>, vector<1x128xf32> -> vector<1x128xf32>
    %154 = vector.extract_strided_slice %87 {offsets = [1, 0], sizes = [1, 64], strides = [1, 1]} : vector<5x128xf32> to vector<1x64xf32>
    %155 = vector.extract_strided_slice %153 {offsets = [0, 0], sizes = [1, 64], strides = [1, 1]} : vector<1x128xf32> to vector<1x64xf32>
    %156 = arith.addf %154, %155 : vector<1x64xf32>
    %157 = vector.extract_strided_slice %87 {offsets = [3, 64], sizes = [1, 64], strides = [1, 1]} : vector<5x128xf32> to vector<1x64xf32>
    %158 = vector.extract_strided_slice %153 {offsets = [0, 64], sizes = [1, 64], strides = [1, 1]} : vector<1x128xf32> to vector<1x64xf32>
    %159 = arith.addf %157, %158 : vector<1x64xf32>
    %160 = vector.extract_strided_slice %156 {offsets = [0, 0], sizes = [1, 16], strides = [1, 1]} : vector<1x64xf32> to vector<1x16xf32>
    %161 = arith.negf %160 : vector<1x16xf32>
    %162 = math.exp %161 : vector<1x16xf32>
    %cst_91 = arith.constant 1.000000e+00 : f32
    %163 = vector.broadcast %cst_91 : f32 to vector<1x16xf32>
    %164 = arith.addf %163, %162 : vector<1x16xf32>
    %165 = arith.divf %163, %164 : vector<1x16xf32>
    %166 = vector.extract_strided_slice %156 {offsets = [0, 16], sizes = [1, 16], strides = [1, 1]} : vector<1x64xf32> to vector<1x16xf32>
    %167 = arith.negf %166 : vector<1x16xf32>
    %168 = math.exp %167 : vector<1x16xf32>
    %cst_92 = arith.constant 1.000000e+00 : f32
    %169 = vector.broadcast %cst_92 : f32 to vector<1x16xf32>
    %170 = arith.addf %169, %168 : vector<1x16xf32>
    %171 = arith.divf %169, %170 : vector<1x16xf32>
    %172 = vector.extract_strided_slice %156 {offsets = [0, 32], sizes = [1, 16], strides = [1, 1]} : vector<1x64xf32> to vector<1x16xf32>
    %173 = math.tanh %172 : vector<1x16xf32>
    %174 = vector.extract_strided_slice %156 {offsets = [0, 48], sizes = [1, 16], strides = [1, 1]} : vector<1x64xf32> to vector<1x16xf32>
    %175 = arith.negf %174 : vector<1x16xf32>
    %176 = math.exp %175 : vector<1x16xf32>
    %cst_93 = arith.constant 1.000000e+00 : f32
    %177 = vector.broadcast %cst_93 : f32 to vector<1x16xf32>
    %178 = arith.addf %177, %176 : vector<1x16xf32>
    %179 = arith.divf %177, %178 : vector<1x16xf32>
    %180 = vector.extract_strided_slice %159 {offsets = [0, 0], sizes = [1, 16], strides = [1, 1]} : vector<1x64xf32> to vector<1x16xf32>
    %181 = arith.negf %180 : vector<1x16xf32>
    %182 = math.exp %181 : vector<1x16xf32>
    %cst_94 = arith.constant 1.000000e+00 : f32
    %183 = vector.broadcast %cst_94 : f32 to vector<1x16xf32>
    %184 = arith.addf %183, %182 : vector<1x16xf32>
    %185 = arith.divf %183, %184 : vector<1x16xf32>
    %186 = vector.extract_strided_slice %159 {offsets = [0, 16], sizes = [1, 16], strides = [1, 1]} : vector<1x64xf32> to vector<1x16xf32>
    %187 = arith.negf %186 : vector<1x16xf32>
    %188 = math.exp %187 : vector<1x16xf32>
    %cst_95 = arith.constant 1.000000e+00 : f32
    %189 = vector.broadcast %cst_95 : f32 to vector<1x16xf32>
    %190 = arith.addf %189, %188 : vector<1x16xf32>
    %191 = arith.divf %189, %190 : vector<1x16xf32>
    %192 = vector.extract_strided_slice %159 {offsets = [0, 32], sizes = [1, 16], strides = [1, 1]} : vector<1x64xf32> to vector<1x16xf32>
    %193 = math.tanh %192 : vector<1x16xf32>
    %194 = vector.extract_strided_slice %159 {offsets = [0, 48], sizes = [1, 16], strides = [1, 1]} : vector<1x64xf32> to vector<1x16xf32>
    %195 = arith.negf %194 : vector<1x16xf32>
    %196 = math.exp %195 : vector<1x16xf32>
    %cst_96 = arith.constant 1.000000e+00 : f32
    %197 = vector.broadcast %cst_96 : f32 to vector<1x16xf32>
    %198 = arith.addf %197, %196 : vector<1x16xf32>
    %199 = arith.divf %197, %198 : vector<1x16xf32>
    %200 = arith.mulf %171, %141 : vector<1x16xf32>
    %201 = arith.mulf %165, %173 : vector<1x16xf32>
    %202 = arith.addf %200, %201 : vector<1x16xf32>
    %203 = math.tanh %202 : vector<1x16xf32>
    %204 = arith.mulf %179, %203 : vector<1x16xf32>
    %205 = arith.mulf %191, %146 : vector<1x16xf32>
    %206 = arith.mulf %185, %193 : vector<1x16xf32>
    %207 = arith.addf %205, %206 : vector<1x16xf32>
    %208 = math.tanh %207 : vector<1x16xf32>
    %209 = arith.mulf %199, %208 : vector<1x16xf32>
    %c1_97 = arith.constant 1 : index
    %c0_98 = arith.constant 0 : index
    %210 = vector.load %arg24[%c1_97, %c0_98] : memref<5x32xf32, #tpu.memory_space<vmem>>, vector<1x16xf32>
    tpu.vector_store %arg24[%c1_97, %c0_98], %204 {strides = array<i32>} : memref<5x32xf32, #tpu.memory_space<vmem>>, vector<1x16xf32>,
    %c3_99 = arith.constant 3 : index
    %c16_100 = arith.constant 16 : index
    %211 = vector.load %arg24[%c3_99, %c16_100] : memref<5x32xf32, #tpu.memory_space<vmem>>, vector<1x16xf32>
    tpu.vector_store %arg24[%c3_99, %c16_100], %209 {strides = array<i32>} : memref<5x32xf32, #tpu.memory_space<vmem>>, vector<1x16xf32>,
    %212 = tpu.concatenate %204, %209 in 1 : vector<1x16xf32>, vector<1x16xf32> -> vector<1x32xf32>
    %c0_101 = arith.constant 0 : index
    %c0_102 = arith.constant 0 : index
    %213 = vector.load %arg9[%c0_101, %c0_102] : memref<32x128xf32, #tpu.memory_space<vmem>>, vector<32x128xf32>
    %cst_103 = arith.constant dense<0.000000e+00> : vector<1x128xf32>
    %214 = tpu.matmul %212, %213, %cst_103 {dimension_numbers = #tpu.dot_dimension_numbers<[1], [0], [0], [1], [0, 0, 1, 1], [], []>} : vector<1x32xf32>, vector<32x128xf32>, vector<1x128xf32> -> vector<1x128xf32>
    %215 = vector.extract_strided_slice %87 {offsets = [2, 0], sizes = [1, 64], strides = [1, 1]} : vector<5x128xf32> to vector<1x64xf32>
    %216 = vector.extract_strided_slice %214 {offsets = [0, 0], sizes = [1, 64], strides = [1, 1]} : vector<1x128xf32> to vector<1x64xf32>
    %217 = arith.addf %215, %216 : vector<1x64xf32>
    %218 = vector.extract_strided_slice %87 {offsets = [2, 64], sizes = [1, 64], strides = [1, 1]} : vector<5x128xf32> to vector<1x64xf32>
    %219 = vector.extract_strided_slice %214 {offsets = [0, 64], sizes = [1, 64], strides = [1, 1]} : vector<1x128xf32> to vector<1x64xf32>
    %220 = arith.addf %218, %219 : vector<1x64xf32>
    %221 = vector.extract_strided_slice %217 {offsets = [0, 0], sizes = [1, 16], strides = [1, 1]} : vector<1x64xf32> to vector<1x16xf32>
    %222 = arith.negf %221 : vector<1x16xf32>
    %223 = math.exp %222 : vector<1x16xf32>
    %cst_104 = arith.constant 1.000000e+00 : f32
    %224 = vector.broadcast %cst_104 : f32 to vector<1x16xf32>
    %225 = arith.addf %224, %223 : vector<1x16xf32>
    %226 = arith.divf %224, %225 : vector<1x16xf32>
    %227 = vector.extract_strided_slice %217 {offsets = [0, 16], sizes = [1, 16], strides = [1, 1]} : vector<1x64xf32> to vector<1x16xf32>
    %228 = arith.negf %227 : vector<1x16xf32>
    %229 = math.exp %228 : vector<1x16xf32>
    %cst_105 = arith.constant 1.000000e+00 : f32
    %230 = vector.broadcast %cst_105 : f32 to vector<1x16xf32>
    %231 = arith.addf %230, %229 : vector<1x16xf32>
    %232 = arith.divf %230, %231 : vector<1x16xf32>
    %233 = vector.extract_strided_slice %217 {offsets = [0, 32], sizes = [1, 16], strides = [1, 1]} : vector<1x64xf32> to vector<1x16xf32>
    %234 = math.tanh %233 : vector<1x16xf32>
    %235 = vector.extract_strided_slice %217 {offsets = [0, 48], sizes = [1, 16], strides = [1, 1]} : vector<1x64xf32> to vector<1x16xf32>
    %236 = arith.negf %235 : vector<1x16xf32>
    %237 = math.exp %236 : vector<1x16xf32>
    %cst_106 = arith.constant 1.000000e+00 : f32
    %238 = vector.broadcast %cst_106 : f32 to vector<1x16xf32>
    %239 = arith.addf %238, %237 : vector<1x16xf32>
    %240 = arith.divf %238, %239 : vector<1x16xf32>
    %241 = vector.extract_strided_slice %220 {offsets = [0, 0], sizes = [1, 16], strides = [1, 1]} : vector<1x64xf32> to vector<1x16xf32>
    %242 = arith.negf %241 : vector<1x16xf32>
    %243 = math.exp %242 : vector<1x16xf32>
    %cst_107 = arith.constant 1.000000e+00 : f32
    %244 = vector.broadcast %cst_107 : f32 to vector<1x16xf32>
    %245 = arith.addf %244, %243 : vector<1x16xf32>
    %246 = arith.divf %244, %245 : vector<1x16xf32>
    %247 = vector.extract_strided_slice %220 {offsets = [0, 16], sizes = [1, 16], strides = [1, 1]} : vector<1x64xf32> to vector<1x16xf32>
    %248 = arith.negf %247 : vector<1x16xf32>
    %249 = math.exp %248 : vector<1x16xf32>
    %cst_108 = arith.constant 1.000000e+00 : f32
    %250 = vector.broadcast %cst_108 : f32 to vector<1x16xf32>
    %251 = arith.addf %250, %249 : vector<1x16xf32>
    %252 = arith.divf %250, %251 : vector<1x16xf32>
    %253 = vector.extract_strided_slice %220 {offsets = [0, 32], sizes = [1, 16], strides = [1, 1]} : vector<1x64xf32> to vector<1x16xf32>
    %254 = math.tanh %253 : vector<1x16xf32>
    %255 = vector.extract_strided_slice %220 {offsets = [0, 48], sizes = [1, 16], strides = [1, 1]} : vector<1x64xf32> to vector<1x16xf32>
    %256 = arith.negf %255 : vector<1x16xf32>
    %257 = math.exp %256 : vector<1x16xf32>
    %cst_109 = arith.constant 1.000000e+00 : f32
    %258 = vector.broadcast %cst_109 : f32 to vector<1x16xf32>
    %259 = arith.addf %258, %257 : vector<1x16xf32>
    %260 = arith.divf %258, %259 : vector<1x16xf32>
    %261 = arith.mulf %232, %202 : vector<1x16xf32>
    %262 = arith.mulf %226, %234 : vector<1x16xf32>
    %263 = arith.addf %261, %262 : vector<1x16xf32>
    %264 = math.tanh %263 : vector<1x16xf32>
    %265 = arith.mulf %240, %264 : vector<1x16xf32>
    %266 = arith.mulf %252, %207 : vector<1x16xf32>
    %267 = arith.mulf %246, %254 : vector<1x16xf32>
    %268 = arith.addf %266, %267 : vector<1x16xf32>
    %269 = math.tanh %268 : vector<1x16xf32>
    %270 = arith.mulf %260, %269 : vector<1x16xf32>
    %c2_110 = arith.constant 2 : index
    %c0_111 = arith.constant 0 : index
    %271 = vector.load %arg24[%c2_110, %c0_111] : memref<5x32xf32, #tpu.memory_space<vmem>>, vector<1x16xf32>
    tpu.vector_store %arg24[%c2_110, %c0_111], %265 {strides = array<i32>} : memref<5x32xf32, #tpu.memory_space<vmem>>, vector<1x16xf32>,
    %c2_112 = arith.constant 2 : index
    %c16_113 = arith.constant 16 : index
    %272 = vector.load %arg24[%c2_112, %c16_113] : memref<5x32xf32, #tpu.memory_space<vmem>>, vector<1x16xf32>
    tpu.vector_store %arg24[%c2_112, %c16_113], %270 {strides = array<i32>} : memref<5x32xf32, #tpu.memory_space<vmem>>, vector<1x16xf32>,
    %273 = tpu.concatenate %265, %270 in 1 : vector<1x16xf32>, vector<1x16xf32> -> vector<1x32xf32>
    %c0_114 = arith.constant 0 : index
    %c0_115 = arith.constant 0 : index
    %274 = vector.load %arg9[%c0_114, %c0_115] : memref<32x128xf32, #tpu.memory_space<vmem>>, vector<32x128xf32>
    %cst_116 = arith.constant dense<0.000000e+00> : vector<1x128xf32>
    %275 = tpu.matmul %273, %274, %cst_116 {dimension_numbers = #tpu.dot_dimension_numbers<[1], [0], [0], [1], [0, 0, 1, 1], [], []>} : vector<1x32xf32>, vector<32x128xf32>, vector<1x128xf32> -> vector<1x128xf32>
    %276 = vector.extract_strided_slice %87 {offsets = [3, 0], sizes = [1, 64], strides = [1, 1]} : vector<5x128xf32> to vector<1x64xf32>
    %277 = vector.extract_strided_slice %275 {offsets = [0, 0], sizes = [1, 64], strides = [1, 1]} : vector<1x128xf32> to vector<1x64xf32>
    %278 = arith.addf %276, %277 : vector<1x64xf32>
    %279 = vector.extract_strided_slice %87 {offsets = [1, 64], sizes = [1, 64], strides = [1, 1]} : vector<5x128xf32> to vector<1x64xf32>
    %280 = vector.extract_strided_slice %275 {offsets = [0, 64], sizes = [1, 64], strides = [1, 1]} : vector<1x128xf32> to vector<1x64xf32>
    %281 = arith.addf %279, %280 : vector<1x64xf32>
    %282 = vector.extract_strided_slice %278 {offsets = [0, 0], sizes = [1, 16], strides = [1, 1]} : vector<1x64xf32> to vector<1x16xf32>
    %283 = arith.negf %282 : vector<1x16xf32>
    %284 = math.exp %283 : vector<1x16xf32>
    %cst_117 = arith.constant 1.000000e+00 : f32
    %285 = vector.broadcast %cst_117 : f32 to vector<1x16xf32>
    %286 = arith.addf %285, %284 : vector<1x16xf32>
    %287 = arith.divf %285, %286 : vector<1x16xf32>
    %288 = vector.extract_strided_slice %278 {offsets = [0, 16], sizes = [1, 16], strides = [1, 1]} : vector<1x64xf32> to vector<1x16xf32>
    %289 = arith.negf %288 : vector<1x16xf32>
    %290 = math.exp %289 : vector<1x16xf32>
    %cst_118 = arith.constant 1.000000e+00 : f32
    %291 = vector.broadcast %cst_118 : f32 to vector<1x16xf32>
    %292 = arith.addf %291, %290 : vector<1x16xf32>
    %293 = arith.divf %291, %292 : vector<1x16xf32>
    %294 = vector.extract_strided_slice %278 {offsets = [0, 32], sizes = [1, 16], strides = [1, 1]} : vector<1x64xf32> to vector<1x16xf32>
    %295 = math.tanh %294 : vector<1x16xf32>
    %296 = vector.extract_strided_slice %278 {offsets = [0, 48], sizes = [1, 16], strides = [1, 1]} : vector<1x64xf32> to vector<1x16xf32>
    %297 = arith.negf %296 : vector<1x16xf32>
    %298 = math.exp %297 : vector<1x16xf32>
    %cst_119 = arith.constant 1.000000e+00 : f32
    %299 = vector.broadcast %cst_119 : f32 to vector<1x16xf32>
    %300 = arith.addf %299, %298 : vector<1x16xf32>
    %301 = arith.divf %299, %300 : vector<1x16xf32>
    %302 = vector.extract_strided_slice %281 {offsets = [0, 0], sizes = [1, 16], strides = [1, 1]} : vector<1x64xf32> to vector<1x16xf32>
    %303 = arith.negf %302 : vector<1x16xf32>
    %304 = math.exp %303 : vector<1x16xf32>
    %cst_120 = arith.constant 1.000000e+00 : f32
    %305 = vector.broadcast %cst_120 : f32 to vector<1x16xf32>
    %306 = arith.addf %305, %304 : vector<1x16xf32>
    %307 = arith.divf %305, %306 : vector<1x16xf32>
    %308 = vector.extract_strided_slice %281 {offsets = [0, 16], sizes = [1, 16], strides = [1, 1]} : vector<1x64xf32> to vector<1x16xf32>
    %309 = arith.negf %308 : vector<1x16xf32>
    %310 = math.exp %309 : vector<1x16xf32>
    %cst_121 = arith.constant 1.000000e+00 : f32
    %311 = vector.broadcast %cst_121 : f32 to vector<1x16xf32>
    %312 = arith.addf %311, %310 : vector<1x16xf32>
    %313 = arith.divf %311, %312 : vector<1x16xf32>
    %314 = vector.extract_strided_slice %281 {offsets = [0, 32], sizes = [1, 16], strides = [1, 1]} : vector<1x64xf32> to vector<1x16xf32>
    %315 = math.tanh %314 : vector<1x16xf32>
    %316 = vector.extract_strided_slice %281 {offsets = [0, 48], sizes = [1, 16], strides = [1, 1]} : vector<1x64xf32> to vector<1x16xf32>
    %317 = arith.negf %316 : vector<1x16xf32>
    %318 = math.exp %317 : vector<1x16xf32>
    %cst_122 = arith.constant 1.000000e+00 : f32
    %319 = vector.broadcast %cst_122 : f32 to vector<1x16xf32>
    %320 = arith.addf %319, %318 : vector<1x16xf32>
    %321 = arith.divf %319, %320 : vector<1x16xf32>
    %322 = arith.mulf %293, %263 : vector<1x16xf32>
    %323 = arith.mulf %287, %295 : vector<1x16xf32>
    %324 = arith.addf %322, %323 : vector<1x16xf32>
    %325 = math.tanh %324 : vector<1x16xf32>
    %326 = arith.mulf %301, %325 : vector<1x16xf32>
    %327 = arith.mulf %313, %268 : vector<1x16xf32>
    %328 = arith.mulf %307, %315 : vector<1x16xf32>
    %329 = arith.addf %327, %328 : vector<1x16xf32>
    %330 = math.tanh %329 : vector<1x16xf32>
    %331 = arith.mulf %321, %330 : vector<1x16xf32>
    %c3_123 = arith.constant 3 : index
    %c0_124 = arith.constant 0 : index
    %332 = vector.load %arg24[%c3_123, %c0_124] : memref<5x32xf32, #tpu.memory_space<vmem>>, vector<1x16xf32>
    tpu.vector_store %arg24[%c3_123, %c0_124], %326 {strides = array<i32>} : memref<5x32xf32, #tpu.memory_space<vmem>>, vector<1x16xf32>,
    %c1_125 = arith.constant 1 : index
    %c16_126 = arith.constant 16 : index
    %333 = vector.load %arg24[%c1_125, %c16_126] : memref<5x32xf32, #tpu.memory_space<vmem>>, vector<1x16xf32>
    tpu.vector_store %arg24[%c1_125, %c16_126], %331 {strides = array<i32>} : memref<5x32xf32, #tpu.memory_space<vmem>>, vector<1x16xf32>,
    %334 = tpu.concatenate %326, %331 in 1 : vector<1x16xf32>, vector<1x16xf32> -> vector<1x32xf32>
    %c0_127 = arith.constant 0 : index
    %c0_128 = arith.constant 0 : index
    %335 = vector.load %arg9[%c0_127, %c0_128] : memref<32x128xf32, #tpu.memory_space<vmem>>, vector<32x128xf32>
    %cst_129 = arith.constant dense<0.000000e+00> : vector<1x128xf32>
    %336 = tpu.matmul %334, %335, %cst_129 {dimension_numbers = #tpu.dot_dimension_numbers<[1], [0], [0], [1], [0, 0, 1, 1], [], []>} : vector<1x32xf32>, vector<32x128xf32>, vector<1x128xf32> -> vector<1x128xf32>
    %337 = vector.extract_strided_slice %87 {offsets = [4, 0], sizes = [1, 64], strides = [1, 1]} : vector<5x128xf32> to vector<1x64xf32>
    %338 = vector.extract_strided_slice %336 {offsets = [0, 0], sizes = [1, 64], strides = [1, 1]} : vector<1x128xf32> to vector<1x64xf32>
    %339 = arith.addf %337, %338 : vector<1x64xf32>
    %340 = vector.extract_strided_slice %87 {offsets = [0, 64], sizes = [1, 64], strides = [1, 1]} : vector<5x128xf32> to vector<1x64xf32>
    %341 = vector.extract_strided_slice %336 {offsets = [0, 64], sizes = [1, 64], strides = [1, 1]} : vector<1x128xf32> to vector<1x64xf32>
    %342 = arith.addf %340, %341 : vector<1x64xf32>
    %343 = vector.extract_strided_slice %339 {offsets = [0, 0], sizes = [1, 16], strides = [1, 1]} : vector<1x64xf32> to vector<1x16xf32>
    %344 = arith.negf %343 : vector<1x16xf32>
    %345 = math.exp %344 : vector<1x16xf32>
    %cst_130 = arith.constant 1.000000e+00 : f32
    %346 = vector.broadcast %cst_130 : f32 to vector<1x16xf32>
    %347 = arith.addf %346, %345 : vector<1x16xf32>
    %348 = arith.divf %346, %347 : vector<1x16xf32>
    %349 = vector.extract_strided_slice %339 {offsets = [0, 16], sizes = [1, 16], strides = [1, 1]} : vector<1x64xf32> to vector<1x16xf32>
    %350 = arith.negf %349 : vector<1x16xf32>
    %351 = math.exp %350 : vector<1x16xf32>
    %cst_131 = arith.constant 1.000000e+00 : f32
    %352 = vector.broadcast %cst_131 : f32 to vector<1x16xf32>
    %353 = arith.addf %352, %351 : vector<1x16xf32>
    %354 = arith.divf %352, %353 : vector<1x16xf32>
    %355 = vector.extract_strided_slice %339 {offsets = [0, 32], sizes = [1, 16], strides = [1, 1]} : vector<1x64xf32> to vector<1x16xf32>
    %356 = math.tanh %355 : vector<1x16xf32>
    %357 = vector.extract_strided_slice %339 {offsets = [0, 48], sizes = [1, 16], strides = [1, 1]} : vector<1x64xf32> to vector<1x16xf32>
    %358 = arith.negf %357 : vector<1x16xf32>
    %359 = math.exp %358 : vector<1x16xf32>
    %cst_132 = arith.constant 1.000000e+00 : f32
    %360 = vector.broadcast %cst_132 : f32 to vector<1x16xf32>
    %361 = arith.addf %360, %359 : vector<1x16xf32>
    %362 = arith.divf %360, %361 : vector<1x16xf32>
    %363 = vector.extract_strided_slice %342 {offsets = [0, 0], sizes = [1, 16], strides = [1, 1]} : vector<1x64xf32> to vector<1x16xf32>
    %364 = arith.negf %363 : vector<1x16xf32>
    %365 = math.exp %364 : vector<1x16xf32>
    %cst_133 = arith.constant 1.000000e+00 : f32
    %366 = vector.broadcast %cst_133 : f32 to vector<1x16xf32>
    %367 = arith.addf %366, %365 : vector<1x16xf32>
    %368 = arith.divf %366, %367 : vector<1x16xf32>
    %369 = vector.extract_strided_slice %342 {offsets = [0, 16], sizes = [1, 16], strides = [1, 1]} : vector<1x64xf32> to vector<1x16xf32>
    %370 = arith.negf %369 : vector<1x16xf32>
    %371 = math.exp %370 : vector<1x16xf32>
    %cst_134 = arith.constant 1.000000e+00 : f32
    %372 = vector.broadcast %cst_134 : f32 to vector<1x16xf32>
    %373 = arith.addf %372, %371 : vector<1x16xf32>
    %374 = arith.divf %372, %373 : vector<1x16xf32>
    %375 = vector.extract_strided_slice %342 {offsets = [0, 32], sizes = [1, 16], strides = [1, 1]} : vector<1x64xf32> to vector<1x16xf32>
    %376 = math.tanh %375 : vector<1x16xf32>
    %377 = vector.extract_strided_slice %342 {offsets = [0, 48], sizes = [1, 16], strides = [1, 1]} : vector<1x64xf32> to vector<1x16xf32>
    %378 = arith.negf %377 : vector<1x16xf32>
    %379 = math.exp %378 : vector<1x16xf32>
    %cst_135 = arith.constant 1.000000e+00 : f32
    %380 = vector.broadcast %cst_135 : f32 to vector<1x16xf32>
    %381 = arith.addf %380, %379 : vector<1x16xf32>
    %382 = arith.divf %380, %381 : vector<1x16xf32>
    %383 = arith.mulf %354, %324 : vector<1x16xf32>
    %384 = arith.mulf %348, %356 : vector<1x16xf32>
    %385 = arith.addf %383, %384 : vector<1x16xf32>
    %386 = math.tanh %385 : vector<1x16xf32>
    %387 = arith.mulf %362, %386 : vector<1x16xf32>
    %388 = arith.mulf %374, %329 : vector<1x16xf32>
    %389 = arith.mulf %368, %376 : vector<1x16xf32>
    %390 = arith.addf %388, %389 : vector<1x16xf32>
    %391 = math.tanh %390 : vector<1x16xf32>
    %392 = arith.mulf %382, %391 : vector<1x16xf32>
    %c4_136 = arith.constant 4 : index
    %c0_137 = arith.constant 0 : index
    %393 = vector.load %arg24[%c4_136, %c0_137] : memref<5x32xf32, #tpu.memory_space<vmem>>, vector<1x16xf32>
    tpu.vector_store %arg24[%c4_136, %c0_137], %387 {strides = array<i32>} : memref<5x32xf32, #tpu.memory_space<vmem>>, vector<1x16xf32>,
    %c0_138 = arith.constant 0 : index
    %c16_139 = arith.constant 16 : index
    %394 = vector.load %arg24[%c0_138, %c16_139] : memref<5x32xf32, #tpu.memory_space<vmem>>, vector<1x16xf32>
    tpu.vector_store %arg24[%c0_138, %c16_139], %392 {strides = array<i32>} : memref<5x32xf32, #tpu.memory_space<vmem>>, vector<1x16xf32>,
    %c0_140 = arith.constant 0 : index
    %c0_141 = arith.constant 0 : index
    %395 = vector.load %arg24[%c0_140, %c0_141] : memref<5x32xf32, #tpu.memory_space<vmem>>, vector<5x32xf32>
    %c0_142 = arith.constant 0 : index
    %c0_143 = arith.constant 0 : index
    %396 = vector.load %arg11[%c0_142, %c0_143] : memref<32x128xf32, #tpu.memory_space<vmem>>, vector<32x128xf32>
    %cst_144 = arith.constant dense<0.000000e+00> : vector<5x128xf32>
    %397 = tpu.matmul %395, %396, %cst_144 {dimension_numbers = #tpu.dot_dimension_numbers<[1], [0], [0], [1], [0, 0, 1, 1], [], []>} : vector<5x32xf32>, vector<32x128xf32>, vector<5x128xf32> -> vector<5x128xf32>
    %c0_145 = arith.constant 0 : index
    %c0_146 = arith.constant 0 : index
    %398 = vector.load %arg13[%c0_145, %c0_146] : memref<1x128xf32, #tpu.memory_space<vmem>>, vector<1x128xf32>
    %399 = vector.broadcast %398 : vector<1x128xf32> to vector<5x128xf32>
    %400 = arith.addf %397, %399 : vector<5x128xf32>
    %cst_147 = arith.constant 0.000000e+00 : f32
    %401 = vector.broadcast %cst_147 : f32 to vector<1x32xf32>
    %cst_148 = arith.constant 0.000000e+00 : f32
    %402 = vector.broadcast %cst_148 : f32 to vector<1x16xf32>
    %cst_149 = arith.constant 0.000000e+00 : f32
    %403 = vector.broadcast %cst_149 : f32 to vector<1x16xf32>
    %c0_150 = arith.constant 0 : index
    %c0_151 = arith.constant 0 : index
    %404 = vector.load %arg12[%c0_150, %c0_151] : memref<32x128xf32, #tpu.memory_space<vmem>>, vector<32x128xf32>
    %cst_152 = arith.constant dense<0.000000e+00> : vector<1x128xf32>
    %405 = tpu.matmul %401, %404, %cst_152 {dimension_numbers = #tpu.dot_dimension_numbers<[1], [0], [0], [1], [0, 0, 1, 1], [], []>} : vector<1x32xf32>, vector<32x128xf32>, vector<1x128xf32> -> vector<1x128xf32>
    %406 = vector.extract_strided_slice %400 {offsets = [0, 0], sizes = [1, 64], strides = [1, 1]} : vector<5x128xf32> to vector<1x64xf32>
    %407 = vector.extract_strided_slice %405 {offsets = [0, 0], sizes = [1, 64], strides = [1, 1]} : vector<1x128xf32> to vector<1x64xf32>
    %408 = arith.addf %406, %407 : vector<1x64xf32>
    %409 = vector.extract_strided_slice %400 {offsets = [4, 64], sizes = [1, 64], strides = [1, 1]} : vector<5x128xf32> to vector<1x64xf32>
    %410 = vector.extract_strided_slice %405 {offsets = [0, 64], sizes = [1, 64], strides = [1, 1]} : vector<1x128xf32> to vector<1x64xf32>
    %411 = arith.addf %409, %410 : vector<1x64xf32>
    %412 = vector.extract_strided_slice %408 {offsets = [0, 0], sizes = [1, 16], strides = [1, 1]} : vector<1x64xf32> to vector<1x16xf32>
    %413 = arith.negf %412 : vector<1x16xf32>
    %414 = math.exp %413 : vector<1x16xf32>
    %cst_153 = arith.constant 1.000000e+00 : f32
    %415 = vector.broadcast %cst_153 : f32 to vector<1x16xf32>
    %416 = arith.addf %415, %414 : vector<1x16xf32>
    %417 = arith.divf %415, %416 : vector<1x16xf32>
    %418 = vector.extract_strided_slice %408 {offsets = [0, 16], sizes = [1, 16], strides = [1, 1]} : vector<1x64xf32> to vector<1x16xf32>
    %419 = arith.negf %418 : vector<1x16xf32>
    %420 = math.exp %419 : vector<1x16xf32>
    %cst_154 = arith.constant 1.000000e+00 : f32
    %421 = vector.broadcast %cst_154 : f32 to vector<1x16xf32>
    %422 = arith.addf %421, %420 : vector<1x16xf32>
    %423 = arith.divf %421, %422 : vector<1x16xf32>
    %424 = vector.extract_strided_slice %408 {offsets = [0, 32], sizes = [1, 16], strides = [1, 1]} : vector<1x64xf32> to vector<1x16xf32>
    %425 = math.tanh %424 : vector<1x16xf32>
    %426 = vector.extract_strided_slice %408 {offsets = [0, 48], sizes = [1, 16], strides = [1, 1]} : vector<1x64xf32> to vector<1x16xf32>
    %427 = arith.negf %426 : vector<1x16xf32>
    %428 = math.exp %427 : vector<1x16xf32>
    %cst_155 = arith.constant 1.000000e+00 : f32
    %429 = vector.broadcast %cst_155 : f32 to vector<1x16xf32>
    %430 = arith.addf %429, %428 : vector<1x16xf32>
    %431 = arith.divf %429, %430 : vector<1x16xf32>
    %432 = vector.extract_strided_slice %411 {offsets = [0, 0], sizes = [1, 16], strides = [1, 1]} : vector<1x64xf32> to vector<1x16xf32>
    %433 = arith.negf %432 : vector<1x16xf32>
    %434 = math.exp %433 : vector<1x16xf32>
    %cst_156 = arith.constant 1.000000e+00 : f32
    %435 = vector.broadcast %cst_156 : f32 to vector<1x16xf32>
    %436 = arith.addf %435, %434 : vector<1x16xf32>
    %437 = arith.divf %435, %436 : vector<1x16xf32>
    %438 = vector.extract_strided_slice %411 {offsets = [0, 16], sizes = [1, 16], strides = [1, 1]} : vector<1x64xf32> to vector<1x16xf32>
    %439 = arith.negf %438 : vector<1x16xf32>
    %440 = math.exp %439 : vector<1x16xf32>
    %cst_157 = arith.constant 1.000000e+00 : f32
    %441 = vector.broadcast %cst_157 : f32 to vector<1x16xf32>
    %442 = arith.addf %441, %440 : vector<1x16xf32>
    %443 = arith.divf %441, %442 : vector<1x16xf32>
    %444 = vector.extract_strided_slice %411 {offsets = [0, 32], sizes = [1, 16], strides = [1, 1]} : vector<1x64xf32> to vector<1x16xf32>
    %445 = math.tanh %444 : vector<1x16xf32>
    %446 = vector.extract_strided_slice %411 {offsets = [0, 48], sizes = [1, 16], strides = [1, 1]} : vector<1x64xf32> to vector<1x16xf32>
    %447 = arith.negf %446 : vector<1x16xf32>
    %448 = math.exp %447 : vector<1x16xf32>
    %cst_158 = arith.constant 1.000000e+00 : f32
    %449 = vector.broadcast %cst_158 : f32 to vector<1x16xf32>
    %450 = arith.addf %449, %448 : vector<1x16xf32>
    %451 = arith.divf %449, %450 : vector<1x16xf32>
    %452 = arith.mulf %423, %402 : vector<1x16xf32>
    %453 = arith.mulf %417, %425 : vector<1x16xf32>
    %454 = arith.addf %452, %453 : vector<1x16xf32>
    %455 = math.tanh %454 : vector<1x16xf32>
    %456 = arith.mulf %431, %455 : vector<1x16xf32>
    %457 = arith.mulf %443, %403 : vector<1x16xf32>
    %458 = arith.mulf %437, %445 : vector<1x16xf32>
    %459 = arith.addf %457, %458 : vector<1x16xf32>
    %460 = math.tanh %459 : vector<1x16xf32>
    %461 = arith.mulf %451, %460 : vector<1x16xf32>
    %c0_159 = arith.constant 0 : index
    %c0_160 = arith.constant 0 : index
    %462 = vector.load %arg25[%c0_159, %c0_160] : memref<5x32xf32, #tpu.memory_space<vmem>>, vector<1x16xf32>
    tpu.vector_store %arg25[%c0_159, %c0_160], %456 {strides = array<i32>} : memref<5x32xf32, #tpu.memory_space<vmem>>, vector<1x16xf32>,
    %c4_161 = arith.constant 4 : index
    %c16_162 = arith.constant 16 : index
    %463 = vector.load %arg25[%c4_161, %c16_162] : memref<5x32xf32, #tpu.memory_space<vmem>>, vector<1x16xf32>
    tpu.vector_store %arg25[%c4_161, %c16_162], %461 {strides = array<i32>} : memref<5x32xf32, #tpu.memory_space<vmem>>, vector<1x16xf32>,
    %464 = tpu.concatenate %456, %461 in 1 : vector<1x16xf32>, vector<1x16xf32> -> vector<1x32xf32>
    %c0_163 = arith.constant 0 : index
    %c0_164 = arith.constant 0 : index
    %465 = vector.load %arg12[%c0_163, %c0_164] : memref<32x128xf32, #tpu.memory_space<vmem>>, vector<32x128xf32>
    %cst_165 = arith.constant dense<0.000000e+00> : vector<1x128xf32>
    %466 = tpu.matmul %464, %465, %cst_165 {dimension_numbers = #tpu.dot_dimension_numbers<[1], [0], [0], [1], [0, 0, 1, 1], [], []>} : vector<1x32xf32>, vector<32x128xf32>, vector<1x128xf32> -> vector<1x128xf32>
    %467 = vector.extract_strided_slice %400 {offsets = [1, 0], sizes = [1, 64], strides = [1, 1]} : vector<5x128xf32> to vector<1x64xf32>
    %468 = vector.extract_strided_slice %466 {offsets = [0, 0], sizes = [1, 64], strides = [1, 1]} : vector<1x128xf32> to vector<1x64xf32>
    %469 = arith.addf %467, %468 : vector<1x64xf32>
    %470 = vector.extract_strided_slice %400 {offsets = [3, 64], sizes = [1, 64], strides = [1, 1]} : vector<5x128xf32> to vector<1x64xf32>
    %471 = vector.extract_strided_slice %466 {offsets = [0, 64], sizes = [1, 64], strides = [1, 1]} : vector<1x128xf32> to vector<1x64xf32>
    %472 = arith.addf %470, %471 : vector<1x64xf32>
    %473 = vector.extract_strided_slice %469 {offsets = [0, 0], sizes = [1, 16], strides = [1, 1]} : vector<1x64xf32> to vector<1x16xf32>
    %474 = arith.negf %473 : vector<1x16xf32>
    %475 = math.exp %474 : vector<1x16xf32>
    %cst_166 = arith.constant 1.000000e+00 : f32
    %476 = vector.broadcast %cst_166 : f32 to vector<1x16xf32>
    %477 = arith.addf %476, %475 : vector<1x16xf32>
    %478 = arith.divf %476, %477 : vector<1x16xf32>
    %479 = vector.extract_strided_slice %469 {offsets = [0, 16], sizes = [1, 16], strides = [1, 1]} : vector<1x64xf32> to vector<1x16xf32>
    %480 = arith.negf %479 : vector<1x16xf32>
    %481 = math.exp %480 : vector<1x16xf32>
    %cst_167 = arith.constant 1.000000e+00 : f32
    %482 = vector.broadcast %cst_167 : f32 to vector<1x16xf32>
    %483 = arith.addf %482, %481 : vector<1x16xf32>
    %484 = arith.divf %482, %483 : vector<1x16xf32>
    %485 = vector.extract_strided_slice %469 {offsets = [0, 32], sizes = [1, 16], strides = [1, 1]} : vector<1x64xf32> to vector<1x16xf32>
    %486 = math.tanh %485 : vector<1x16xf32>
    %487 = vector.extract_strided_slice %469 {offsets = [0, 48], sizes = [1, 16], strides = [1, 1]} : vector<1x64xf32> to vector<1x16xf32>
    %488 = arith.negf %487 : vector<1x16xf32>
    %489 = math.exp %488 : vector<1x16xf32>
    %cst_168 = arith.constant 1.000000e+00 : f32
    %490 = vector.broadcast %cst_168 : f32 to vector<1x16xf32>
    %491 = arith.addf %490, %489 : vector<1x16xf32>
    %492 = arith.divf %490, %491 : vector<1x16xf32>
    %493 = vector.extract_strided_slice %472 {offsets = [0, 0], sizes = [1, 16], strides = [1, 1]} : vector<1x64xf32> to vector<1x16xf32>
    %494 = arith.negf %493 : vector<1x16xf32>
    %495 = math.exp %494 : vector<1x16xf32>
    %cst_169 = arith.constant 1.000000e+00 : f32
    %496 = vector.broadcast %cst_169 : f32 to vector<1x16xf32>
    %497 = arith.addf %496, %495 : vector<1x16xf32>
    %498 = arith.divf %496, %497 : vector<1x16xf32>
    %499 = vector.extract_strided_slice %472 {offsets = [0, 16], sizes = [1, 16], strides = [1, 1]} : vector<1x64xf32> to vector<1x16xf32>
    %500 = arith.negf %499 : vector<1x16xf32>
    %501 = math.exp %500 : vector<1x16xf32>
    %cst_170 = arith.constant 1.000000e+00 : f32
    %502 = vector.broadcast %cst_170 : f32 to vector<1x16xf32>
    %503 = arith.addf %502, %501 : vector<1x16xf32>
    %504 = arith.divf %502, %503 : vector<1x16xf32>
    %505 = vector.extract_strided_slice %472 {offsets = [0, 32], sizes = [1, 16], strides = [1, 1]} : vector<1x64xf32> to vector<1x16xf32>
    %506 = math.tanh %505 : vector<1x16xf32>
    %507 = vector.extract_strided_slice %472 {offsets = [0, 48], sizes = [1, 16], strides = [1, 1]} : vector<1x64xf32> to vector<1x16xf32>
    %508 = arith.negf %507 : vector<1x16xf32>
    %509 = math.exp %508 : vector<1x16xf32>
    %cst_171 = arith.constant 1.000000e+00 : f32
    %510 = vector.broadcast %cst_171 : f32 to vector<1x16xf32>
    %511 = arith.addf %510, %509 : vector<1x16xf32>
    %512 = arith.divf %510, %511 : vector<1x16xf32>
    %513 = arith.mulf %484, %454 : vector<1x16xf32>
    %514 = arith.mulf %478, %486 : vector<1x16xf32>
    %515 = arith.addf %513, %514 : vector<1x16xf32>
    %516 = math.tanh %515 : vector<1x16xf32>
    %517 = arith.mulf %492, %516 : vector<1x16xf32>
    %518 = arith.mulf %504, %459 : vector<1x16xf32>
    %519 = arith.mulf %498, %506 : vector<1x16xf32>
    %520 = arith.addf %518, %519 : vector<1x16xf32>
    %521 = math.tanh %520 : vector<1x16xf32>
    %522 = arith.mulf %512, %521 : vector<1x16xf32>
    %c1_172 = arith.constant 1 : index
    %c0_173 = arith.constant 0 : index
    %523 = vector.load %arg25[%c1_172, %c0_173] : memref<5x32xf32, #tpu.memory_space<vmem>>, vector<1x16xf32>
    tpu.vector_store %arg25[%c1_172, %c0_173], %517 {strides = array<i32>} : memref<5x32xf32, #tpu.memory_space<vmem>>, vector<1x16xf32>,
    %c3_174 = arith.constant 3 : index
    %c16_175 = arith.constant 16 : index
    %524 = vector.load %arg25[%c3_174, %c16_175] : memref<5x32xf32, #tpu.memory_space<vmem>>, vector<1x16xf32>
    tpu.vector_store %arg25[%c3_174, %c16_175], %522 {strides = array<i32>} : memref<5x32xf32, #tpu.memory_space<vmem>>, vector<1x16xf32>,
    %525 = tpu.concatenate %517, %522 in 1 : vector<1x16xf32>, vector<1x16xf32> -> vector<1x32xf32>
    %c0_176 = arith.constant 0 : index
    %c0_177 = arith.constant 0 : index
    %526 = vector.load %arg12[%c0_176, %c0_177] : memref<32x128xf32, #tpu.memory_space<vmem>>, vector<32x128xf32>
    %cst_178 = arith.constant dense<0.000000e+00> : vector<1x128xf32>
    %527 = tpu.matmul %525, %526, %cst_178 {dimension_numbers = #tpu.dot_dimension_numbers<[1], [0], [0], [1], [0, 0, 1, 1], [], []>} : vector<1x32xf32>, vector<32x128xf32>, vector<1x128xf32> -> vector<1x128xf32>
    %528 = vector.extract_strided_slice %400 {offsets = [2, 0], sizes = [1, 64], strides = [1, 1]} : vector<5x128xf32> to vector<1x64xf32>
    %529 = vector.extract_strided_slice %527 {offsets = [0, 0], sizes = [1, 64], strides = [1, 1]} : vector<1x128xf32> to vector<1x64xf32>
    %530 = arith.addf %528, %529 : vector<1x64xf32>
    %531 = vector.extract_strided_slice %400 {offsets = [2, 64], sizes = [1, 64], strides = [1, 1]} : vector<5x128xf32> to vector<1x64xf32>
    %532 = vector.extract_strided_slice %527 {offsets = [0, 64], sizes = [1, 64], strides = [1, 1]} : vector<1x128xf32> to vector<1x64xf32>
    %533 = arith.addf %531, %532 : vector<1x64xf32>
    %534 = vector.extract_strided_slice %530 {offsets = [0, 0], sizes = [1, 16], strides = [1, 1]} : vector<1x64xf32> to vector<1x16xf32>
    %535 = arith.negf %534 : vector<1x16xf32>
    %536 = math.exp %535 : vector<1x16xf32>
    %cst_179 = arith.constant 1.000000e+00 : f32
    %537 = vector.broadcast %cst_179 : f32 to vector<1x16xf32>
    %538 = arith.addf %537, %536 : vector<1x16xf32>
    %539 = arith.divf %537, %538 : vector<1x16xf32>
    %540 = vector.extract_strided_slice %530 {offsets = [0, 16], sizes = [1, 16], strides = [1, 1]} : vector<1x64xf32> to vector<1x16xf32>
    %541 = arith.negf %540 : vector<1x16xf32>
    %542 = math.exp %541 : vector<1x16xf32>
    %cst_180 = arith.constant 1.000000e+00 : f32
    %543 = vector.broadcast %cst_180 : f32 to vector<1x16xf32>
    %544 = arith.addf %543, %542 : vector<1x16xf32>
    %545 = arith.divf %543, %544 : vector<1x16xf32>
    %546 = vector.extract_strided_slice %530 {offsets = [0, 32], sizes = [1, 16], strides = [1, 1]} : vector<1x64xf32> to vector<1x16xf32>
    %547 = math.tanh %546 : vector<1x16xf32>
    %548 = vector.extract_strided_slice %530 {offsets = [0, 48], sizes = [1, 16], strides = [1, 1]} : vector<1x64xf32> to vector<1x16xf32>
    %549 = arith.negf %548 : vector<1x16xf32>
    %550 = math.exp %549 : vector<1x16xf32>
    %cst_181 = arith.constant 1.000000e+00 : f32
    %551 = vector.broadcast %cst_181 : f32 to vector<1x16xf32>
    %552 = arith.addf %551, %550 : vector<1x16xf32>
    %553 = arith.divf %551, %552 : vector<1x16xf32>
    %554 = vector.extract_strided_slice %533 {offsets = [0, 0], sizes = [1, 16], strides = [1, 1]} : vector<1x64xf32> to vector<1x16xf32>
    %555 = arith.negf %554 : vector<1x16xf32>
    %556 = math.exp %555 : vector<1x16xf32>
    %cst_182 = arith.constant 1.000000e+00 : f32
    %557 = vector.broadcast %cst_182 : f32 to vector<1x16xf32>
    %558 = arith.addf %557, %556 : vector<1x16xf32>
    %559 = arith.divf %557, %558 : vector<1x16xf32>
    %560 = vector.extract_strided_slice %533 {offsets = [0, 16], sizes = [1, 16], strides = [1, 1]} : vector<1x64xf32> to vector<1x16xf32>
    %561 = arith.negf %560 : vector<1x16xf32>
    %562 = math.exp %561 : vector<1x16xf32>
    %cst_183 = arith.constant 1.000000e+00 : f32
    %563 = vector.broadcast %cst_183 : f32 to vector<1x16xf32>
    %564 = arith.addf %563, %562 : vector<1x16xf32>
    %565 = arith.divf %563, %564 : vector<1x16xf32>
    %566 = vector.extract_strided_slice %533 {offsets = [0, 32], sizes = [1, 16], strides = [1, 1]} : vector<1x64xf32> to vector<1x16xf32>
    %567 = math.tanh %566 : vector<1x16xf32>
    %568 = vector.extract_strided_slice %533 {offsets = [0, 48], sizes = [1, 16], strides = [1, 1]} : vector<1x64xf32> to vector<1x16xf32>
    %569 = arith.negf %568 : vector<1x16xf32>
    %570 = math.exp %569 : vector<1x16xf32>
    %cst_184 = arith.constant 1.000000e+00 : f32
    %571 = vector.broadcast %cst_184 : f32 to vector<1x16xf32>
    %572 = arith.addf %571, %570 : vector<1x16xf32>
    %573 = arith.divf %571, %572 : vector<1x16xf32>
    %574 = arith.mulf %545, %515 : vector<1x16xf32>
    %575 = arith.mulf %539, %547 : vector<1x16xf32>
    %576 = arith.addf %574, %575 : vector<1x16xf32>
    %577 = math.tanh %576 : vector<1x16xf32>
    %578 = arith.mulf %553, %577 : vector<1x16xf32>
    %579 = arith.mulf %565, %520 : vector<1x16xf32>
    %580 = arith.mulf %559, %567 : vector<1x16xf32>
    %581 = arith.addf %579, %580 : vector<1x16xf32>
    %582 = math.tanh %581 : vector<1x16xf32>
    %583 = arith.mulf %573, %582 : vector<1x16xf32>
    %c2_185 = arith.constant 2 : index
    %c0_186 = arith.constant 0 : index
    %584 = vector.load %arg25[%c2_185, %c0_186] : memref<5x32xf32, #tpu.memory_space<vmem>>, vector<1x16xf32>
    tpu.vector_store %arg25[%c2_185, %c0_186], %578 {strides = array<i32>} : memref<5x32xf32, #tpu.memory_space<vmem>>, vector<1x16xf32>,
    %c2_187 = arith.constant 2 : index
    %c16_188 = arith.constant 16 : index
    %585 = vector.load %arg25[%c2_187, %c16_188] : memref<5x32xf32, #tpu.memory_space<vmem>>, vector<1x16xf32>
    tpu.vector_store %arg25[%c2_187, %c16_188], %583 {strides = array<i32>} : memref<5x32xf32, #tpu.memory_space<vmem>>, vector<1x16xf32>,
    %586 = tpu.concatenate %578, %583 in 1 : vector<1x16xf32>, vector<1x16xf32> -> vector<1x32xf32>
    %c0_189 = arith.constant 0 : index
    %c0_190 = arith.constant 0 : index
    %587 = vector.load %arg12[%c0_189, %c0_190] : memref<32x128xf32, #tpu.memory_space<vmem>>, vector<32x128xf32>
    %cst_191 = arith.constant dense<0.000000e+00> : vector<1x128xf32>
    %588 = tpu.matmul %586, %587, %cst_191 {dimension_numbers = #tpu.dot_dimension_numbers<[1], [0], [0], [1], [0, 0, 1, 1], [], []>} : vector<1x32xf32>, vector<32x128xf32>, vector<1x128xf32> -> vector<1x128xf32>
    %589 = vector.extract_strided_slice %400 {offsets = [3, 0], sizes = [1, 64], strides = [1, 1]} : vector<5x128xf32> to vector<1x64xf32>
    %590 = vector.extract_strided_slice %588 {offsets = [0, 0], sizes = [1, 64], strides = [1, 1]} : vector<1x128xf32> to vector<1x64xf32>
    %591 = arith.addf %589, %590 : vector<1x64xf32>
    %592 = vector.extract_strided_slice %400 {offsets = [1, 64], sizes = [1, 64], strides = [1, 1]} : vector<5x128xf32> to vector<1x64xf32>
    %593 = vector.extract_strided_slice %588 {offsets = [0, 64], sizes = [1, 64], strides = [1, 1]} : vector<1x128xf32> to vector<1x64xf32>
    %594 = arith.addf %592, %593 : vector<1x64xf32>
    %595 = vector.extract_strided_slice %591 {offsets = [0, 0], sizes = [1, 16], strides = [1, 1]} : vector<1x64xf32> to vector<1x16xf32>
    %596 = arith.negf %595 : vector<1x16xf32>
    %597 = math.exp %596 : vector<1x16xf32>
    %cst_192 = arith.constant 1.000000e+00 : f32
    %598 = vector.broadcast %cst_192 : f32 to vector<1x16xf32>
    %599 = arith.addf %598, %597 : vector<1x16xf32>
    %600 = arith.divf %598, %599 : vector<1x16xf32>
    %601 = vector.extract_strided_slice %591 {offsets = [0, 16], sizes = [1, 16], strides = [1, 1]} : vector<1x64xf32> to vector<1x16xf32>
    %602 = arith.negf %601 : vector<1x16xf32>
    %603 = math.exp %602 : vector<1x16xf32>
    %cst_193 = arith.constant 1.000000e+00 : f32
    %604 = vector.broadcast %cst_193 : f32 to vector<1x16xf32>
    %605 = arith.addf %604, %603 : vector<1x16xf32>
    %606 = arith.divf %604, %605 : vector<1x16xf32>
    %607 = vector.extract_strided_slice %591 {offsets = [0, 32], sizes = [1, 16], strides = [1, 1]} : vector<1x64xf32> to vector<1x16xf32>
    %608 = math.tanh %607 : vector<1x16xf32>
    %609 = vector.extract_strided_slice %591 {offsets = [0, 48], sizes = [1, 16], strides = [1, 1]} : vector<1x64xf32> to vector<1x16xf32>
    %610 = arith.negf %609 : vector<1x16xf32>
    %611 = math.exp %610 : vector<1x16xf32>
    %cst_194 = arith.constant 1.000000e+00 : f32
    %612 = vector.broadcast %cst_194 : f32 to vector<1x16xf32>
    %613 = arith.addf %612, %611 : vector<1x16xf32>
    %614 = arith.divf %612, %613 : vector<1x16xf32>
    %615 = vector.extract_strided_slice %594 {offsets = [0, 0], sizes = [1, 16], strides = [1, 1]} : vector<1x64xf32> to vector<1x16xf32>
    %616 = arith.negf %615 : vector<1x16xf32>
    %617 = math.exp %616 : vector<1x16xf32>
    %cst_195 = arith.constant 1.000000e+00 : f32
    %618 = vector.broadcast %cst_195 : f32 to vector<1x16xf32>
    %619 = arith.addf %618, %617 : vector<1x16xf32>
    %620 = arith.divf %618, %619 : vector<1x16xf32>
    %621 = vector.extract_strided_slice %594 {offsets = [0, 16], sizes = [1, 16], strides = [1, 1]} : vector<1x64xf32> to vector<1x16xf32>
    %622 = arith.negf %621 : vector<1x16xf32>
    %623 = math.exp %622 : vector<1x16xf32>
    %cst_196 = arith.constant 1.000000e+00 : f32
    %624 = vector.broadcast %cst_196 : f32 to vector<1x16xf32>
    %625 = arith.addf %624, %623 : vector<1x16xf32>
    %626 = arith.divf %624, %625 : vector<1x16xf32>
    %627 = vector.extract_strided_slice %594 {offsets = [0, 32], sizes = [1, 16], strides = [1, 1]} : vector<1x64xf32> to vector<1x16xf32>
    %628 = math.tanh %627 : vector<1x16xf32>
    %629 = vector.extract_strided_slice %594 {offsets = [0, 48], sizes = [1, 16], strides = [1, 1]} : vector<1x64xf32> to vector<1x16xf32>
    %630 = arith.negf %629 : vector<1x16xf32>
    %631 = math.exp %630 : vector<1x16xf32>
    %cst_197 = arith.constant 1.000000e+00 : f32
    %632 = vector.broadcast %cst_197 : f32 to vector<1x16xf32>
    %633 = arith.addf %632, %631 : vector<1x16xf32>
    %634 = arith.divf %632, %633 : vector<1x16xf32>
    %635 = arith.mulf %606, %576 : vector<1x16xf32>
    %636 = arith.mulf %600, %608 : vector<1x16xf32>
    %637 = arith.addf %635, %636 : vector<1x16xf32>
    %638 = math.tanh %637 : vector<1x16xf32>
    %639 = arith.mulf %614, %638 : vector<1x16xf32>
    %640 = arith.mulf %626, %581 : vector<1x16xf32>
    %641 = arith.mulf %620, %628 : vector<1x16xf32>
    %642 = arith.addf %640, %641 : vector<1x16xf32>
    %643 = math.tanh %642 : vector<1x16xf32>
    %644 = arith.mulf %634, %643 : vector<1x16xf32>
    %c3_198 = arith.constant 3 : index
    %c0_199 = arith.constant 0 : index
    %645 = vector.load %arg25[%c3_198, %c0_199] : memref<5x32xf32, #tpu.memory_space<vmem>>, vector<1x16xf32>
    tpu.vector_store %arg25[%c3_198, %c0_199], %639 {strides = array<i32>} : memref<5x32xf32, #tpu.memory_space<vmem>>, vector<1x16xf32>,
    %c1_200 = arith.constant 1 : index
    %c16_201 = arith.constant 16 : index
    %646 = vector.load %arg25[%c1_200, %c16_201] : memref<5x32xf32, #tpu.memory_space<vmem>>, vector<1x16xf32>
    tpu.vector_store %arg25[%c1_200, %c16_201], %644 {strides = array<i32>} : memref<5x32xf32, #tpu.memory_space<vmem>>, vector<1x16xf32>,
    %647 = tpu.concatenate %639, %644 in 1 : vector<1x16xf32>, vector<1x16xf32> -> vector<1x32xf32>
    %c0_202 = arith.constant 0 : index
    %c0_203 = arith.constant 0 : index
    %648 = vector.load %arg12[%c0_202, %c0_203] : memref<32x128xf32, #tpu.memory_space<vmem>>, vector<32x128xf32>
    %cst_204 = arith.constant dense<0.000000e+00> : vector<1x128xf32>
    %649 = tpu.matmul %647, %648, %cst_204 {dimension_numbers = #tpu.dot_dimension_numbers<[1], [0], [0], [1], [0, 0, 1, 1], [], []>} : vector<1x32xf32>, vector<32x128xf32>, vector<1x128xf32> -> vector<1x128xf32>
    %650 = vector.extract_strided_slice %400 {offsets = [4, 0], sizes = [1, 64], strides = [1, 1]} : vector<5x128xf32> to vector<1x64xf32>
    %651 = vector.extract_strided_slice %649 {offsets = [0, 0], sizes = [1, 64], strides = [1, 1]} : vector<1x128xf32> to vector<1x64xf32>
    %652 = arith.addf %650, %651 : vector<1x64xf32>
    %653 = vector.extract_strided_slice %400 {offsets = [0, 64], sizes = [1, 64], strides = [1, 1]} : vector<5x128xf32> to vector<1x64xf32>
    %654 = vector.extract_strided_slice %649 {offsets = [0, 64], sizes = [1, 64], strides = [1, 1]} : vector<1x128xf32> to vector<1x64xf32>
    %655 = arith.addf %653, %654 : vector<1x64xf32>
    %656 = vector.extract_strided_slice %652 {offsets = [0, 0], sizes = [1, 16], strides = [1, 1]} : vector<1x64xf32> to vector<1x16xf32>
    %657 = arith.negf %656 : vector<1x16xf32>
    %658 = math.exp %657 : vector<1x16xf32>
    %cst_205 = arith.constant 1.000000e+00 : f32
    %659 = vector.broadcast %cst_205 : f32 to vector<1x16xf32>
    %660 = arith.addf %659, %658 : vector<1x16xf32>
    %661 = arith.divf %659, %660 : vector<1x16xf32>
    %662 = vector.extract_strided_slice %652 {offsets = [0, 16], sizes = [1, 16], strides = [1, 1]} : vector<1x64xf32> to vector<1x16xf32>
    %663 = arith.negf %662 : vector<1x16xf32>
    %664 = math.exp %663 : vector<1x16xf32>
    %cst_206 = arith.constant 1.000000e+00 : f32
    %665 = vector.broadcast %cst_206 : f32 to vector<1x16xf32>
    %666 = arith.addf %665, %664 : vector<1x16xf32>
    %667 = arith.divf %665, %666 : vector<1x16xf32>
    %668 = vector.extract_strided_slice %652 {offsets = [0, 32], sizes = [1, 16], strides = [1, 1]} : vector<1x64xf32> to vector<1x16xf32>
    %669 = math.tanh %668 : vector<1x16xf32>
    %670 = vector.extract_strided_slice %652 {offsets = [0, 48], sizes = [1, 16], strides = [1, 1]} : vector<1x64xf32> to vector<1x16xf32>
    %671 = arith.negf %670 : vector<1x16xf32>
    %672 = math.exp %671 : vector<1x16xf32>
    %cst_207 = arith.constant 1.000000e+00 : f32
    %673 = vector.broadcast %cst_207 : f32 to vector<1x16xf32>
    %674 = arith.addf %673, %672 : vector<1x16xf32>
    %675 = arith.divf %673, %674 : vector<1x16xf32>
    %676 = vector.extract_strided_slice %655 {offsets = [0, 0], sizes = [1, 16], strides = [1, 1]} : vector<1x64xf32> to vector<1x16xf32>
    %677 = arith.negf %676 : vector<1x16xf32>
    %678 = math.exp %677 : vector<1x16xf32>
    %cst_208 = arith.constant 1.000000e+00 : f32
    %679 = vector.broadcast %cst_208 : f32 to vector<1x16xf32>
    %680 = arith.addf %679, %678 : vector<1x16xf32>
    %681 = arith.divf %679, %680 : vector<1x16xf32>
    %682 = vector.extract_strided_slice %655 {offsets = [0, 16], sizes = [1, 16], strides = [1, 1]} : vector<1x64xf32> to vector<1x16xf32>
    %683 = arith.negf %682 : vector<1x16xf32>
    %684 = math.exp %683 : vector<1x16xf32>
    %cst_209 = arith.constant 1.000000e+00 : f32
    %685 = vector.broadcast %cst_209 : f32 to vector<1x16xf32>
    %686 = arith.addf %685, %684 : vector<1x16xf32>
    %687 = arith.divf %685, %686 : vector<1x16xf32>
    %688 = vector.extract_strided_slice %655 {offsets = [0, 32], sizes = [1, 16], strides = [1, 1]} : vector<1x64xf32> to vector<1x16xf32>
    %689 = math.tanh %688 : vector<1x16xf32>
    %690 = vector.extract_strided_slice %655 {offsets = [0, 48], sizes = [1, 16], strides = [1, 1]} : vector<1x64xf32> to vector<1x16xf32>
    %691 = arith.negf %690 : vector<1x16xf32>
    %692 = math.exp %691 : vector<1x16xf32>
    %cst_210 = arith.constant 1.000000e+00 : f32
    %693 = vector.broadcast %cst_210 : f32 to vector<1x16xf32>
    %694 = arith.addf %693, %692 : vector<1x16xf32>
    %695 = arith.divf %693, %694 : vector<1x16xf32>
    %696 = arith.mulf %667, %637 : vector<1x16xf32>
    %697 = arith.mulf %661, %669 : vector<1x16xf32>
    %698 = arith.addf %696, %697 : vector<1x16xf32>
    %699 = math.tanh %698 : vector<1x16xf32>
    %700 = arith.mulf %675, %699 : vector<1x16xf32>
    %701 = arith.mulf %687, %642 : vector<1x16xf32>
    %702 = arith.mulf %681, %689 : vector<1x16xf32>
    %703 = arith.addf %701, %702 : vector<1x16xf32>
    %704 = math.tanh %703 : vector<1x16xf32>
    %705 = arith.mulf %695, %704 : vector<1x16xf32>
    %c4_211 = arith.constant 4 : index
    %c0_212 = arith.constant 0 : index
    %706 = vector.load %arg25[%c4_211, %c0_212] : memref<5x32xf32, #tpu.memory_space<vmem>>, vector<1x16xf32>
    tpu.vector_store %arg25[%c4_211, %c0_212], %700 {strides = array<i32>} : memref<5x32xf32, #tpu.memory_space<vmem>>, vector<1x16xf32>,
    %c0_213 = arith.constant 0 : index
    %c16_214 = arith.constant 16 : index
    %707 = vector.load %arg25[%c0_213, %c16_214] : memref<5x32xf32, #tpu.memory_space<vmem>>, vector<1x16xf32>
    tpu.vector_store %arg25[%c0_213, %c16_214], %705 {strides = array<i32>} : memref<5x32xf32, #tpu.memory_space<vmem>>, vector<1x16xf32>,
    %c0_215 = arith.constant 0 : index
    %c0_216 = arith.constant 0 : index
    %708 = vector.load %arg25[%c0_215, %c0_216] : memref<5x32xf32, #tpu.memory_space<vmem>>, vector<5x32xf32>
    %c0_217 = arith.constant 0 : index
    %c0_218 = arith.constant 0 : index
    %709 = vector.load %arg14[%c0_217, %c0_218] : memref<32x128xf32, #tpu.memory_space<vmem>>, vector<32x128xf32>
    %cst_219 = arith.constant dense<0.000000e+00> : vector<5x128xf32>
    %710 = tpu.matmul %708, %709, %cst_219 {dimension_numbers = #tpu.dot_dimension_numbers<[1], [0], [0], [1], [0, 0, 1, 1], [], []>} : vector<5x32xf32>, vector<32x128xf32>, vector<5x128xf32> -> vector<5x128xf32>
    %c0_220 = arith.constant 0 : index
    %c0_221 = arith.constant 0 : index
    %711 = vector.load %arg15[%c0_220, %c0_221] : memref<1x128xf32, #tpu.memory_space<vmem>>, vector<1x128xf32>
    %712 = vector.broadcast %711 : vector<1x128xf32> to vector<5x128xf32>
    %713 = arith.addf %710, %712 : vector<5x128xf32>
    %c0_222 = arith.constant 0 : index
    %c0_223 = arith.constant 0 : index
    %c0_224 = arith.constant 0 : index
    %714 = vector.load %arg20[%c0_222, %c0_223, %c0_224] : memref<1x5x128xf32, #tpu.memory_space<vmem>>, vector<1x5x128xf32>
    %715 = vector.shape_cast %714 : vector<1x5x128xf32> to vector<5x128xf32>
    %716 = vector.shape_cast %713 : vector<5x128xf32> to vector<1x5x128xf32>
    tpu.vector_store %arg20[%c0_222, %c0_223, %c0_224], %716 {strides = array<i32>} : memref<1x5x128xf32, #tpu.memory_space<vmem>>, vector<1x5x128xf32>,
    %c0_225 = arith.constant 0 : index
    %c0_226 = arith.constant 0 : index
    %717 = vector.load %arg16[%c0_225, %c0_226] : memref<32x128xf32, #tpu.memory_space<vmem>>, vector<32x128xf32>
    %cst_227 = arith.constant dense<0.000000e+00> : vector<5x128xf32>
    %718 = tpu.matmul %708, %717, %cst_227 {dimension_numbers = #tpu.dot_dimension_numbers<[1], [0], [0], [1], [0, 0, 1, 1], [], []>} : vector<5x32xf32>, vector<32x128xf32>, vector<5x128xf32> -> vector<5x128xf32>
    %c0_228 = arith.constant 0 : index
    %c0_229 = arith.constant 0 : index
    %719 = vector.load %arg17[%c0_228, %c0_229] : memref<1x128xf32, #tpu.memory_space<vmem>>, vector<1x128xf32>
    %720 = vector.broadcast %719 : vector<1x128xf32> to vector<5x128xf32>
    %721 = arith.addf %718, %720 : vector<5x128xf32>
    %c0_230 = arith.constant 0 : index
    %c0_231 = arith.constant 0 : index
    %c0_232 = arith.constant 0 : index
    %722 = vector.load %arg21[%c0_230, %c0_231, %c0_232] : memref<1x5x128xf32, #tpu.memory_space<vmem>>, vector<1x5x128xf32>
    %723 = vector.shape_cast %722 : vector<1x5x128xf32> to vector<5x128xf32>
    %724 = vector.shape_cast %721 : vector<5x128xf32> to vector<1x5x128xf32>
    tpu.vector_store %arg21[%c0_230, %c0_231, %c0_232], %724 {strides = array<i32>} : memref<1x5x128xf32, #tpu.memory_space<vmem>>, vector<1x5x128xf32>,
    return
  }
  func.func @transform_0(%arg0: i32) -> (i32, i32, i32) {
    %c0_i32 = arith.constant 0 : i32
    %c0_i32_0 = arith.constant 0 : i32
    %c0_i32_1 = arith.constant 0 : i32
    return %arg0, %c0_i32, %c0_i32_0 : i32, i32, i32
  }
  func.func @transform_1(%arg0: i32) -> (i32, i32, i32) {
    %c0_i32 = arith.constant 0 : i32
    %c0_i32_0 = arith.constant 0 : i32
    %c0_i32_1 = arith.constant 0 : i32
    %c0_i32_2 = arith.constant 0 : i32
    return %c0_i32, %c0_i32_0, %c0_i32_1 : i32, i32, i32
  }
  func.func @transform_2(%arg0: i32) -> (i32, i32) {
    %c0_i32 = arith.constant 0 : i32
    %c0_i32_0 = arith.constant 0 : i32
    %c0_i32_1 = arith.constant 0 : i32
    return %c0_i32, %c0_i32_0 : i32, i32
  }
  func.func @transform_3(%arg0: i32) -> (i32, i32, i32) {
    %c0_i32 = arith.constant 0 : i32
    %c0_i32_0 = arith.constant 0 : i32
    %c0_i32_1 = arith.constant 0 : i32
    %c0_i32_2 = arith.constant 0 : i32
    return %c0_i32, %c0_i32_0, %c0_i32_1 : i32, i32, i32
  }
  func.func @transform_4(%arg0: i32) -> (i32, i32) {
    %c0_i32 = arith.constant 0 : i32
    %c0_i32_0 = arith.constant 0 : i32
    %c0_i32_1 = arith.constant 0 : i32
    return %c0_i32, %c0_i32_0 : i32, i32
  }
  func.func @transform_5(%arg0: i32) -> (i32, i32) {
    %c0_i32 = arith.constant 0 : i32
    %c0_i32_0 = arith.constant 0 : i32
    %c0_i32_1 = arith.constant 0 : i32
    return %c0_i32, %c0_i32_0 : i32, i32
  }
  func.func @transform_6(%arg0: i32) -> (i32, i32) {
    %c0_i32 = arith.constant 0 : i32
    %c0_i32_0 = arith.constant 0 : i32
    %c0_i32_1 = arith.constant 0 : i32
    return %c0_i32, %c0_i32_0 : i32, i32
  }
  func.func @transform_7(%arg0: i32) -> (i32, i32) {
    %c0_i32 = arith.constant 0 : i32
    %c0_i32_0 = arith.constant 0 : i32
    %c0_i32_1 = arith.constant 0 : i32
    return %c0_i32, %c0_i32_0 : i32, i32
  }
  func.func @transform_8(%arg0: i32) -> (i32, i32) {
    %c0_i32 = arith.constant 0 : i32
    %c0_i32_0 = arith.constant 0 : i32
    %c0_i32_1 = arith.constant 0 : i32
    return %c0_i32, %c0_i32_0 : i32, i32
  }
  func.func @transform_9(%arg0: i32) -> (i32, i32) {
    %c0_i32 = arith.constant 0 : i32
    %c0_i32_0 = arith.constant 0 : i32
    %c0_i32_1 = arith.constant 0 : i32
    return %c0_i32, %c0_i32_0 : i32, i32
  }
  func.func @transform_10(%arg0: i32) -> (i32, i32) {
    %c0_i32 = arith.constant 0 : i32
    %c0_i32_0 = arith.constant 0 : i32
    %c0_i32_1 = arith.constant 0 : i32
    return %c0_i32, %c0_i32_0 : i32, i32
  }
  func.func @transform_11(%arg0: i32) -> (i32, i32) {
    %c0_i32 = arith.constant 0 : i32
    %c0_i32_0 = arith.constant 0 : i32
    %c0_i32_1 = arith.constant 0 : i32
    return %c0_i32, %c0_i32_0 : i32, i32
  }
  func.func @transform_12(%arg0: i32) -> (i32, i32) {
    %c0_i32 = arith.constant 0 : i32
    %c0_i32_0 = arith.constant 0 : i32
    %c0_i32_1 = arith.constant 0 : i32
    return %c0_i32, %c0_i32_0 : i32, i32
  }
  func.func @transform_13(%arg0: i32) -> (i32, i32) {
    %c0_i32 = arith.constant 0 : i32
    %c0_i32_0 = arith.constant 0 : i32
    %c0_i32_1 = arith.constant 0 : i32
    return %c0_i32, %c0_i32_0 : i32, i32
  }
  func.func @transform_14(%arg0: i32) -> (i32, i32) {
    %c0_i32 = arith.constant 0 : i32
    %c0_i32_0 = arith.constant 0 : i32
    %c0_i32_1 = arith.constant 0 : i32
    return %c0_i32, %c0_i32_0 : i32, i32
  }
  func.func @transform_15(%arg0: i32) -> (i32, i32) {
    %c0_i32 = arith.constant 0 : i32
    %c0_i32_0 = arith.constant 0 : i32
    %c0_i32_1 = arith.constant 0 : i32
    return %c0_i32, %c0_i32_0 : i32, i32
  }
  func.func @transform_16(%arg0: i32) -> (i32, i32) {
    %c0_i32 = arith.constant 0 : i32
    %c0_i32_0 = arith.constant 0 : i32
    %c0_i32_1 = arith.constant 0 : i32
    return %c0_i32, %c0_i32_0 : i32, i32
  }
  func.func @transform_17(%arg0: i32) -> (i32, i32, i32) {
    %c0_i32 = arith.constant 0 : i32
    %c0_i32_0 = arith.constant 0 : i32
    %c0_i32_1 = arith.constant 0 : i32
    return %arg0, %c0_i32, %c0_i32_0 : i32, i32, i32
  }
  func.func @transform_18(%arg0: i32) -> (i32, i32, i32) {
    %c0_i32 = arith.constant 0 : i32
    %c0_i32_0 = arith.constant 0 : i32
    %c0_i32_1 = arith.constant 0 : i32
    return %arg0, %c0_i32, %c0_i32_0 : i32, i32, i32
  }
  func.func @transform_19(%arg0: i32) -> (i32, i32, i32) {
    %c0_i32 = arith.constant 0 : i32
    %c0_i32_0 = arith.constant 0 : i32
    %c0_i32_1 = arith.constant 0 : i32
    return %arg0, %c0_i32, %c0_i32_0 : i32, i32, i32
  }
  func.func @transform_20(%arg0: i32) -> (i32, i32, i32) {
    %c0_i32 = arith.constant 0 : i32
    %c0_i32_0 = arith.constant 0 : i32
    %c0_i32_1 = arith.constant 0 : i32
    return %arg0, %c0_i32, %c0_i32_0 : i32, i32, i32
  }
}

</mosaic_0001>

<llo_original>
// kernel: tpu_custom_call.1
$region0: #{tpu_custom_call.1}
  #allocation0 [shape = 'u32[]', space=smem, size = 0x4, offset = 0x4, fixed_abs, tag = 'smem constant byte address 0x4 - core index']
  #allocation1 [shape = 'u32[144,128]{1,0:T(1,128)}', space=vmem, size = 0x12000, scoped, tag = 'internal scratch']
  #allocation2 [shape = 'f32[28,32]{1,0:T(8,128)}', space=vmem, size = 0x4000, scoped, tag = 'scratch operand']
  #allocation3 [shape = 'f32[10,32]{1,0:T(8,128)}', space=vmem, size = 0x2000, scoped, tag = 'scratch operand']
  #allocation4 [shape = 'f32[5,32]{1,0:T(8,128)}', space=vmem, size = 0x1000, scoped, tag = 'scratch operand']
  #allocation5 [shape = 'f32[5,32]{1,0:T(8,128)}', space=vmem, size = 0x1000, scoped, tag = 'scratch operand']
  %s0 = inlined_call_operand.vmem [shape: f32[2,32,64], index: 0, kind: input, shape index: {}]
  %s1 = inlined_call_operand.vmem [shape: f32[5,64,32], index: 1, kind: input, shape index: {}]
  %s2 = inlined_call_operand.vmem [shape: f32[1,32], index: 2, kind: input, shape index: {}]
  %s3 = inlined_call_operand.vmem [shape: f32[5,32,32], index: 3, kind: input, shape index: {}]
  %s4 = inlined_call_operand.vmem [shape: f32[1,32], index: 4, kind: input, shape index: {}]
  %s5 = inlined_call_operand.vmem [shape: f32[32,128], index: 5, kind: input, shape index: {}]
  %s6 = inlined_call_operand.vmem [shape: f32[1,128], index: 6, kind: input, shape index: {}]
  %s7 = inlined_call_operand.vmem [shape: f32[32,128], index: 7, kind: input, shape index: {}]
  %s8 = inlined_call_operand.vmem [shape: f32[32,128], index: 8, kind: input, shape index: {}]
  %s9 = inlined_call_operand.vmem [shape: f32[1,128], index: 9, kind: input, shape index: {}]
  %s10 = inlined_call_operand.vmem [shape: f32[32,128], index: 10, kind: input, shape index: {}]
  %s11 = inlined_call_operand.vmem [shape: f32[32,128], index: 11, kind: input, shape index: {}]
  %s12 = inlined_call_operand.vmem [shape: f32[1,128], index: 12, kind: input, shape index: {}]
  %s13 = inlined_call_operand.vmem [shape: f32[32,128], index: 13, kind: input, shape index: {}]
  %s14 = inlined_call_operand.vmem [shape: f32[1,128], index: 14, kind: input, shape index: {}]
  %s15 = inlined_call_operand.vmem [shape: f32[32,128], index: 15, kind: input, shape index: {}]
  %s16 = inlined_call_operand.vmem [shape: f32[1,128], index: 16, kind: input, shape index: {}]
  %s17 = inlined_call_operand.vmem [shape: f32[2,5,32], index: 17, kind: output, shape index: {0}]
  %s18 = inlined_call_operand.vmem [shape: f32[2,5,128], index: 18, kind: output, shape index: {1}]
  %s19 = inlined_call_operand.vmem [shape: f32[2,5,128], index: 19, kind: output, shape index: {2}]
  %s20 = inlined_call_operand.vmem [shape: f32[2,5,128], index: 20, kind: output, shape index: {3}]
  %21 = xla_tuple %s17, %s18, %s19, %s20
  %s22 = sld [smem:[#allocation0]]
  $region125: #{tpu_custom_call.1} parent=0
    _
  %s24 = ssub.s32 1, %s22
  %s25 = scalar_select 0, %s24, %s22
  loop: start=0, step=1, limit=4
  $region2: #{tpu_custom_call.1} parent=0 // loop_pre_header
    _
  $region3: #{tpu_custom_call.1} parent=0 // loop_header
    %s27 = sphi 0, %s31
    %p28 = scmp.ge.s32.totalorder %s27, 4
    %s37 = sphi 0, %s39
    %s40 = sphi 0, %s37
    %s41 = sphi 0, %s40
    %s57 = sphi 0, %s41
    %s61 = sphi 0, %s61
    %s63 = sphi 0, %s61
    %s64 = sphi 0, %s63
    %s78 = sphi 0, %s64
    %s82 = sphi 0, %s82
    %s84 = sphi 0, %s82
    %s85 = sphi 0, %s84
    %s99 = sphi 0, %s85
    %s103 = sphi 0, %s103
    %s105 = sphi 0, %s103
    %s106 = sphi 0, %s105
    %s120 = sphi 0, %s106
    %s124 = sphi 0, %s124
    %s126 = sphi 0, %s124
    %s127 = sphi 0, %s126
    %s141 = sphi 0, %s127
    %s145 = sphi 0, %s145
    %s147 = sphi 0, %s145
    %s148 = sphi 0, %s147
    %s162 = sphi 0, %s148
    %s166 = sphi 0, %s166
    %s168 = sphi 0, %s166
    %s169 = sphi 0, %s168
    %s183 = sphi 0, %s169
    %s187 = sphi 0, %s187
    %s189 = sphi 0, %s187
    %s190 = sphi 0, %s189
    %s204 = sphi 0, %s190
    %s208 = sphi 0, %s208
    %s210 = sphi 0, %s208
    %s211 = sphi 0, %s210
    %s225 = sphi 0, %s211
    %s229 = sphi 0, %s229
    %s231 = sphi 0, %s229
    %s232 = sphi 0, %s231
    %s246 = sphi 0, %s232
    %s250 = sphi 0, %s250
    %s252 = sphi 0, %s250
    %s253 = sphi 0, %s252
    %s267 = sphi 0, %s253
    %s271 = sphi 0, %s271
    %s273 = sphi 0, %s271
    %s274 = sphi 0, %s273
    %s288 = sphi 0, %s274
    %s292 = sphi 0, %s292
    %s294 = sphi 0, %s292
    %s295 = sphi 0, %s294
    %s309 = sphi 0, %s295
    %s313 = sphi 0, %s313
    %s315 = sphi 0, %s313
    %s316 = sphi 0, %s315
    %s330 = sphi 0, %s316
    %s334 = sphi 0, %s334
    %s336 = sphi 0, %s334
    %s337 = sphi 0, %s336
    %s351 = sphi 0, %s337
    %s355 = sphi 0, %s355
    %s357 = sphi 0, %s355
    %s358 = sphi 0, %s357
    %s372 = sphi 0, %s358
    %s376 = sphi 0, %s376
    %s378 = sphi 0, %s376
    %s379 = sphi 0, %s378
    %s393 = sphi 0, %s379
    %s399 = sphi 0, %s401
    %s402 = sphi 0, %s399
    %s403 = sphi 0, %s402
    %s419 = sphi 0, %s403
    %s425 = sphi 0, %s427
    %s428 = sphi 0, %s425
    %s429 = sphi 0, %s428
    %s445 = sphi 0, %s429
    %s451 = sphi 0, %s453
    %s454 = sphi 0, %s451
    %s455 = sphi 0, %s454
    %s471 = sphi 0, %s455
    %s477 = sphi 0, %s479
    %s480 = sphi 0, %s477
    %s481 = sphi 0, %s480
    %s497 = sphi 0, %s481
  $region4: #{tpu_custom_call.1} parent=0 // loop_header_branch
    %30 = sbr.rel (%p28) target = $region8
  $region5: #{tpu_custom_call.1} parent=0 // loop_body
    %s32 = ssub.s32 %s27, 1
    %s33 = ssub.s32 %s27, 2
    %s34 = sadd.s32 %s27, 1
    %s35 = ssub.s32 %s27, %s34
    %p36 = scmp.eq.s32.totalorder %s35, 0
    %s38 = sadd.s32 %s37, 1
    %s39 = scalar_select %p36, %s37, %s38
    %p42 = pneg %p36
    %p43 = scmp.eq.s32.totalorder %s27, 1
    %p44 = por %p42, %p43
    %p45 = scmp.ne.s32.totalorder %s37, %s40
    %p46 = scmp.eq.s32.totalorder %s27, 0
    %p47 = por %p45, %p46
    %p48 = scmp.ne.s32.totalorder %s37, %s40
    %p49 = scmp.eq.s32.totalorder %s32, 1
    %p50 = por %p48, %p49
    %p51 = scmp.ne.s32.totalorder %s40, %s41
    %p52 = scmp.eq.s32.totalorder %s32, 0
    %p53 = por %p51, %p52
    %p54 = scmp.ne.s32.totalorder %s40, %s41
    %p55 = scmp.eq.s32.totalorder %s33, 1
    %p56 = por %p54, %p55
    %p58 = scmp.ne.s32.totalorder %s41, %s57
    %p59 = scmp.eq.s32.totalorder %s33, 0
    %p60 = por %p58, %p59
    %s62 = sadd.s32 %s61, 1
    %p65 = scmp.eq.s32.totalorder %s27, 1
    %p66 = scmp.ne.s32.totalorder %s61, %s63
    %p67 = scmp.eq.s32.totalorder %s27, 0
    %p68 = por %p66, %p67
    %p69 = scmp.ne.s32.totalorder %s61, %s63
    %p70 = scmp.eq.s32.totalorder %s32, 1
    %p71 = por %p69, %p70
    %p72 = scmp.ne.s32.totalorder %s63, %s64
    %p73 = scmp.eq.s32.totalorder %s32, 0
    %p74 = por %p72, %p73
    %p75 = scmp.ne.s32.totalorder %s63, %s64
    %p76 = scmp.eq.s32.totalorder %s33, 1
    %p77 = por %p75, %p76
    %p79 = scmp.ne.s32.totalorder %s64, %s78
    %p80 = scmp.eq.s32.totalorder %s33, 0
    %p81 = por %p79, %p80
    %s83 = sadd.s32 %s82, 1
    %p86 = scmp.eq.s32.totalorder %s27, 1
    %p87 = scmp.ne.s32.totalorder %s82, %s84
    %p88 = scmp.eq.s32.totalorder %s27, 0
    %p89 = por %p87, %p88
    %p90 = scmp.ne.s32.totalorder %s82, %s84
    %p91 = scmp.eq.s32.totalorder %s32, 1
    %p92 = por %p90, %p91
    %p93 = scmp.ne.s32.totalorder %s84, %s85
    %p94 = scmp.eq.s32.totalorder %s32, 0
    %p95 = por %p93, %p94
    %p96 = scmp.ne.s32.totalorder %s84, %s85
    %p97 = scmp.eq.s32.totalorder %s33, 1
    %p98 = por %p96, %p97
    %p100 = scmp.ne.s32.totalorder %s85, %s99
    %p101 = scmp.eq.s32.totalorder %s33, 0
    %p102 = por %p100, %p101
    %s104 = sadd.s32 %s103, 1
    %p107 = scmp.eq.s32.totalorder %s27, 1
    %p108 = scmp.ne.s32.totalorder %s103, %s105
    %p109 = scmp.eq.s32.totalorder %s27, 0
    %p110 = por %p108, %p109
    %p111 = scmp.ne.s32.totalorder %s103, %s105
    %p112 = scmp.eq.s32.totalorder %s32, 1
    %p113 = por %p111, %p112
    %p114 = scmp.ne.s32.totalorder %s105, %s106
    %p115 = scmp.eq.s32.totalorder %s32, 0
    %p116 = por %p114, %p115
    %p117 = scmp.ne.s32.totalorder %s105, %s106
    %p118 = scmp.eq.s32.totalorder %s33, 1
    %p119 = por %p117, %p118
    %p121 = scmp.ne.s32.totalorder %s106, %s120
    %p122 = scmp.eq.s32.totalorder %s33, 0
    %p123 = por %p121, %p122
    %s125 = sadd.s32 %s124, 1
    %p128 = scmp.eq.s32.totalorder %s27, 1
    %p129 = scmp.ne.s32.totalorder %s124, %s126
    %p130 = scmp.eq.s32.totalorder %s27, 0
    %p131 = por %p129, %p130
    %p132 = scmp.ne.s32.totalorder %s124, %s126
    %p133 = scmp.eq.s32.totalorder %s32, 1
    %p134 = por %p132, %p133
    %p135 = scmp.ne.s32.totalorder %s126, %s127
    %p136 = scmp.eq.s32.totalorder %s32, 0
    %p137 = por %p135, %p136
    %p138 = scmp.ne.s32.totalorder %s126, %s127
    %p139 = scmp.eq.s32.totalorder %s33, 1
    %p140 = por %p138, %p139
    %p142 = scmp.ne.s32.totalorder %s127, %s141
    %p143 = scmp.eq.s32.totalorder %s33, 0
    %p144 = por %p142, %p143
    %s146 = sadd.s32 %s145, 1
    %p149 = scmp.eq.s32.totalorder %s27, 1
    %p150 = scmp.ne.s32.totalorder %s145, %s147
    %p151 = scmp.eq.s32.totalorder %s27, 0
    %p152 = por %p150, %p151
    %p153 = scmp.ne.s32.totalorder %s145, %s147
    %p154 = scmp.eq.s32.totalorder %s32, 1
    %p155 = por %p153, %p154
    %p156 = scmp.ne.s32.totalorder %s147, %s148
    %p157 = scmp.eq.s32.totalorder %s32, 0
    %p158 = por %p156, %p157
    %p159 = scmp.ne.s32.totalorder %s147, %s148
    %p160 = scmp.eq.s32.totalorder %s33, 1
    %p161 = por %p159, %p160
    %p163 = scmp.ne.s32.totalorder %s148, %s162
    %p164 = scmp.eq.s32.totalorder %s33, 0
    %p165 = por %p163, %p164
    %s167 = sadd.s32 %s166, 1
    %p170 = scmp.eq.s32.totalorder %s27, 1
    %p171 = scmp.ne.s32.totalorder %s166, %s168
    %p172 = scmp.eq.s32.totalorder %s27, 0
    %p173 = por %p171, %p172
    %p174 = scmp.ne.s32.totalorder %s166, %s168
    %p175 = scmp.eq.s32.totalorder %s32, 1
    %p176 = por %p174, %p175
    %p177 = scmp.ne.s32.totalorder %s168, %s169
    %p178 = scmp.eq.s32.totalorder %s32, 0
    %p179 = por %p177, %p178
    %p180 = scmp.ne.s32.totalorder %s168, %s169
    %p181 = scmp.eq.s32.totalorder %s33, 1
    %p182 = por %p180, %p181
    %p184 = scmp.ne.s32.totalorder %s169, %s183
    %p185 = scmp.eq.s32.totalorder %s33, 0
    %p186 = por %p184, %p185
    %s188 = sadd.s32 %s187, 1
    %p191 = scmp.eq.s32.totalorder %s27, 1
    %p192 = scmp.ne.s32.totalorder %s187, %s189
    %p193 = scmp.eq.s32.totalorder %s27, 0
    %p194 = por %p192, %p193
    %p195 = scmp.ne.s32.totalorder %s187, %s189
    %p196 = scmp.eq.s32.totalorder %s32, 1
    %p197 = por %p195, %p196
    %p198 = scmp.ne.s32.totalorder %s189, %s190
    %p199 = scmp.eq.s32.totalorder %s32, 0
    %p200 = por %p198, %p199
    %p201 = scmp.ne.s32.totalorder %s189, %s190
    %p202 = scmp.eq.s32.totalorder %s33, 1
    %p203 = por %p201, %p202
    %p205 = scmp.ne.s32.totalorder %s190, %s204
    %p206 = scmp.eq.s32.totalorder %s33, 0
    %p207 = por %p205, %p206
    %s209 = sadd.s32 %s208, 1
    %p212 = scmp.eq.s32.totalorder %s27, 1
    %p213 = scmp.ne.s32.totalorder %s208, %s210
    %p214 = scmp.eq.s32.totalorder %s27, 0
    %p215 = por %p213, %p214
    %p216 = scmp.ne.s32.totalorder %s208, %s210
    %p217 = scmp.eq.s32.totalorder %s32, 1
    %p218 = por %p216, %p217
    %p219 = scmp.ne.s32.totalorder %s210, %s211
    %p220 = scmp.eq.s32.totalorder %s32, 0
    %p221 = por %p219, %p220
    %p222 = scmp.ne.s32.totalorder %s210, %s211
    %p223 = scmp.eq.s32.totalorder %s33, 1
    %p224 = por %p222, %p223
    %p226 = scmp.ne.s32.totalorder %s211, %s225
    %p227 = scmp.eq.s32.totalorder %s33, 0
    %p228 = por %p226, %p227
    %s230 = sadd.s32 %s229, 1
    %p233 = scmp.eq.s32.totalorder %s27, 1
    %p234 = scmp.ne.s32.totalorder %s229, %s231
    %p235 = scmp.eq.s32.totalorder %s27, 0
    %p236 = por %p234, %p235
    %p237 = scmp.ne.s32.totalorder %s229, %s231
    %p238 = scmp.eq.s32.totalorder %s32, 1
    %p239 = por %p237, %p238
    %p240 = scmp.ne.s32.totalorder %s231, %s232
    %p241 = scmp.eq.s32.totalorder %s32, 0
    %p242 = por %p240, %p241
    %p243 = scmp.ne.s32.totalorder %s231, %s232
    %p244 = scmp.eq.s32.totalorder %s33, 1
    %p245 = por %p243, %p244
    %p247 = scmp.ne.s32.totalorder %s232, %s246
    %p248 = scmp.eq.s32.totalorder %s33, 0
    %p249 = por %p247, %p248
    %s251 = sadd.s32 %s250, 1
    %p254 = scmp.eq.s32.totalorder %s27, 1
    %p255 = scmp.ne.s32.totalorder %s250, %s252
    %p256 = scmp.eq.s32.totalorder %s27, 0
    %p257 = por %p255, %p256
    %p258 = scmp.ne.s32.totalorder %s250, %s252
    %p259 = scmp.eq.s32.totalorder %s32, 1
    %p260 = por %p258, %p259
    %p261 = scmp.ne.s32.totalorder %s252, %s253
    %p262 = scmp.eq.s32.totalorder %s32, 0
    %p263 = por %p261, %p262
    %p264 = scmp.ne.s32.totalorder %s252, %s253
    %p265 = scmp.eq.s32.totalorder %s33, 1
    %p266 = por %p264, %p265
    %p268 = scmp.ne.s32.totalorder %s253, %s267
    %p269 = scmp.eq.s32.totalorder %s33, 0
    %p270 = por %p268, %p269
    %s272 = sadd.s32 %s271, 1
    %p275 = scmp.eq.s32.totalorder %s27, 1
    %p276 = scmp.ne.s32.totalorder %s271, %s273
    %p277 = scmp.eq.s32.totalorder %s27, 0
    %p278 = por %p276, %p277
    %p279 = scmp.ne.s32.totalorder %s271, %s273
    %p280 = scmp.eq.s32.totalorder %s32, 1
    %p281 = por %p279, %p280
    %p282 = scmp.ne.s32.totalorder %s273, %s274
    %p283 = scmp.eq.s32.totalorder %s32, 0
    %p284 = por %p282, %p283
    %p285 = scmp.ne.s32.totalorder %s273, %s274
    %p286 = scmp.eq.s32.totalorder %s33, 1
    %p287 = por %p285, %p286
    %p289 = scmp.ne.s32.totalorder %s274, %s288
    %p290 = scmp.eq.s32.totalorder %s33, 0
    %p291 = por %p289, %p290
    %s293 = sadd.s32 %s292, 1
    %p296 = scmp.eq.s32.totalorder %s27, 1
    %p297 = scmp.ne.s32.totalorder %s292, %s294
    %p298 = scmp.eq.s32.totalorder %s27, 0
    %p299 = por %p297, %p298
    %p300 = scmp.ne.s32.totalorder %s292, %s294
    %p301 = scmp.eq.s32.totalorder %s32, 1
    %p302 = por %p300, %p301
    %p303 = scmp.ne.s32.totalorder %s294, %s295
    %p304 = scmp.eq.s32.totalorder %s32, 0
    %p305 = por %p303, %p304
    %p306 = scmp.ne.s32.totalorder %s294, %s295
    %p307 = scmp.eq.s32.totalorder %s33, 1
    %p308 = por %p306, %p307
    %p310 = scmp.ne.s32.totalorder %s295, %s309
    %p311 = scmp.eq.s32.totalorder %s33, 0
    %p312 = por %p310, %p311
    %s314 = sadd.s32 %s313, 1
    %p317 = scmp.eq.s32.totalorder %s27, 1
    %p318 = scmp.ne.s32.totalorder %s313, %s315
    %p319 = scmp.eq.s32.totalorder %s27, 0
    %p320 = por %p318, %p319
    %p321 = scmp.ne.s32.totalorder %s313, %s315
    %p322 = scmp.eq.s32.totalorder %s32, 1
    %p323 = por %p321, %p322
    %p324 = scmp.ne.s32.totalorder %s315, %s316
    %p325 = scmp.eq.s32.totalorder %s32, 0
    %p326 = por %p324, %p325
    %p327 = scmp.ne.s32.totalorder %s315, %s316
    %p328 = scmp.eq.s32.totalorder %s33, 1
    %p329 = por %p327, %p328
    %p331 = scmp.ne.s32.totalorder %s316, %s330
    %p332 = scmp.eq.s32.totalorder %s33, 0
    %p333 = por %p331, %p332
    %s335 = sadd.s32 %s334, 1
    %p338 = scmp.eq.s32.totalorder %s27, 1
    %p339 = scmp.ne.s32.totalorder %s334, %s336
    %p340 = scmp.eq.s32.totalorder %s27, 0
    %p341 = por %p339, %p340
    %p342 = scmp.ne.s32.totalorder %s334, %s336
    %p343 = scmp.eq.s32.totalorder %s32, 1
    %p344 = por %p342, %p343
    %p345 = scmp.ne.s32.totalorder %s336, %s337
    %p346 = scmp.eq.s32.totalorder %s32, 0
    %p347 = por %p345, %p346
    %p348 = scmp.ne.s32.totalorder %s336, %s337
    %p349 = scmp.eq.s32.totalorder %s33, 1
    %p350 = por %p348, %p349
    %p352 = scmp.ne.s32.totalorder %s337, %s351
    %p353 = scmp.eq.s32.totalorder %s33, 0
    %p354 = por %p352, %p353
    %s356 = sadd.s32 %s355, 1
    %p359 = scmp.eq.s32.totalorder %s27, 1
    %p360 = scmp.ne.s32.totalorder %s355, %s357
    %p361 = scmp.eq.s32.totalorder %s27, 0
    %p362 = por %p360, %p361
    %p363 = scmp.ne.s32.totalorder %s355, %s357
    %p364 = scmp.eq.s32.totalorder %s32, 1
    %p365 = por %p363, %p364
    %p366 = scmp.ne.s32.totalorder %s357, %s358
    %p367 = scmp.eq.s32.totalorder %s32, 0
    %p368 = por %p366, %p367
    %p369 = scmp.ne.s32.totalorder %s357, %s358
    %p370 = scmp.eq.s32.totalorder %s33, 1
    %p371 = por %p369, %p370
    %p373 = scmp.ne.s32.totalorder %s358, %s372
    %p374 = scmp.eq.s32.totalorder %s33, 0
    %p375 = por %p373, %p374
    %s377 = sadd.s32 %s376, 1
    %p380 = scmp.eq.s32.totalorder %s27, 1
    %p381 = scmp.ne.s32.totalorder %s376, %s378
    %p382 = scmp.eq.s32.totalorder %s27, 0
    %p383 = por %p381, %p382
    %p384 = scmp.ne.s32.totalorder %s376, %s378
    %p385 = scmp.eq.s32.totalorder %s32, 1
    %p386 = por %p384, %p385
    %p387 = scmp.ne.s32.totalorder %s378, %s379
    %p388 = scmp.eq.s32.totalorder %s32, 0
    %p389 = por %p387, %p388
    %p390 = scmp.ne.s32.totalorder %s378, %s379
    %p391 = scmp.eq.s32.totalorder %s33, 1
    %p392 = por %p390, %p391
    %p394 = scmp.ne.s32.totalorder %s379, %s393
    %p395 = scmp.eq.s32.totalorder %s33, 0
    %p396 = por %p394, %p395
    %s397 = ssub.s32 %s27, %s34
    %p398 = scmp.eq.s32.totalorder %s397, 0
    %s400 = sadd.s32 %s399, 1
    %s401 = scalar_select %p398, %s399, %s400
    %p404 = pneg %p398
    %p405 = scmp.eq.s32.totalorder %s27, 1
    %p406 = por %p404, %p405
    %p407 = scmp.ne.s32.totalorder %s399, %s402
    %p408 = scmp.eq.s32.totalorder %s27, 0
    %p409 = por %p407, %p408
    %p410 = scmp.ne.s32.totalorder %s399, %s402
    %p411 = scmp.eq.s32.totalorder %s32, 1
    %p412 = por %p410, %p411
    %p413 = scmp.ne.s32.totalorder %s402, %s403
    %p414 = scmp.eq.s32.totalorder %s32, 0
    %p415 = por %p413, %p414
    %p416 = scmp.ne.s32.totalorder %s402, %s403
    %p417 = scmp.eq.s32.totalorder %s33, 1
    %p418 = por %p416, %p417
    %p420 = scmp.ne.s32.totalorder %s403, %s419
    %p421 = scmp.eq.s32.totalorder %s33, 0
    %p422 = por %p420, %p421
    %s423 = ssub.s32 %s27, %s34
    %p424 = scmp.eq.s32.totalorder %s423, 0
    %s426 = sadd.s32 %s425, 1
    %s427 = scalar_select %p424, %s425, %s426
    %p430 = pneg %p424
    %p431 = scmp.eq.s32.totalorder %s27, 1
    %p432 = por %p430, %p431
    %p433 = scmp.ne.s32.totalorder %s425, %s428
    %p434 = scmp.eq.s32.totalorder %s27, 0
    %p435 = por %p433, %p434
    %p436 = scmp.ne.s32.totalorder %s425, %s428
    %p437 = scmp.eq.s32.totalorder %s32, 1
    %p438 = por %p436, %p437
    %p439 = scmp.ne.s32.totalorder %s428, %s429
    %p440 = scmp.eq.s32.totalorder %s32, 0
    %p441 = por %p439, %p440
    %p442 = scmp.ne.s32.totalorder %s428, %s429
    %p443 = scmp.eq.s32.totalorder %s33, 1
    %p444 = por %p442, %p443
    %p446 = scmp.ne.s32.totalorder %s429, %s445
    %p447 = scmp.eq.s32.totalorder %s33, 0
    %p448 = por %p446, %p447
    %s449 = ssub.s32 %s27, %s34
    %p450 = scmp.eq.s32.totalorder %s449, 0
    %s452 = sadd.s32 %s451, 1
    %s453 = scalar_select %p450, %s451, %s452
    %p456 = pneg %p450
    %p457 = scmp.eq.s32.totalorder %s27, 1
    %p458 = por %p456, %p457
    %p459 = scmp.ne.s32.totalorder %s451, %s454
    %p460 = scmp.eq.s32.totalorder %s27, 0
    %p461 = por %p459, %p460
    %p462 = scmp.ne.s32.totalorder %s451, %s454
    %p463 = scmp.eq.s32.totalorder %s32, 1
    %p464 = por %p462, %p463
    %p465 = scmp.ne.s32.totalorder %s454, %s455
    %p466 = scmp.eq.s32.totalorder %s32, 0
    %p467 = por %p465, %p466
    %p468 = scmp.ne.s32.totalorder %s454, %s455
    %p469 = scmp.eq.s32.totalorder %s33, 1
    %p470 = por %p468, %p469
    %p472 = scmp.ne.s32.totalorder %s455, %s471
    %p473 = scmp.eq.s32.totalorder %s33, 0
    %p474 = por %p472, %p473
    %s475 = ssub.s32 %s27, %s34
    %p476 = scmp.eq.s32.totalorder %s475, 0
    %s478 = sadd.s32 %s477, 1
    %s479 = scalar_select %p476, %s477, %s478
    %p482 = pneg %p476
    %p483 = scmp.eq.s32.totalorder %s27, 1
    %p484 = por %p482, %p483
    %p485 = scmp.ne.s32.totalorder %s477, %s480
    %p486 = scmp.eq.s32.totalorder %s27, 0
    %p487 = por %p485, %p486
    %p488 = scmp.ne.s32.totalorder %s477, %s480
    %p489 = scmp.eq.s32.totalorder %s32, 1
    %p490 = por %p488, %p489
    %p491 = scmp.ne.s32.totalorder %s480, %s481
    %p492 = scmp.eq.s32.totalorder %s32, 0
    %p493 = por %p491, %p492
    %p494 = scmp.ne.s32.totalorder %s480, %s481
    %p495 = scmp.eq.s32.totalorder %s33, 1
    %p496 = por %p494, %p495
    %p498 = scmp.ne.s32.totalorder %s481, %s497
    %p499 = scmp.eq.s32.totalorder %s33, 0
    %p500 = por %p498, %p499
    %p501 = scmp.le.s32.totalorder 1, %s27
    %p502 = scmp.lt.s32.totalorder %s27, 3
    %p503 = pnand %p501, %p502
    %p504 = pneg %p503
    // Predicated region
    $region9: #{tpu_custom_call.1} parent=5 // pred_check
      _
    $region10: #{tpu_custom_call.1} parent=5 // pred_check_branch
      %506 = sbr.rel (%p503) target = $region12
    $region11: #{tpu_custom_call.1} parent=5 // pred_region
      %s507 = ssub.s32 %s27, 1
      // Predicated region
      $region13: #{tpu_custom_call.1} parent=11 // pred_check
        %p508 = pneg %p74
      $region14: #{tpu_custom_call.1} parent=11 // pred_check_branch
        %510 = sbr.rel (%p508) target = $region16
      $region15: #{tpu_custom_call.1} parent=11 // pred_region
        _
      $region16: #{tpu_custom_call.1} parent=11 // pred_fallthru
        _
      // Predicated region
      $region17: #{tpu_custom_call.1} parent=11 // pred_check
        %p511 = pneg %p95
      $region18: #{tpu_custom_call.1} parent=11 // pred_check_branch
        %513 = sbr.rel (%p511) target = $region20
      $region19: #{tpu_custom_call.1} parent=11 // pred_region
        _
      $region20: #{tpu_custom_call.1} parent=11 // pred_fallthru
        _
      // Predicated region
      $region21: #{tpu_custom_call.1} parent=11 // pred_check
        %p514 = pneg %p116
      $region22: #{tpu_custom_call.1} parent=11 // pred_check_branch
        %516 = sbr.rel (%p514) target = $region24
      $region23: #{tpu_custom_call.1} parent=11 // pred_region
        _
      $region24: #{tpu_custom_call.1} parent=11 // pred_fallthru
        _
      // Predicated region
      $region25: #{tpu_custom_call.1} parent=11 // pred_check
        %p517 = pneg %p137
      $region26: #{tpu_custom_call.1} parent=11 // pred_check_branch
        %519 = sbr.rel (%p517) target = $region28
      $region27: #{tpu_custom_call.1} parent=11 // pred_region
        _
      $region28: #{tpu_custom_call.1} parent=11 // pred_fallthru
        _
      // Predicated region
      $region29: #{tpu_custom_call.1} parent=11 // pred_check
        %p520 = pneg %p158
      $region30: #{tpu_custom_call.1} parent=11 // pred_check_branch
        %522 = sbr.rel (%p520) target = $region32
      $region31: #{tpu_custom_call.1} parent=11 // pred_region
        _
      $region32: #{tpu_custom_call.1} parent=11 // pred_fallthru
        _
      // Predicated region
      $region33: #{tpu_custom_call.1} parent=11 // pred_check
        %p523 = pneg %p179
      $region34: #{tpu_custom_call.1} parent=11 // pred_check_branch
        %525 = sbr.rel (%p523) target = $region36
      $region35: #{tpu_custom_call.1} parent=11 // pred_region
        _
      $region36: #{tpu_custom_call.1} parent=11 // pred_fallthru
        _
      // Predicated region
      $region37: #{tpu_custom_call.1} parent=11 // pred_check
        %p526 = pneg %p200
      $region38: #{tpu_custom_call.1} parent=11 // pred_check_branch
        %528 = sbr.rel (%p526) target = $region40
      $region39: #{tpu_custom_call.1} parent=11 // pred_region
        _
      $region40: #{tpu_custom_call.1} parent=11 // pred_fallthru
        _
      // Predicated region
      $region41: #{tpu_custom_call.1} parent=11 // pred_check
        %p529 = pneg %p221
      $region42: #{tpu_custom_call.1} parent=11 // pred_check_branch
        %531 = sbr.rel (%p529) target = $region44
      $region43: #{tpu_custom_call.1} parent=11 // pred_region
        _
      $region44: #{tpu_custom_call.1} parent=11 // pred_fallthru
        _
      // Predicated region
      $region45: #{tpu_custom_call.1} parent=11 // pred_check
        %p532 = pneg %p242
      $region46: #{tpu_custom_call.1} parent=11 // pred_check_branch
        %534 = sbr.rel (%p532) target = $region48
      $region47: #{tpu_custom_call.1} parent=11 // pred_region
        _
      $region48: #{tpu_custom_call.1} parent=11 // pred_fallthru
        _
      // Predicated region
      $region49: #{tpu_custom_call.1} parent=11 // pred_check
        %p535 = pneg %p263
      $region50: #{tpu_custom_call.1} parent=11 // pred_check_branch
        %537 = sbr.rel (%p535) target = $region52
      $region51: #{tpu_custom_call.1} parent=11 // pred_region
        _
      $region52: #{tpu_custom_call.1} parent=11 // pred_fallthru
        _
      // Predicated region
      $region53: #{tpu_custom_call.1} parent=11 // pred_check
        %p538 = pneg %p284
      $region54: #{tpu_custom_call.1} parent=11 // pred_check_branch
        %540 = sbr.rel (%p538) target = $region56
      $region55: #{tpu_custom_call.1} parent=11 // pred_region
        _
      $region56: #{tpu_custom_call.1} parent=11 // pred_fallthru
        _
      // Predicated region
      $region57: #{tpu_custom_call.1} parent=11 // pred_check
        %p541 = pneg %p305
      $region58: #{tpu_custom_call.1} parent=11 // pred_check_branch
        %543 = sbr.rel (%p541) target = $region60
      $region59: #{tpu_custom_call.1} parent=11 // pred_region
        _
      $region60: #{tpu_custom_call.1} parent=11 // pred_fallthru
        _
      // Predicated region
      $region61: #{tpu_custom_call.1} parent=11 // pred_check
        %p544 = pneg %p326
      $region62: #{tpu_custom_call.1} parent=11 // pred_check_branch
        %546 = sbr.rel (%p544) target = $region64
      $region63: #{tpu_custom_call.1} parent=11 // pred_region
        _
      $region64: #{tpu_custom_call.1} parent=11 // pred_fallthru
        _
      // Predicated region
      $region65: #{tpu_custom_call.1} parent=11 // pred_check
        %p547 = pneg %p347
      $region66: #{tpu_custom_call.1} parent=11 // pred_check_branch
        %549 = sbr.rel (%p547) target = $region68
      $region67: #{tpu_custom_call.1} parent=11 // pred_region
        _
      $region68: #{tpu_custom_call.1} parent=11 // pred_fallthru
        _
      // Predicated region
      $region69: #{tpu_custom_call.1} parent=11 // pred_check
        %p550 = pneg %p368
      $region70: #{tpu_custom_call.1} parent=11 // pred_check_branch
        %552 = sbr.rel (%p550) target = $region72
      $region71: #{tpu_custom_call.1} parent=11 // pred_region
        _
      $region72: #{tpu_custom_call.1} parent=11 // pred_fallthru
        _
      // Predicated region
      $region73: #{tpu_custom_call.1} parent=11 // pred_check
        %p553 = pneg %p389
      $region74: #{tpu_custom_call.1} parent=11 // pred_check_branch
        %555 = sbr.rel (%p553) target = $region76
      $region75: #{tpu_custom_call.1} parent=11 // pred_region
        _
      $region76: #{tpu_custom_call.1} parent=11 // pred_fallthru
        _
    $region12: #{tpu_custom_call.1} parent=5 // pred_fallthru
      _
    %p556 = scmp.lt.s32.totalorder %s27, 2
    // Predicated region
    $region77: #{tpu_custom_call.1} parent=5 // pred_check
      %p557 = pneg %p556
    $region78: #{tpu_custom_call.1} parent=5 // pred_check_branch
      %559 = sbr.rel (%p557) target = $region80
    $region79: #{tpu_custom_call.1} parent=5 // pred_region
      // Predicated region
      $region81: #{tpu_custom_call.1} parent=79 // pred_check
        %p560 = pneg %p47
      $region82: #{tpu_custom_call.1} parent=79 // pred_check_branch
        %562 = sbr.rel (%p560) target = $region84
      $region83: #{tpu_custom_call.1} parent=79 // pred_region
        %p563 = scmp.lt.s32.totalorder %s27, 1
        %s564 = scalar_select %p563, %s27, 1
        %s565 = smul.addr %s564, 4
        %s566 = smul.addr %s565, 8
        %s567 = scalar_lea.vmem %s0, %s566
      $region84: #{tpu_custom_call.1} parent=79 // pred_fallthru
        _
    $region80: #{tpu_custom_call.1} parent=5 // pred_fallthru
      _
    %p568 = scmp.le.s32.totalorder 1, %s27
    %p569 = scmp.lt.s32.totalorder %s27, 3
    %p570 = pnand %p568, %p569
    %p571 = pneg %p570
    // Predicated region
    $region85: #{tpu_custom_call.1} parent=5 // pred_check
      _
    $region86: #{tpu_custom_call.1} parent=5 // pred_check_branch
      %573 = sbr.rel (%p570) target = $region88
    $region87: #{tpu_custom_call.1} parent=5 // pred_region
      %s574 = ssub.s32 %s27, 1
      %p575 = scmp.lt.s32.totalorder %s32, 1
      %s576 = scalar_select %p575, %s32, 1
      %s577 = smul.addr %s576, 4
      %s578 = smul.addr %s577, 8
      %s579 = scalar_lea.vmem %s0, %s578
      %p580 = pneg %p53
      %p581 = pneg %p50
      %p582 = pneg %p74
      %p583 = pneg %p71
      %p584 = pneg %p95
      %p585 = pneg %p92
      %p586 = pneg %p116
      %p587 = pneg %p113
      %p588 = pneg %p137
      %p589 = pneg %p134
      %p590 = pneg %p158
      %p591 = pneg %p155
      %p592 = pneg %p179
      %p593 = pneg %p176
      %p594 = pneg %p200
      %p595 = pneg %p197
      %p596 = pneg %p221
      %p597 = pneg %p218
      %p598 = pneg %p242
      %p599 = pneg %p239
      %p600 = pneg %p263
      %p601 = pneg %p260
      %p602 = pneg %p284
      %p603 = pneg %p281
      %p604 = pneg %p305
      %p605 = pneg %p302
      %p606 = pneg %p326
      %p607 = pneg %p323
      %p608 = pneg %p347
      %p609 = pneg %p344
      %p610 = pneg %p368
      %p611 = pneg %p365
      %p612 = pneg %p389
      %p613 = pneg %p386
      %p614 = pneg %p415
      %p615 = pneg %p412
      %p616 = scmp.lt.s32.totalorder %s32, 1
      %s617 = scalar_select %p616, %s32, 1
      %s618 = smul.addr %s617, 8
      %s619 = scalar_lea.vmem %s17, %s618
      %p620 = pneg %p441
      %p621 = pneg %p438
      %p622 = scmp.lt.s32.totalorder %s32, 1
      %s623 = scalar_select %p622, %s32, 1
      %s624 = smul.addr %s623, 8
      %s625 = scalar_lea.vmem %s18, %s624
      %p626 = pneg %p467
      %p627 = pneg %p464
      %p628 = scmp.lt.s32.totalorder %s32, 1
      %s629 = scalar_select %p628, %s32, 1
      %s630 = smul.addr %s629, 8
      %s631 = scalar_lea.vmem %s19, %s630
      %p632 = pneg %p493
      %p633 = pneg %p490
      %p634 = scmp.lt.s32.totalorder %s32, 1
      %s635 = scalar_select %p634, %s32, 1
      %s636 = smul.addr %s635, 8
      %s637 = scalar_lea.vmem %s20, %s636
      %p638 = scmp.lt.s32.totalorder %s32, 1
      %s639 = scalar_select %p638, %s32, 1
      %s640 = smul.addr %s639, 4
      %s641 = smul.addr %s640, 8
      %s642 = scalar_lea.vmem %s0, %s641
      %p643 = scmp.lt.s32.totalorder %s32, 1
      %s644 = scalar_select %p643, %s32, 1
      %s645 = smul.addr %s644, 8
      %s646 = scalar_lea.vmem %s17, %s645
      %p647 = scmp.lt.s32.totalorder %s32, 1
      %s648 = scalar_select %p647, %s32, 1
      %s649 = smul.addr %s648, 8
      %s650 = scalar_lea.vmem %s18, %s649
      %p651 = scmp.lt.s32.totalorder %s32, 1
      %s652 = scalar_select %p651, %s32, 1
      %s653 = smul.addr %s652, 8
      %s654 = scalar_lea.vmem %s19, %s653
      %p655 = scmp.lt.s32.totalorder %s32, 1
      %s656 = scalar_select %p655, %s32, 1
      %s657 = smul.addr %s656, 8
      %s658 = scalar_lea.vmem %s20, %s657
      %v659 = vld [vmem:[%s642] sm:$0xff]
      %v660 = vld [vmem:[%s642 + $0x8] sm:$0xff]
      %v661 = vld [vmem:[%s642 + $0x10] sm:$0xff]
      %v662 = vld [vmem:[%s642 + $0x18] sm:$0xff]
      %v663 = vld [vmem:[%s1] sm:$0xff]
      %v664 = vld [vmem:[%s1 + $0x8] sm:$0xff]
      %v665 = vld [vmem:[%s1 + $0x10] sm:$0xff]
      %v666 = vld [vmem:[%s1 + $0x18] sm:$0xff]
      %v667 = vld [vmem:[%s1 + $0x20] sm:$0xff]
      %v668 = vld [vmem:[%s1 + $0x28] sm:$0xff]
      %v669 = vld [vmem:[%s1 + $0x30] sm:$0xff]
      %v670 = vld [vmem:[%s1 + $0x38] sm:$0xff]
      %s671 = scalar_lea.vmem %s1, 64
      %v672 = vld [vmem:[%s671] sm:$0xff]
      %v673 = vld [vmem:[%s671 + $0x8] sm:$0xff]
      %v674 = vld [vmem:[%s671 + $0x10] sm:$0xff]
      %v675 = vld [vmem:[%s671 + $0x18] sm:$0xff]
      %v676 = vld [vmem:[%s671 + $0x20] sm:$0xff]
      %v677 = vld [vmem:[%s671 + $0x28] sm:$0xff]
      %v678 = vld [vmem:[%s671 + $0x30] sm:$0xff]
      %v679 = vld [vmem:[%s671 + $0x38] sm:$0xff]
      %vm684 = vcmask 1046528
      %v685 = vrot.slane %v659, 1
      %v686 = vrot.slane %v660, 1
      %v687 = vsel %vm684, %v685, %v686
      %v688 = vrot.slane %v661, 1
      %v689 = vsel %vm684, %v686, %v688
      %v690 = vrot.slane %v662, 1
      %v691 = vsel %vm684, %v688, %v690
      %vm692 = vcmask 523264
      %v693 = vsel %vm692, %v687, 0
      %v695 = vsel %vm692, %v689, 0
      %v697 = vsel %vm692, %v691, 0
      %v699 = vsel %vm692, %v690, 0
      %701 = vmatprep.subr.mxu0 0.0
      %702 = vmatpush1.msra.mxu0 %v672
      %703 = vmatprep.subr.mxu0 0.0
      %704 = vmatpush1.msra.mxu0 %v673
      %705 = vmatprep.subr.mxu0 0.0
      %706 = vmatpush1.msra.mxu0 %v674
      %707 = vmatprep.subr.mxu0 0.0
      %708 = vmatpush1.msra.mxu0 %v675
      %709 = vmatprep.subr.mxu0 0.0
      %710 = vmatpush1.msra.mxu0 %v676
      %711 = vmatprep.subr.mxu0 0.0
      %712 = vmatpush1.msra.mxu0 %v677
      %713 = vmatprep.subr.mxu0 0.0
      %714 = vmatpush1.msra.mxu0 %v678
      %715 = vmatprep.subr.mxu0 0.0
      %716 = vmatpush1.msra.mxu0 %v679
      %717 = vmatprep.subr.mxu0 0.0
      %718 = vmatpush1.msra.mxu0 0.0
      %719 = vmatprep.subr.mxu0 0.0
      %720 = vmatpush1.msra.mxu0 0.0
      %721 = vmatprep.subr.mxu0 0.0
      %722 = vmatpush1.msra.mxu0 0.0
      %723 = vmatprep.subr.mxu0 0.0
      %724 = vmatpush1.msra.mxu0 0.0
      %725 = vmatprep.subr.mxu0 0.0
      %726 = vmatpush1.msra.mxu0 0.0
      %727 = vmatprep.subr.mxu0 0.0
      %728 = vmatpush1.msra.mxu0 0.0
      %729 = vmatprep.subr.mxu0 0.0
      %730 = vmatpush1.msra.mxu0 0.0
      %731 = vmatprep.subr.mxu0 0.0
      %732 = vmatpush1.msra.mxu0 0.0
      %733 = vmatprep.subr.mxu0 0.0
      %734 = vmatpush1.msra.mxu0 0.0
      %735 = vmatprep.subr.mxu0 0.0
      %736 = vmatpush1.msra.mxu0 0.0
      %737 = vmatprep.subr.mxu0 0.0
      %738 = vmatpush1.msra.mxu0 0.0
      %739 = vmatprep.subr.mxu0 0.0
      %740 = vmatpush1.msra.mxu0 0.0
      %741 = vmatprep.subr.mxu0 0.0
      %742 = vmatpush1.msra.mxu0 0.0
      %743 = vmatprep.subr.mxu0 0.0
      %744 = vmatpush1.msra.mxu0 0.0
      %745 = vmatprep.subr.mxu0 0.0
      %746 = vmatpush1.msra.mxu0 0.0
      %747 = vmatprep.subr.mxu0 0.0
      %748 = vmatpush1.msra.mxu0 0.0
      %749 = vmatprep.subr.mxu0 0.0
      %750 = vmatpush1.msra.mxu0 0.0
      %751 = vmatprep.subr.mxu0 0.0
      %752 = vmatpush1.msra.mxu0 0.0
      %753 = vmatprep.subr.mxu0 0.0
      %754 = vmatpush1.msra.mxu0 0.0
      %755 = vmatprep.subr.mxu0 0.0
      %756 = vmatpush1.msra.mxu0 0.0
      %757 = vmatprep.subr.mxu0 0.0
      %758 = vmatpush1.msra.mxu0 0.0
      %759 = vmatprep.subr.mxu0 0.0
      %760 = vmatpush1.msra.mxu0 0.0
      %761 = vmatprep.subr.mxu0 0.0
      %762 = vmatpush1.msra.mxu0 0.0
      %763 = vmatprep.subr.mxu0 0.0
      %764 = vmatpush1.msra.mxu0 0.0
      %765 = vmatprep.mubr.f32.mxu0 0.0
      %766 = vmatmul.mubr.f32.gmra.mrb[0].mxu0 %v693
      %v767 = vpop.f32.mrb[0].mxu0
      %v768 = vadd.f32 0.0, %v767
      %v769 = vpop.f32.mrb[0].mxu0
      %770 = vmatprep.mubr.f32.mxu0 0.0
      %771 = vmatmul.mubr.f32.gmra.mrb[0].mxu0 %v695
      %v772 = vpop.f32.mrb[0].mxu0
      %v773 = vadd.f32 0.0, %v772
      %v774 = vpop.f32.mrb[0].mxu0
      %775 = vmatprep.mubr.f32.mxu0 0.0
      %776 = vmatmul.mubr.f32.gmra.mrb[0].mxu0 %v697
      %v777 = vpop.f32.mrb[0].mxu0
      %v778 = vadd.f32 0.0, %v777
      %v779 = vpop.f32.mrb[0].mxu0
      %780 = vmatprep.mubr.f32.mxu0 0.0
      %781 = vmatmul.mubr.f32.gmra.mrb[0].mxu0 %v699
      %v782 = vpop.f32.mrb[0].mxu0
      %v783 = vadd.f32 0.0, %v782
      %v784 = vpop.f32.mrb[0].mxu0
      %785 = vdwg.mxu0
      %v786 = vsel %vm692, %v659, 0
      %v788 = vsel %vm692, %v660, 0
      %v790 = vsel %vm692, %v661, 0
      %v792 = vsel %vm692, %v662, 0
      %794 = vmatprep.subr.mxu0 0.0
      %795 = vmatpush1.msra.mxu0 %v663
      %796 = vmatprep.subr.mxu0 0.0
      %797 = vmatpush1.msra.mxu0 %v664
      %798 = vmatprep.subr.mxu0 0.0
      %799 = vmatpush1.msra.mxu0 %v665
      %800 = vmatprep.subr.mxu0 0.0
      %801 = vmatpush1.msra.mxu0 %v666
      %802 = vmatprep.subr.mxu0 0.0
      %803 = vmatpush1.msra.mxu0 %v667
      %804 = vmatprep.subr.mxu0 0.0
      %805 = vmatpush1.msra.mxu0 %v668
      %806 = vmatprep.subr.mxu0 0.0
      %807 = vmatpush1.msra.mxu0 %v669
      %808 = vmatprep.subr.mxu0 0.0
      %809 = vmatpush1.msra.mxu0 %v670
      %810 = vmatprep.subr.mxu0 0.0
      %811 = vmatpush1.msra.mxu0 0.0
      %812 = vmatprep.subr.mxu0 0.0
      %813 = vmatpush1.msra.mxu0 0.0
      %814 = vmatprep.subr.mxu0 0.0
      %815 = vmatpush1.msra.mxu0 0.0
      %816 = vmatprep.subr.mxu0 0.0
      %817 = vmatpush1.msra.mxu0 0.0
      %818 = vmatprep.subr.mxu0 0.0
      %819 = vmatpush1.msra.mxu0 0.0
      %820 = vmatprep.subr.mxu0 0.0
      %821 = vmatpush1.msra.mxu0 0.0
      %822 = vmatprep.subr.mxu0 0.0
      %823 = vmatpush1.msra.mxu0 0.0
      %824 = vmatprep.subr.mxu0 0.0
      %825 = vmatpush1.msra.mxu0 0.0
      %826 = vmatprep.subr.mxu0 0.0
      %827 = vmatpush1.msra.mxu0 0.0
      %828 = vmatprep.subr.mxu0 0.0
      %829 = vmatpush1.msra.mxu0 0.0
      %830 = vmatprep.subr.mxu0 0.0
      %831 = vmatpush1.msra.mxu0 0.0
      %832 = vmatprep.subr.mxu0 0.0
      %833 = vmatpush1.msra.mxu0 0.0
      %834 = vmatprep.subr.mxu0 0.0
      %835 = vmatpush1.msra.mxu0 0.0
      %836 = vmatprep.subr.mxu0 0.0
      %837 = vmatpush1.msra.mxu0 0.0
      %838 = vmatprep.subr.mxu0 0.0
      %839 = vmatpush1.msra.mxu0 0.0
      %840 = vmatprep.subr.mxu0 0.0
      %841 = vmatpush1.msra.mxu0 0.0
      %842 = vmatprep.subr.mxu0 0.0
      %843 = vmatpush1.msra.mxu0 0.0
      %844 = vmatprep.subr.mxu0 0.0
      %845 = vmatpush1.msra.mxu0 0.0
      %846 = vmatprep.subr.mxu0 0.0
      %847 = vmatpush1.msra.mxu0 0.0
      %848 = vmatprep.subr.mxu0 0.0
      %849 = vmatpush1.msra.mxu0 0.0
      %850 = vmatprep.subr.mxu0 0.0
      %851 = vmatpush1.msra.mxu0 0.0
      %852 = vmatprep.subr.mxu0 0.0
      %853 = vmatpush1.msra.mxu0 0.0
      %854 = vmatprep.subr.mxu0 0.0
      %855 = vmatpush1.msra.mxu0 0.0
      %856 = vmatprep.subr.mxu0 0.0
      %857 = vmatpush1.msra.mxu0 0.0
      %858 = vmatprep.mubr.f32.mxu0 0.0
      %859 = vmatmul.mubr.f32.gmra.mrb[0].mxu0 %v786
      %v860 = vpop.f32.mrb[0].mxu0
      %v861 = vadd.f32 %v768, %v860
      %v862 = vpop.f32.mrb[0].mxu0
      %863 = vmatprep.mubr.f32.mxu0 0.0
      %864 = vmatmul.mubr.f32.gmra.mrb[0].mxu0 %v788
      %v865 = vpop.f32.mrb[0].mxu0
      %v866 = vadd.f32 %v773, %v865
      %v867 = vpop.f32.mrb[0].mxu0
      %868 = vmatprep.mubr.f32.mxu0 0.0
      %869 = vmatmul.mubr.f32.gmra.mrb[0].mxu0 %v790
      %v870 = vpop.f32.mrb[0].mxu0
      %v871 = vadd.f32 %v778, %v870
      %v872 = vpop.f32.mrb[0].mxu0
      %873 = vmatprep.mubr.f32.mxu0 0.0
      %874 = vmatmul.mubr.f32.gmra.mrb[0].mxu0 %v792
      %v875 = vpop.f32.mrb[0].mxu0
      %v876 = vadd.f32 %v783, %v875
      %v877 = vpop.f32.mrb[0].mxu0
      %878 = vdwg.mxu0
      %s879 = scalar_lea.vmem %s1, 128
      %v880 = vld [vmem:[%s879] sm:$0xff]
      %v881 = vld [vmem:[%s879 + $0x8] sm:$0xff]
      %v882 = vld [vmem:[%s879 + $0x10] sm:$0xff]
      %v883 = vld [vmem:[%s879 + $0x18] sm:$0xff]
      %v884 = vld [vmem:[%s879 + $0x20] sm:$0xff]
      %v885 = vld [vmem:[%s879 + $0x28] sm:$0xff]
      %v886 = vld [vmem:[%s879 + $0x30] sm:$0xff]
      %v887 = vld [vmem:[%s879 + $0x38] sm:$0xff]
      %vm888 = vcmask 1045504
      %v889 = vrot.slane %v659, 2
      %v890 = vrot.slane %v660, 2
      %v891 = vsel %vm888, %v889, %v890
      %v892 = vrot.slane %v661, 2
      %v893 = vsel %vm888, %v890, %v892
      %v894 = vrot.slane %v662, 2
      %v895 = vsel %vm888, %v892, %v894
      %v896 = vsel %vm692, %v891, 0
      %v898 = vsel %vm692, %v893, 0
      %v900 = vsel %vm692, %v895, 0
      %v902 = vsel %vm692, %v894, 0
      %904 = vmatprep.subr.mxu0 0.0
      %905 = vmatpush1.msra.mxu0 %v880
      %906 = vmatprep.subr.mxu0 0.0
      %907 = vmatpush1.msra.mxu0 %v881
      %908 = vmatprep.subr.mxu0 0.0
      %909 = vmatpush1.msra.mxu0 %v882
      %910 = vmatprep.subr.mxu0 0.0
      %911 = vmatpush1.msra.mxu0 %v883
      %912 = vmatprep.subr.mxu0 0.0
      %913 = vmatpush1.msra.mxu0 %v884
      %914 = vmatprep.subr.mxu0 0.0
      %915 = vmatpush1.msra.mxu0 %v885
      %916 = vmatprep.subr.mxu0 0.0
      %917 = vmatpush1.msra.mxu0 %v886
      %918 = vmatprep.subr.mxu0 0.0
      %919 = vmatpush1.msra.mxu0 %v887
      %920 = vmatprep.subr.mxu0 0.0
      %921 = vmatpush1.msra.mxu0 0.0
      %922 = vmatprep.subr.mxu0 0.0
      %923 = vmatpush1.msra.mxu0 0.0
      %924 = vmatprep.subr.mxu0 0.0
      %925 = vmatpush1.msra.mxu0 0.0
      %926 = vmatprep.subr.mxu0 0.0
      %927 = vmatpush1.msra.mxu0 0.0
      %928 = vmatprep.subr.mxu0 0.0
      %929 = vmatpush1.msra.mxu0 0.0
      %930 = vmatprep.subr.mxu0 0.0
      %931 = vmatpush1.msra.mxu0 0.0
      %932 = vmatprep.subr.mxu0 0.0
      %933 = vmatpush1.msra.mxu0 0.0
      %934 = vmatprep.subr.mxu0 0.0
      %935 = vmatpush1.msra.mxu0 0.0
      %936 = vmatprep.subr.mxu0 0.0
      %937 = vmatpush1.msra.mxu0 0.0
      %938 = vmatprep.subr.mxu0 0.0
      %939 = vmatpush1.msra.mxu0 0.0
      %940 = vmatprep.subr.mxu0 0.0
      %941 = vmatpush1.msra.mxu0 0.0
      %942 = vmatprep.subr.mxu0 0.0
      %943 = vmatpush1.msra.mxu0 0.0
      %944 = vmatprep.subr.mxu0 0.0
      %945 = vmatpush1.msra.mxu0 0.0
      %946 = vmatprep.subr.mxu0 0.0
      %947 = vmatpush1.msra.mxu0 0.0
      %948 = vmatprep.subr.mxu0 0.0
      %949 = vmatpush1.msra.mxu0 0.0
      %950 = vmatprep.subr.mxu0 0.0
      %951 = vmatpush1.msra.mxu0 0.0
      %952 = vmatprep.subr.mxu0 0.0
      %953 = vmatpush1.msra.mxu0 0.0
      %954 = vmatprep.subr.mxu0 0.0
      %955 = vmatpush1.msra.mxu0 0.0
      %956 = vmatprep.subr.mxu0 0.0
      %957 = vmatpush1.msra.mxu0 0.0
      %958 = vmatprep.subr.mxu0 0.0
      %959 = vmatpush1.msra.mxu0 0.0
      %960 = vmatprep.subr.mxu0 0.0
      %961 = vmatpush1.msra.mxu0 0.0
      %962 = vmatprep.subr.mxu0 0.0
      %963 = vmatpush1.msra.mxu0 0.0
      %964 = vmatprep.subr.mxu0 0.0
      %965 = vmatpush1.msra.mxu0 0.0
      %966 = vmatprep.subr.mxu0 0.0
      %967 = vmatpush1.msra.mxu0 0.0
      %968 = vmatprep.mubr.f32.mxu0 0.0
      %969 = vmatmul.mubr.f32.gmra.mrb[0].mxu0 %v896
      %v970 = vpop.f32.mrb[0].mxu0
      %v971 = vadd.f32 0.0, %v970
      %v972 = vpop.f32.mrb[0].mxu0
      %973 = vmatprep.mubr.f32.mxu0 0.0
      %974 = vmatmul.mubr.f32.gmra.mrb[0].mxu0 %v898
      %v975 = vpop.f32.mrb[0].mxu0
      %v976 = vadd.f32 0.0, %v975
      %v977 = vpop.f32.mrb[0].mxu0
      %978 = vmatprep.mubr.f32.mxu0 0.0
      %979 = vmatmul.mubr.f32.gmra.mrb[0].mxu0 %v900
      %v980 = vpop.f32.mrb[0].mxu0
      %v981 = vadd.f32 0.0, %v980
      %v982 = vpop.f32.mrb[0].mxu0
      %983 = vmatprep.mubr.f32.mxu0 0.0
      %984 = vmatmul.mubr.f32.gmra.mrb[0].mxu0 %v902
      %v985 = vpop.f32.mrb[0].mxu0
      %v986 = vadd.f32 0.0, %v985
      %v987 = vpop.f32.mrb[0].mxu0
      %988 = vdwg.mxu0
      %v989 = vadd.f32 %v861, %v971
      %v990 = vadd.f32 %v866, %v976
      %v991 = vadd.f32 %v871, %v981
      %v992 = vadd.f32 %v876, %v986
      %s993 = scalar_lea.vmem %s1, 192
      %v994 = vld [vmem:[%s993] sm:$0xff]
      %v995 = vld [vmem:[%s993 + $0x8] sm:$0xff]
      %v996 = vld [vmem:[%s993 + $0x10] sm:$0xff]
      %v997 = vld [vmem:[%s993 + $0x18] sm:$0xff]
      %v998 = vld [vmem:[%s993 + $0x20] sm:$0xff]
      %v999 = vld [vmem:[%s993 + $0x28] sm:$0xff]
      %v1000 = vld [vmem:[%s993 + $0x30] sm:$0xff]
      %v1001 = vld [vmem:[%s993 + $0x38] sm:$0xff]
      %vm1002 = vcmask 1044480
      %v1003 = vrot.slane %v659, 3
      %v1004 = vrot.slane %v660, 3
      %v1005 = vsel %vm1002, %v1003, %v1004
      %v1006 = vrot.slane %v661, 3
      %v1007 = vsel %vm1002, %v1004, %v1006
      %v1008 = vrot.slane %v662, 3
      %v1009 = vsel %vm1002, %v1006, %v1008
      %v1010 = vsel %vm692, %v1005, 0
      %v1012 = vsel %vm692, %v1007, 0
      %v1014 = vsel %vm692, %v1009, 0
      %v1016 = vsel %vm692, %v1008, 0
      %1018 = vmatprep.subr.mxu0 0.0
      %1019 = vmatpush1.msra.mxu0 %v994
      %1020 = vmatprep.subr.mxu0 0.0
      %1021 = vmatpush1.msra.mxu0 %v995
      %1022 = vmatprep.subr.mxu0 0.0
      %1023 = vmatpush1.msra.mxu0 %v996
      %1024 = vmatprep.subr.mxu0 0.0
      %1025 = vmatpush1.msra.mxu0 %v997
      %1026 = vmatprep.subr.mxu0 0.0
      %1027 = vmatpush1.msra.mxu0 %v998
      %1028 = vmatprep.subr.mxu0 0.0
      %1029 = vmatpush1.msra.mxu0 %v999
      %1030 = vmatprep.subr.mxu0 0.0
      %1031 = vmatpush1.msra.mxu0 %v1000
      %1032 = vmatprep.subr.mxu0 0.0
      %1033 = vmatpush1.msra.mxu0 %v1001
      %1034 = vmatprep.subr.mxu0 0.0
      %1035 = vmatpush1.msra.mxu0 0.0
      %1036 = vmatprep.subr.mxu0 0.0
      %1037 = vmatpush1.msra.mxu0 0.0
      %1038 = vmatprep.subr.mxu0 0.0
      %1039 = vmatpush1.msra.mxu0 0.0
      %1040 = vmatprep.subr.mxu0 0.0
      %1041 = vmatpush1.msra.mxu0 0.0
      %1042 = vmatprep.subr.mxu0 0.0
      %1043 = vmatpush1.msra.mxu0 0.0
      %1044 = vmatprep.subr.mxu0 0.0
      %1045 = vmatpush1.msra.mxu0 0.0
      %1046 = vmatprep.subr.mxu0 0.0
      %1047 = vmatpush1.msra.mxu0 0.0
      %1048 = vmatprep.subr.mxu0 0.0
      %1049 = vmatpush1.msra.mxu0 0.0
      %1050 = vmatprep.subr.mxu0 0.0
      %1051 = vmatpush1.msra.mxu0 0.0
      %1052 = vmatprep.subr.mxu0 0.0
      %1053 = vmatpush1.msra.mxu0 0.0
      %1054 = vmatprep.subr.mxu0 0.0
      %1055 = vmatpush1.msra.mxu0 0.0
      %1056 = vmatprep.subr.mxu0 0.0
      %1057 = vmatpush1.msra.mxu0 0.0
      %1058 = vmatprep.subr.mxu0 0.0
      %1059 = vmatpush1.msra.mxu0 0.0
      %1060 = vmatprep.subr.mxu0 0.0
      %1061 = vmatpush1.msra.mxu0 0.0
      %1062 = vmatprep.subr.mxu0 0.0
      %1063 = vmatpush1.msra.mxu0 0.0
      %1064 = vmatprep.subr.mxu0 0.0
      %1065 = vmatpush1.msra.mxu0 0.0
      %1066 = vmatprep.subr.mxu0 0.0
      %1067 = vmatpush1.msra.mxu0 0.0
      %1068 = vmatprep.subr.mxu0 0.0
      %1069 = vmatpush1.msra.mxu0 0.0
      %1070 = vmatprep.subr.mxu0 0.0
      %1071 = vmatpush1.msra.mxu0 0.0
      %1072 = vmatprep.subr.mxu0 0.0
      %1073 = vmatpush1.msra.mxu0 0.0
      %1074 = vmatprep.subr.mxu0 0.0
      %1075 = vmatpush1.msra.mxu0 0.0
      %1076 = vmatprep.subr.mxu0 0.0
      %1077 = vmatpush1.msra.mxu0 0.0
      %1078 = vmatprep.subr.mxu0 0.0
      %1079 = vmatpush1.msra.mxu0 0.0
      %1080 = vmatprep.subr.mxu0 0.0
      %1081 = vmatpush1.msra.mxu0 0.0
      %1082 = vmatprep.mubr.f32.mxu0 0.0
      %1083 = vmatmul.mubr.f32.gmra.mrb[0].mxu0 %v1010
      %v1084 = vpop.f32.mrb[0].mxu0
      %v1085 = vadd.f32 0.0, %v1084
      %v1086 = vpop.f32.mrb[0].mxu0
      %1087 = vmatprep.mubr.f32.mxu0 0.0
      %1088 = vmatmul.mubr.f32.gmra.mrb[0].mxu0 %v1012
      %v1089 = vpop.f32.mrb[0].mxu0
      %v1090 = vadd.f32 0.0, %v1089
      %v1091 = vpop.f32.mrb[0].mxu0
      %1092 = vmatprep.mubr.f32.mxu0 0.0
      %1093 = vmatmul.mubr.f32.gmra.mrb[0].mxu0 %v1014
      %v1094 = vpop.f32.mrb[0].mxu0
      %v1095 = vadd.f32 0.0, %v1094
      %v1096 = vpop.f32.mrb[0].mxu0
      %1097 = vmatprep.mubr.f32.mxu0 0.0
      %1098 = vmatmul.mubr.f32.gmra.mrb[0].mxu0 %v1016
      %v1099 = vpop.f32.mrb[0].mxu0
      %v1100 = vadd.f32 0.0, %v1099
      %v1101 = vpop.f32.mrb[0].mxu0
      %1102 = vdwg.mxu0
      %v1103 = vadd.f32 %v989, %v1085
      %v1104 = vadd.f32 %v990, %v1090
      %v1105 = vadd.f32 %v991, %v1095
      %v1106 = vadd.f32 %v992, %v1100
      %s1107 = scalar_lea.vmem %s1, 256
      %v1108 = vld [vmem:[%s1107] sm:$0xff]
      %v1109 = vld [vmem:[%s1107 + $0x8] sm:$0xff]
      %v1110 = vld [vmem:[%s1107 + $0x10] sm:$0xff]
      %v1111 = vld [vmem:[%s1107 + $0x18] sm:$0xff]
      %v1112 = vld [vmem:[%s1107 + $0x20] sm:$0xff]
      %v1113 = vld [vmem:[%s1107 + $0x28] sm:$0xff]
      %v1114 = vld [vmem:[%s1107 + $0x30] sm:$0xff]
      %v1115 = vld [vmem:[%s1107 + $0x38] sm:$0xff]
      %vm1116 = vcmask 1043456
      %v1117 = vrot.slane %v659, 4
      %v1118 = vrot.slane %v660, 4
      %v1119 = vsel %vm1116, %v1117, %v1118
      %v1120 = vrot.slane %v661, 4
      %v1121 = vsel %vm1116, %v1118, %v1120
      %v1122 = vrot.slane %v662, 4
      %v1123 = vsel %vm1116, %v1120, %v1122
      %v1124 = vsel %vm692, %v1119, 0
      %v1126 = vsel %vm692, %v1121, 0
      %v1128 = vsel %vm692, %v1123, 0
      %v1130 = vsel %vm692, %v1122, 0
      %1132 = vmatprep.subr.mxu0 0.0
      %1133 = vmatpush1.msra.mxu0 %v1108
      %1134 = vmatprep.subr.mxu0 0.0
      %1135 = vmatpush1.msra.mxu0 %v1109
      %1136 = vmatprep.subr.mxu0 0.0
      %1137 = vmatpush1.msra.mxu0 %v1110
      %1138 = vmatprep.subr.mxu0 0.0
      %1139 = vmatpush1.msra.mxu0 %v1111
      %1140 = vmatprep.subr.mxu0 0.0
      %1141 = vmatpush1.msra.mxu0 %v1112
      %1142 = vmatprep.subr.mxu0 0.0
      %1143 = vmatpush1.msra.mxu0 %v1113
      %1144 = vmatprep.subr.mxu0 0.0
      %1145 = vmatpush1.msra.mxu0 %v1114
      %1146 = vmatprep.subr.mxu0 0.0
      %1147 = vmatpush1.msra.mxu0 %v1115
      %1148 = vmatprep.subr.mxu0 0.0
      %1149 = vmatpush1.msra.mxu0 0.0
      %1150 = vmatprep.subr.mxu0 0.0
      %1151 = vmatpush1.msra.mxu0 0.0
      %1152 = vmatprep.subr.mxu0 0.0
      %1153 = vmatpush1.msra.mxu0 0.0
      %1154 = vmatprep.subr.mxu0 0.0
      %1155 = vmatpush1.msra.mxu0 0.0
      %1156 = vmatprep.subr.mxu0 0.0
      %1157 = vmatpush1.msra.mxu0 0.0
      %1158 = vmatprep.subr.mxu0 0.0
      %1159 = vmatpush1.msra.mxu0 0.0
      %1160 = vmatprep.subr.mxu0 0.0
      %1161 = vmatpush1.msra.mxu0 0.0
      %1162 = vmatprep.subr.mxu0 0.0
      %1163 = vmatpush1.msra.mxu0 0.0
      %1164 = vmatprep.subr.mxu0 0.0
      %1165 = vmatpush1.msra.mxu0 0.0
      %1166 = vmatprep.subr.mxu0 0.0
      %1167 = vmatpush1.msra.mxu0 0.0
      %1168 = vmatprep.subr.mxu0 0.0
      %1169 = vmatpush1.msra.mxu0 0.0
      %1170 = vmatprep.subr.mxu0 0.0
      %1171 = vmatpush1.msra.mxu0 0.0
      %1172 = vmatprep.subr.mxu0 0.0
      %1173 = vmatpush1.msra.mxu0 0.0
      %1174 = vmatprep.subr.mxu0 0.0
      %1175 = vmatpush1.msra.mxu0 0.0
      %1176 = vmatprep.subr.mxu0 0.0
      %1177 = vmatpush1.msra.mxu0 0.0
      %1178 = vmatprep.subr.mxu0 0.0
      %1179 = vmatpush1.msra.mxu0 0.0
      %1180 = vmatprep.subr.mxu0 0.0
      %1181 = vmatpush1.msra.mxu0 0.0
      %1182 = vmatprep.subr.mxu0 0.0
      %1183 = vmatpush1.msra.mxu0 0.0
      %1184 = vmatprep.subr.mxu0 0.0
      %1185 = vmatpush1.msra.mxu0 0.0
      %1186 = vmatprep.subr.mxu0 0.0
      %1187 = vmatpush1.msra.mxu0 0.0
      %1188 = vmatprep.subr.mxu0 0.0
      %1189 = vmatpush1.msra.mxu0 0.0
      %1190 = vmatprep.subr.mxu0 0.0
      %1191 = vmatpush1.msra.mxu0 0.0
      %1192 = vmatprep.subr.mxu0 0.0
      %1193 = vmatpush1.msra.mxu0 0.0
      %1194 = vmatprep.subr.mxu0 0.0
      %1195 = vmatpush1.msra.mxu0 0.0
      %1196 = vmatprep.mubr.f32.mxu0 0.0
      %1197 = vmatmul.mubr.f32.gmra.mrb[0].mxu0 %v1124
      %v1198 = vpop.f32.mrb[0].mxu0
      %v1199 = vadd.f32 0.0, %v1198
      %v1200 = vpop.f32.mrb[0].mxu0
      %1201 = vmatprep.mubr.f32.mxu0 0.0
      %1202 = vmatmul.mubr.f32.gmra.mrb[0].mxu0 %v1126
      %v1203 = vpop.f32.mrb[0].mxu0
      %v1204 = vadd.f32 0.0, %v1203
      %v1205 = vpop.f32.mrb[0].mxu0
      %1206 = vmatprep.mubr.f32.mxu0 0.0
      %1207 = vmatmul.mubr.f32.gmra.mrb[0].mxu0 %v1128
      %v1208 = vpop.f32.mrb[0].mxu0
      %v1209 = vadd.f32 0.0, %v1208
      %v1210 = vpop.f32.mrb[0].mxu0
      %1211 = vmatprep.mubr.f32.mxu0 0.0
      %1212 = vmatmul.mubr.f32.gmra.mrb[0].mxu0 %v1130
      %v1213 = vpop.f32.mrb[0].mxu0
      %v1214 = vadd.f32 0.0, %v1213
      %v1215 = vpop.f32.mrb[0].mxu0
      %1216 = vdwg.mxu0
      %v1217 = vadd.f32 %v1103, %v1199
      %v1218 = vadd.f32 %v1104, %v1204
      %v1219 = vadd.f32 %v1105, %v1209
      %v1220 = vadd.f32 %v1106, %v1214
      %v1221 = vld [vmem:[%s2] sm:$0x1]
      %v1223 = vlaneseq
      %v1224 = vshrl.u32 %v1223, 7
      %v1225 = vsub.s32 0, %v1224
      %v1226 = vrot.slane %v1221, %v1225
      %v1228 = vadd.f32 %v1217, %v1226
      %v1229 = vadd.f32 %v1218, %v1226
      %v1230 = vadd.f32 %v1219, %v1226
      %v1231 = vadd.f32 %v1220, %v1226
      %v1232 = vmax.f32 %v1228, 0.0
      %v1233 = vmax.f32 %v1229, 0.0
      %v1234 = vmax.f32 %v1230, 0.0
      %v1235 = vmax.f32 %v1231, 0.0
      %vm1236 = vcmask 261120
      %1237 = vst.msk [vmem:[#allocation2] sm:$0xff] %vm1236, %v1232
      %1238 = vst.msk [vmem:[#allocation2 + $0x8] sm:$0xff] %vm1236, %v1233
      %1239 = vst.msk [vmem:[#allocation2 + $0x10] sm:$0xff] %vm1236, %v1234
      %vm1240 = vcmask 257024
      %1241 = vst.msk [vmem:[#allocation2 + $0x18] sm:$0xf] %vm1240, %v1235
      %v1242 = vld [vmem:[#allocation2] ss:$2 sm:$0xff]
      %s1243 = scalar_lea.vmem [#allocation2], 16
      %v1244 = vld [vmem:[%s1243] ss:$2 sm:$0x3f]
      %s1245 = scalar_lea.vmem [#allocation2], 1
      %v1246 = vld [vmem:[%s1245] ss:$2 sm:$0xff]
      %s1247 = scalar_lea.vmem [#allocation2], 17
      %v1248 = vld [vmem:[%s1247] ss:$2 sm:$0x3f]
      %v1249 = vmax.f32 %v1242, %v1246
      %v1250 = vmax.f32 %v1244, %v1248
      %v1251 = vld [vmem:[%s3] sm:$0xff]
      %v1252 = vld [vmem:[%s3 + $0x8] sm:$0xff]
      %v1253 = vld [vmem:[%s3 + $0x10] sm:$0xff]
      %v1254 = vld [vmem:[%s3 + $0x18] sm:$0xff]
      %s1255 = scalar_lea.vmem %s3, 32
      %v1256 = vld [vmem:[%s1255] sm:$0xff]
      %v1257 = vld [vmem:[%s1255 + $0x8] sm:$0xff]
      %v1258 = vld [vmem:[%s1255 + $0x10] sm:$0xff]
      %v1259 = vld [vmem:[%s1255 + $0x18] sm:$0xff]
      %v1262 = vrot.slane %v1249, 1
      %v1263 = vrot.slane %v1250, 1
      %v1264 = vsel %vm684, %v1262, %v1263
      %v1265 = vsel %vm1236, %v1264, 0
      %v1267 = vsel %vm1236, %v1263, 0
      %1269 = vmatprep.subr.mxu0 0.0
      %1270 = vmatpush1.msra.mxu0 %v1256
      %1271 = vmatprep.subr.mxu0 0.0
      %1272 = vmatpush1.msra.mxu0 %v1257
      %1273 = vmatprep.subr.mxu0 0.0
      %1274 = vmatpush1.msra.mxu0 %v1258
      %1275 = vmatprep.subr.mxu0 0.0
      %1276 = vmatpush1.msra.mxu0 %v1259
      %1277 = vmatprep.subr.mxu0 0.0
      %1278 = vmatpush1.msra.mxu0 0.0
      %1279 = vmatprep.subr.mxu0 0.0
      %1280 = vmatpush1.msra.mxu0 0.0
      %1281 = vmatprep.subr.mxu0 0.0
      %1282 = vmatpush1.msra.mxu0 0.0
      %1283 = vmatprep.subr.mxu0 0.0
      %1284 = vmatpush1.msra.mxu0 0.0
      %1285 = vmatprep.subr.mxu0 0.0
      %1286 = vmatpush1.msra.mxu0 0.0
      %1287 = vmatprep.subr.mxu0 0.0
      %1288 = vmatpush1.msra.mxu0 0.0
      %1289 = vmatprep.subr.mxu0 0.0
      %1290 = vmatpush1.msra.mxu0 0.0
      %1291 = vmatprep.subr.mxu0 0.0
      %1292 = vmatpush1.msra.mxu0 0.0
      %1293 = vmatprep.subr.mxu0 0.0
      %1294 = vmatpush1.msra.mxu0 0.0
      %1295 = vmatprep.subr.mxu0 0.0
      %1296 = vmatpush1.msra.mxu0 0.0
      %1297 = vmatprep.subr.mxu0 0.0
      %1298 = vmatpush1.msra.mxu0 0.0
      %1299 = vmatprep.subr.mxu0 0.0
      %1300 = vmatpush1.msra.mxu0 0.0
      %1301 = vmatprep.subr.mxu0 0.0
      %1302 = vmatpush1.msra.mxu0 0.0
      %1303 = vmatprep.subr.mxu0 0.0
      %1304 = vmatpush1.msra.mxu0 0.0
      %1305 = vmatprep.subr.mxu0 0.0
      %1306 = vmatpush1.msra.mxu0 0.0
      %1307 = vmatprep.subr.mxu0 0.0
      %1308 = vmatpush1.msra.mxu0 0.0
      %1309 = vmatprep.subr.mxu0 0.0
      %1310 = vmatpush1.msra.mxu0 0.0
      %1311 = vmatprep.subr.mxu0 0.0
      %1312 = vmatpush1.msra.mxu0 0.0
      %1313 = vmatprep.subr.mxu0 0.0
      %1314 = vmatpush1.msra.mxu0 0.0
      %1315 = vmatprep.subr.mxu0 0.0
      %1316 = vmatpush1.msra.mxu0 0.0
      %1317 = vmatprep.subr.mxu0 0.0
      %1318 = vmatpush1.msra.mxu0 0.0
      %1319 = vmatprep.subr.mxu0 0.0
      %1320 = vmatpush1.msra.mxu0 0.0
      %1321 = vmatprep.subr.mxu0 0.0
      %1322 = vmatpush1.msra.mxu0 0.0
      %1323 = vmatprep.subr.mxu0 0.0
      %1324 = vmatpush1.msra.mxu0 0.0
      %1325 = vmatprep.subr.mxu0 0.0
      %1326 = vmatpush1.msra.mxu0 0.0
      %1327 = vmatprep.subr.mxu0 0.0
      %1328 = vmatpush1.msra.mxu0 0.0
      %1329 = vmatprep.subr.mxu0 0.0
      %1330 = vmatpush1.msra.mxu0 0.0
      %1331 = vmatprep.subr.mxu0 0.0
      %1332 = vmatpush1.msra.mxu0 0.0
      %1333 = vmatprep.mubr.f32.mxu0 0.0
      %1334 = vmatmul.mubr.f32.gmra.mrb[0].mxu0 %v1265
      %v1335 = vpop.f32.mrb[0].mxu0
      %v1336 = vadd.f32 0.0, %v1335
      %v1337 = vpop.f32.mrb[0].mxu0
      %1338 = vmatprep.mubr.f32.mxu0 0.0
      %1339 = vmatmul.mubr.f32.gmra.mrb[0].mxu0 %v1267
      %v1340 = vpop.f32.mrb[0].mxu0
      %v1341 = vadd.f32 0.0, %v1340
      %v1342 = vpop.f32.mrb[0].mxu0
      %1343 = vdwg.mxu0
      %v1344 = vsel %vm1236, %v1249, 0
      %v1346 = vsel %vm1236, %v1250, 0
      %1348 = vmatprep.subr.mxu0 0.0
      %1349 = vmatpush1.msra.mxu0 %v1251
      %1350 = vmatprep.subr.mxu0 0.0
      %1351 = vmatpush1.msra.mxu0 %v1252
      %1352 = vmatprep.subr.mxu0 0.0
      %1353 = vmatpush1.msra.mxu0 %v1253
      %1354 = vmatprep.subr.mxu0 0.0
      %1355 = vmatpush1.msra.mxu0 %v1254
      %1356 = vmatprep.subr.mxu0 0.0
      %1357 = vmatpush1.msra.mxu0 0.0
      %1358 = vmatprep.subr.mxu0 0.0
      %1359 = vmatpush1.msra.mxu0 0.0
      %1360 = vmatprep.subr.mxu0 0.0
      %1361 = vmatpush1.msra.mxu0 0.0
      %1362 = vmatprep.subr.mxu0 0.0
      %1363 = vmatpush1.msra.mxu0 0.0
      %1364 = vmatprep.subr.mxu0 0.0
      %1365 = vmatpush1.msra.mxu0 0.0
      %1366 = vmatprep.subr.mxu0 0.0
      %1367 = vmatpush1.msra.mxu0 0.0
      %1368 = vmatprep.subr.mxu0 0.0
      %1369 = vmatpush1.msra.mxu0 0.0
      %1370 = vmatprep.subr.mxu0 0.0
      %1371 = vmatpush1.msra.mxu0 0.0
      %1372 = vmatprep.subr.mxu0 0.0
      %1373 = vmatpush1.msra.mxu0 0.0
      %1374 = vmatprep.subr.mxu0 0.0
      %1375 = vmatpush1.msra.mxu0 0.0
      %1376 = vmatprep.subr.mxu0 0.0
      %1377 = vmatpush1.msra.mxu0 0.0
      %1378 = vmatprep.subr.mxu0 0.0
      %1379 = vmatpush1.msra.mxu0 0.0
      %1380 = vmatprep.subr.mxu0 0.0
      %1381 = vmatpush1.msra.mxu0 0.0
      %1382 = vmatprep.subr.mxu0 0.0
      %1383 = vmatpush1.msra.mxu0 0.0
      %1384 = vmatprep.subr.mxu0 0.0
      %1385 = vmatpush1.msra.mxu0 0.0
      %1386 = vmatprep.subr.mxu0 0.0
      %1387 = vmatpush1.msra.mxu0 0.0
      %1388 = vmatprep.subr.mxu0 0.0
      %1389 = vmatpush1.msra.mxu0 0.0
      %1390 = vmatprep.subr.mxu0 0.0
      %1391 = vmatpush1.msra.mxu0 0.0
      %1392 = vmatprep.subr.mxu0 0.0
      %1393 = vmatpush1.msra.mxu0 0.0
      %1394 = vmatprep.subr.mxu0 0.0
      %1395 = vmatpush1.msra.mxu0 0.0
      %1396 = vmatprep.subr.mxu0 0.0
      %1397 = vmatpush1.msra.mxu0 0.0
      %1398 = vmatprep.subr.mxu0 0.0
      %1399 = vmatpush1.msra.mxu0 0.0
      %1400 = vmatprep.subr.mxu0 0.0
      %1401 = vmatpush1.msra.mxu0 0.0
      %1402 = vmatprep.subr.mxu0 0.0
      %1403 = vmatpush1.msra.mxu0 0.0
      %1404 = vmatprep.subr.mxu0 0.0
      %1405 = vmatpush1.msra.mxu0 0.0
      %1406 = vmatprep.subr.mxu0 0.0
      %1407 = vmatpush1.msra.mxu0 0.0
      %1408 = vmatprep.subr.mxu0 0.0
      %1409 = vmatpush1.msra.mxu0 0.0
      %1410 = vmatprep.subr.mxu0 0.0
      %1411 = vmatpush1.msra.mxu0 0.0
      %1412 = vmatprep.mubr.f32.mxu0 0.0
      %1413 = vmatmul.mubr.f32.gmra.mrb[0].mxu0 %v1344
      %v1414 = vpop.f32.mrb[0].mxu0
      %v1415 = vadd.f32 %v1336, %v1414
      %v1416 = vpop.f32.mrb[0].mxu0
      %1417 = vmatprep.mubr.f32.mxu0 0.0
      %1418 = vmatmul.mubr.f32.gmra.mrb[0].mxu0 %v1346
      %v1419 = vpop.f32.mrb[0].mxu0
      %v1420 = vadd.f32 %v1341, %v1419
      %v1421 = vpop.f32.mrb[0].mxu0
      %1422 = vdwg.mxu0
      %s1423 = scalar_lea.vmem %s3, 64
      %v1424 = vld [vmem:[%s1423] sm:$0xff]
      %v1425 = vld [vmem:[%s1423 + $0x8] sm:$0xff]
      %v1426 = vld [vmem:[%s1423 + $0x10] sm:$0xff]
      %v1427 = vld [vmem:[%s1423 + $0x18] sm:$0xff]
      %v1428 = vrot.slane %v1249, 2
      %v1429 = vrot.slane %v1250, 2
      %v1430 = vsel %vm888, %v1428, %v1429
      %v1431 = vsel %vm1236, %v1430, 0
      %v1433 = vsel %vm1236, %v1429, 0
      %1435 = vmatprep.subr.mxu0 0.0
      %1436 = vmatpush1.msra.mxu0 %v1424
      %1437 = vmatprep.subr.mxu0 0.0
      %1438 = vmatpush1.msra.mxu0 %v1425
      %1439 = vmatprep.subr.mxu0 0.0
      %1440 = vmatpush1.msra.mxu0 %v1426
      %1441 = vmatprep.subr.mxu0 0.0
      %1442 = vmatpush1.msra.mxu0 %v1427
      %1443 = vmatprep.subr.mxu0 0.0
      %1444 = vmatpush1.msra.mxu0 0.0
      %1445 = vmatprep.subr.mxu0 0.0
      %1446 = vmatpush1.msra.mxu0 0.0
      %1447 = vmatprep.subr.mxu0 0.0
      %1448 = vmatpush1.msra.mxu0 0.0
      %1449 = vmatprep.subr.mxu0 0.0
      %1450 = vmatpush1.msra.mxu0 0.0
      %1451 = vmatprep.subr.mxu0 0.0
      %1452 = vmatpush1.msra.mxu0 0.0
      %1453 = vmatprep.subr.mxu0 0.0
      %1454 = vmatpush1.msra.mxu0 0.0
      %1455 = vmatprep.subr.mxu0 0.0
      %1456 = vmatpush1.msra.mxu0 0.0
      %1457 = vmatprep.subr.mxu0 0.0
      %1458 = vmatpush1.msra.mxu0 0.0
      %1459 = vmatprep.subr.mxu0 0.0
      %1460 = vmatpush1.msra.mxu0 0.0
      %1461 = vmatprep.subr.mxu0 0.0
      %1462 = vmatpush1.msra.mxu0 0.0
      %1463 = vmatprep.subr.mxu0 0.0
      %1464 = vmatpush1.msra.mxu0 0.0
      %1465 = vmatprep.subr.mxu0 0.0
      %1466 = vmatpush1.msra.mxu0 0.0
      %1467 = vmatprep.subr.mxu0 0.0
      %1468 = vmatpush1.msra.mxu0 0.0
      %1469 = vmatprep.subr.mxu0 0.0
      %1470 = vmatpush1.msra.mxu0 0.0
      %1471 = vmatprep.subr.mxu0 0.0
      %1472 = vmatpush1.msra.mxu0 0.0
      %1473 = vmatprep.subr.mxu0 0.0
      %1474 = vmatpush1.msra.mxu0 0.0
      %1475 = vmatprep.subr.mxu0 0.0
      %1476 = vmatpush1.msra.mxu0 0.0
      %1477 = vmatprep.subr.mxu0 0.0
      %1478 = vmatpush1.msra.mxu0 0.0
      %1479 = vmatprep.subr.mxu0 0.0
      %1480 = vmatpush1.msra.mxu0 0.0
      %1481 = vmatprep.subr.mxu0 0.0
      %1482 = vmatpush1.msra.mxu0 0.0
      %1483 = vmatprep.subr.mxu0 0.0
      %1484 = vmatpush1.msra.mxu0 0.0
      %1485 = vmatprep.subr.mxu0 0.0
      %1486 = vmatpush1.msra.mxu0 0.0
      %1487 = vmatprep.subr.mxu0 0.0
      %1488 = vmatpush1.msra.mxu0 0.0
      %1489 = vmatprep.subr.mxu0 0.0
      %1490 = vmatpush1.msra.mxu0 0.0
      %1491 = vmatprep.subr.mxu0 0.0
      %1492 = vmatpush1.msra.mxu0 0.0
      %1493 = vmatprep.subr.mxu0 0.0
      %1494 = vmatpush1.msra.mxu0 0.0
      %1495 = vmatprep.subr.mxu0 0.0
      %1496 = vmatpush1.msra.mxu0 0.0
      %1497 = vmatprep.subr.mxu0 0.0
      %1498 = vmatpush1.msra.mxu0 0.0
      %1499 = vmatprep.mubr.f32.mxu0 0.0
      %1500 = vmatmul.mubr.f32.gmra.mrb[0].mxu0 %v1431
      %v1501 = vpop.f32.mrb[0].mxu0
      %v1502 = vadd.f32 0.0, %v1501
      %v1503 = vpop.f32.mrb[0].mxu0
      %1504 = vmatprep.mubr.f32.mxu0 0.0
      %1505 = vmatmul.mubr.f32.gmra.mrb[0].mxu0 %v1433
      %v1506 = vpop.f32.mrb[0].mxu0
      %v1507 = vadd.f32 0.0, %v1506
      %v1508 = vpop.f32.mrb[0].mxu0
      %1509 = vdwg.mxu0
      %v1510 = vadd.f32 %v1415, %v1502
      %v1511 = vadd.f32 %v1420, %v1507
      %s1512 = scalar_lea.vmem %s3, 96
      %v1513 = vld [vmem:[%s1512] sm:$0xff]
      %v1514 = vld [vmem:[%s1512 + $0x8] sm:$0xff]
      %v1515 = vld [vmem:[%s1512 + $0x10] sm:$0xff]
      %v1516 = vld [vmem:[%s1512 + $0x18] sm:$0xff]
      %v1517 = vrot.slane %v1249, 3
      %v1518 = vrot.slane %v1250, 3
      %v1519 = vsel %vm1002, %v1517, %v1518
      %v1520 = vsel %vm1236, %v1519, 0
      %v1522 = vsel %vm1236, %v1518, 0
      %1524 = vmatprep.subr.mxu0 0.0
      %1525 = vmatpush1.msra.mxu0 %v1513
      %1526 = vmatprep.subr.mxu0 0.0
      %1527 = vmatpush1.msra.mxu0 %v1514
      %1528 = vmatprep.subr.mxu0 0.0
      %1529 = vmatpush1.msra.mxu0 %v1515
      %1530 = vmatprep.subr.mxu0 0.0
      %1531 = vmatpush1.msra.mxu0 %v1516
      %1532 = vmatprep.subr.mxu0 0.0
      %1533 = vmatpush1.msra.mxu0 0.0
      %1534 = vmatprep.subr.mxu0 0.0
      %1535 = vmatpush1.msra.mxu0 0.0
      %1536 = vmatprep.subr.mxu0 0.0
      %1537 = vmatpush1.msra.mxu0 0.0
      %1538 = vmatprep.subr.mxu0 0.0
      %1539 = vmatpush1.msra.mxu0 0.0
      %1540 = vmatprep.subr.mxu0 0.0
      %1541 = vmatpush1.msra.mxu0 0.0
      %1542 = vmatprep.subr.mxu0 0.0
      %1543 = vmatpush1.msra.mxu0 0.0
      %1544 = vmatprep.subr.mxu0 0.0
      %1545 = vmatpush1.msra.mxu0 0.0
      %1546 = vmatprep.subr.mxu0 0.0
      %1547 = vmatpush1.msra.mxu0 0.0
      %1548 = vmatprep.subr.mxu0 0.0
      %1549 = vmatpush1.msra.mxu0 0.0
      %1550 = vmatprep.subr.mxu0 0.0
      %1551 = vmatpush1.msra.mxu0 0.0
      %1552 = vmatprep.subr.mxu0 0.0
      %1553 = vmatpush1.msra.mxu0 0.0
      %1554 = vmatprep.subr.mxu0 0.0
      %1555 = vmatpush1.msra.mxu0 0.0
      %1556 = vmatprep.subr.mxu0 0.0
      %1557 = vmatpush1.msra.mxu0 0.0
      %1558 = vmatprep.subr.mxu0 0.0
      %1559 = vmatpush1.msra.mxu0 0.0
      %1560 = vmatprep.subr.mxu0 0.0
      %1561 = vmatpush1.msra.mxu0 0.0
      %1562 = vmatprep.subr.mxu0 0.0
      %1563 = vmatpush1.msra.mxu0 0.0
      %1564 = vmatprep.subr.mxu0 0.0
      %1565 = vmatpush1.msra.mxu0 0.0
      %1566 = vmatprep.subr.mxu0 0.0
      %1567 = vmatpush1.msra.mxu0 0.0
      %1568 = vmatprep.subr.mxu0 0.0
      %1569 = vmatpush1.msra.mxu0 0.0
      %1570 = vmatprep.subr.mxu0 0.0
      %1571 = vmatpush1.msra.mxu0 0.0
      %1572 = vmatprep.subr.mxu0 0.0
      %1573 = vmatpush1.msra.mxu0 0.0
      %1574 = vmatprep.subr.mxu0 0.0
      %1575 = vmatpush1.msra.mxu0 0.0
      %1576 = vmatprep.subr.mxu0 0.0
      %1577 = vmatpush1.msra.mxu0 0.0
      %1578 = vmatprep.subr.mxu0 0.0
      %1579 = vmatpush1.msra.mxu0 0.0
      %1580 = vmatprep.subr.mxu0 0.0
      %1581 = vmatpush1.msra.mxu0 0.0
      %1582 = vmatprep.subr.mxu0 0.0
      %1583 = vmatpush1.msra.mxu0 0.0
      %1584 = vmatprep.subr.mxu0 0.0
      %1585 = vmatpush1.msra.mxu0 0.0
      %1586 = vmatprep.subr.mxu0 0.0
      %1587 = vmatpush1.msra.mxu0 0.0
      %1588 = vmatprep.mubr.f32.mxu0 0.0
      %1589 = vmatmul.mubr.f32.gmra.mrb[0].mxu0 %v1520
      %v1590 = vpop.f32.mrb[0].mxu0
      %v1591 = vadd.f32 0.0, %v1590
      %v1592 = vpop.f32.mrb[0].mxu0
      %1593 = vmatprep.mubr.f32.mxu0 0.0
      %1594 = vmatmul.mubr.f32.gmra.mrb[0].mxu0 %v1522
      %v1595 = vpop.f32.mrb[0].mxu0
      %v1596 = vadd.f32 0.0, %v1595
      %v1597 = vpop.f32.mrb[0].mxu0
      %1598 = vdwg.mxu0
      %v1599 = vadd.f32 %v1510, %v1591
      %v1600 = vadd.f32 %v1511, %v1596
      %s1601 = scalar_lea.vmem %s3, 128
      %v1602 = vld [vmem:[%s1601] sm:$0xff]
      %v1603 = vld [vmem:[%s1601 + $0x8] sm:$0xff]
      %v1604 = vld [vmem:[%s1601 + $0x10] sm:$0xff]
      %v1605 = vld [vmem:[%s1601 + $0x18] sm:$0xff]
      %v1606 = vrot.slane %v1249, 4
      %v1607 = vrot.slane %v1250, 4
      %v1608 = vsel %vm1116, %v1606, %v1607
      %v1609 = vsel %vm1236, %v1608, 0
      %v1611 = vsel %vm1236, %v1607, 0
      %1613 = vmatprep.subr.mxu0 0.0
      %1614 = vmatpush1.msra.mxu0 %v1602
      %1615 = vmatprep.subr.mxu0 0.0
      %1616 = vmatpush1.msra.mxu0 %v1603
      %1617 = vmatprep.subr.mxu0 0.0
      %1618 = vmatpush1.msra.mxu0 %v1604
      %1619 = vmatprep.subr.mxu0 0.0
      %1620 = vmatpush1.msra.mxu0 %v1605
      %1621 = vmatprep.subr.mxu0 0.0
      %1622 = vmatpush1.msra.mxu0 0.0
      %1623 = vmatprep.subr.mxu0 0.0
      %1624 = vmatpush1.msra.mxu0 0.0
      %1625 = vmatprep.subr.mxu0 0.0
      %1626 = vmatpush1.msra.mxu0 0.0
      %1627 = vmatprep.subr.mxu0 0.0
      %1628 = vmatpush1.msra.mxu0 0.0
      %1629 = vmatprep.subr.mxu0 0.0
      %1630 = vmatpush1.msra.mxu0 0.0
      %1631 = vmatprep.subr.mxu0 0.0
      %1632 = vmatpush1.msra.mxu0 0.0
      %1633 = vmatprep.subr.mxu0 0.0
      %1634 = vmatpush1.msra.mxu0 0.0
      %1635 = vmatprep.subr.mxu0 0.0
      %1636 = vmatpush1.msra.mxu0 0.0
      %1637 = vmatprep.subr.mxu0 0.0
      %1638 = vmatpush1.msra.mxu0 0.0
      %1639 = vmatprep.subr.mxu0 0.0
      %1640 = vmatpush1.msra.mxu0 0.0
      %1641 = vmatprep.subr.mxu0 0.0
      %1642 = vmatpush1.msra.mxu0 0.0
      %1643 = vmatprep.subr.mxu0 0.0
      %1644 = vmatpush1.msra.mxu0 0.0
      %1645 = vmatprep.subr.mxu0 0.0
      %1646 = vmatpush1.msra.mxu0 0.0
      %1647 = vmatprep.subr.mxu0 0.0
      %1648 = vmatpush1.msra.mxu0 0.0
      %1649 = vmatprep.subr.mxu0 0.0
      %1650 = vmatpush1.msra.mxu0 0.0
      %1651 = vmatprep.subr.mxu0 0.0
      %1652 = vmatpush1.msra.mxu0 0.0
      %1653 = vmatprep.subr.mxu0 0.0
      %1654 = vmatpush1.msra.mxu0 0.0
      %1655 = vmatprep.subr.mxu0 0.0
      %1656 = vmatpush1.msra.mxu0 0.0
      %1657 = vmatprep.subr.mxu0 0.0
      %1658 = vmatpush1.msra.mxu0 0.0
      %1659 = vmatprep.subr.mxu0 0.0
      %1660 = vmatpush1.msra.mxu0 0.0
      %1661 = vmatprep.subr.mxu0 0.0
      %1662 = vmatpush1.msra.mxu0 0.0
      %1663 = vmatprep.subr.mxu0 0.0
      %1664 = vmatpush1.msra.mxu0 0.0
      %1665 = vmatprep.subr.mxu0 0.0
      %1666 = vmatpush1.msra.mxu0 0.0
      %1667 = vmatprep.subr.mxu0 0.0
      %1668 = vmatpush1.msra.mxu0 0.0
      %1669 = vmatprep.subr.mxu0 0.0
      %1670 = vmatpush1.msra.mxu0 0.0
      %1671 = vmatprep.subr.mxu0 0.0
      %1672 = vmatpush1.msra.mxu0 0.0
      %1673 = vmatprep.subr.mxu0 0.0
      %1674 = vmatpush1.msra.mxu0 0.0
      %1675 = vmatprep.subr.mxu0 0.0
      %1676 = vmatpush1.msra.mxu0 0.0
      %1677 = vmatprep.mubr.f32.mxu0 0.0
      %1678 = vmatmul.mubr.f32.gmra.mrb[0].mxu0 %v1609
      %v1679 = vpop.f32.mrb[0].mxu0
      %v1680 = vadd.f32 0.0, %v1679
      %v1681 = vpop.f32.mrb[0].mxu0
      %1682 = vmatprep.mubr.f32.mxu0 0.0
      %1683 = vmatmul.mubr.f32.gmra.mrb[0].mxu0 %v1611
      %v1684 = vpop.f32.mrb[0].mxu0
      %v1685 = vadd.f32 0.0, %v1684
      %v1686 = vpop.f32.mrb[0].mxu0
      %1687 = vdwg.mxu0
      %v1688 = vadd.f32 %v1599, %v1680
      %v1689 = vadd.f32 %v1600, %v1685
      %v1690 = vld [vmem:[%s4] sm:$0x1]
      %v1692 = vlaneseq
      %v1693 = vshrl.u32 %v1692, 7
      %v1694 = vsub.s32 0, %v1693
      %v1695 = vrot.slane %v1690, %v1694
      %v1697 = vadd.f32 %v1688, %v1695
      %v1698 = vadd.f32 %v1689, %v1695
      %v1699 = vmax.f32 %v1697, 0.0
      %v1700 = vmax.f32 %v1698, 0.0
      %1701 = vst.msk [vmem:[#allocation3] sm:$0xff] %vm1236, %v1699
      %vm1702 = vcmask 254976
      %1703 = vst.msk [vmem:[#allocation3 + $0x8] sm:$0x3] %vm1702, %v1700
      %v1704 = vld [vmem:[#allocation3] ss:$2 sm:$0x1f]
      %s1705 = scalar_lea.vmem [#allocation3], 1
      %v1706 = vld [vmem:[%s1705] ss:$2 sm:$0x1f]
      %v1707 = vmax.f32 %v1704, %v1706
      %vm1708 = vcmask 258048
      %1709 = vst.msk [vmem:[%s646] sm:$0x1f] %vm1708, %v1707
      %v1710 = vld [vmem:[%s5] sm:$0xff]
      %v1711 = vld [vmem:[%s5 + $0x8] sm:$0xff]
      %v1712 = vld [vmem:[%s5 + $0x10] sm:$0xff]
      %v1713 = vld [vmem:[%s5 + $0x18] sm:$0xff]
      %v1714 = vld [vmem:[%s6] sm:$0x1]
      %v1716 = vlaneseq
      %v1717 = vshrl.u32 %v1716, 7
      %v1718 = vsub.s32 0, %v1717
      %v1719 = vrot.slane %v1714, %v1718
      %v1722 = vsel %vm1236, %v1707, 0
      %1724 = vmatprep.subr.mxu0 0.0
      %1725 = vmatpush1.msra.mxu0 %v1710
      %1726 = vmatprep.subr.mxu0 0.0
      %1727 = vmatpush1.msra.mxu0 %v1711
      %1728 = vmatprep.subr.mxu0 0.0
      %1729 = vmatpush1.msra.mxu0 %v1712
      %1730 = vmatprep.subr.mxu0 0.0
      %1731 = vmatpush1.msra.mxu0 %v1713
      %1732 = vmatprep.subr.mxu0 0.0
      %1733 = vmatpush1.msra.mxu0 0.0
      %1734 = vmatprep.subr.mxu0 0.0
      %1735 = vmatpush1.msra.mxu0 0.0
      %1736 = vmatprep.subr.mxu0 0.0
      %1737 = vmatpush1.msra.mxu0 0.0
      %1738 = vmatprep.subr.mxu0 0.0
      %1739 = vmatpush1.msra.mxu0 0.0
      %1740 = vmatprep.subr.mxu0 0.0
      %1741 = vmatpush1.msra.mxu0 0.0
      %1742 = vmatprep.subr.mxu0 0.0
      %1743 = vmatpush1.msra.mxu0 0.0
      %1744 = vmatprep.subr.mxu0 0.0
      %1745 = vmatpush1.msra.mxu0 0.0
      %1746 = vmatprep.subr.mxu0 0.0
      %1747 = vmatpush1.msra.mxu0 0.0
      %1748 = vmatprep.subr.mxu0 0.0
      %1749 = vmatpush1.msra.mxu0 0.0
      %1750 = vmatprep.subr.mxu0 0.0
      %1751 = vmatpush1.msra.mxu0 0.0
      %1752 = vmatprep.subr.mxu0 0.0
      %1753 = vmatpush1.msra.mxu0 0.0
      %1754 = vmatprep.subr.mxu0 0.0
      %1755 = vmatpush1.msra.mxu0 0.0
      %1756 = vmatprep.subr.mxu0 0.0
      %1757 = vmatpush1.msra.mxu0 0.0
      %1758 = vmatprep.subr.mxu0 0.0
      %1759 = vmatpush1.msra.mxu0 0.0
      %1760 = vmatprep.subr.mxu0 0.0
      %1761 = vmatpush1.msra.mxu0 0.0
      %1762 = vmatprep.subr.mxu0 0.0
      %1763 = vmatpush1.msra.mxu0 0.0
      %1764 = vmatprep.subr.mxu0 0.0
      %1765 = vmatpush1.msra.mxu0 0.0
      %1766 = vmatprep.subr.mxu0 0.0
      %1767 = vmatpush1.msra.mxu0 0.0
      %1768 = vmatprep.subr.mxu0 0.0
      %1769 = vmatpush1.msra.mxu0 0.0
      %1770 = vmatprep.subr.mxu0 0.0
      %1771 = vmatpush1.msra.mxu0 0.0
      %1772 = vmatprep.subr.mxu0 0.0
      %1773 = vmatpush1.msra.mxu0 0.0
      %1774 = vmatprep.subr.mxu0 0.0
      %1775 = vmatpush1.msra.mxu0 0.0
      %1776 = vmatprep.subr.mxu0 0.0
      %1777 = vmatpush1.msra.mxu0 0.0
      %1778 = vmatprep.subr.mxu0 0.0
      %1779 = vmatpush1.msra.mxu0 0.0
      %1780 = vmatprep.subr.mxu0 0.0
      %1781 = vmatpush1.msra.mxu0 0.0
      %1782 = vmatprep.subr.mxu0 0.0
      %1783 = vmatpush1.msra.mxu0 0.0
      %1784 = vmatprep.subr.mxu0 0.0
      %1785 = vmatpush1.msra.mxu0 0.0
      %1786 = vmatprep.subr.mxu0 0.0
      %1787 = vmatpush1.msra.mxu0 0.0
      %1788 = vmatprep.mubr.f32.mxu0 0.0
      %1789 = vmatmul.mubr.f32.gmra.mrb[0].mxu0 %v1722
      %v1790 = vpop.f32.mrb[0].mxu0
      %v1791 = vadd.f32 %v1719, %v1790
      %v1792 = vpop.f32.mrb[0].mxu0
      %1793 = vdwg.mxu0
      %1794 = vst [vmem:[%s650] sm:$0x1f] %v1791
      %v1795 = vld [vmem:[%s7] sm:$0xff]
      %v1796 = vld [vmem:[%s7 + $0x8] sm:$0xff]
      %v1797 = vld [vmem:[%s7 + $0x10] sm:$0xff]
      %v1798 = vld [vmem:[%s7 + $0x18] sm:$0xff]
      %v1799 = vld [vmem:[%s9] sm:$0x1]
      %v1801 = vlaneseq
      %v1802 = vshrl.u32 %v1801, 7
      %v1803 = vsub.s32 0, %v1802
      %v1804 = vrot.slane %v1799, %v1803
      %1806 = vmatprep.subr.mxu0 0.0
      %1807 = vmatpush1.msra.mxu0 %v1795
      %1808 = vmatprep.subr.mxu0 0.0
      %1809 = vmatpush1.msra.mxu0 %v1796
      %1810 = vmatprep.subr.mxu0 0.0
      %1811 = vmatpush1.msra.mxu0 %v1797
      %1812 = vmatprep.subr.mxu0 0.0
      %1813 = vmatpush1.msra.mxu0 %v1798
      %1814 = vmatprep.subr.mxu0 0.0
      %1815 = vmatpush1.msra.mxu0 0.0
      %1816 = vmatprep.subr.mxu0 0.0
      %1817 = vmatpush1.msra.mxu0 0.0
      %1818 = vmatprep.subr.mxu0 0.0
      %1819 = vmatpush1.msra.mxu0 0.0
      %1820 = vmatprep.subr.mxu0 0.0
      %1821 = vmatpush1.msra.mxu0 0.0
      %1822 = vmatprep.subr.mxu0 0.0
      %1823 = vmatpush1.msra.mxu0 0.0
      %1824 = vmatprep.subr.mxu0 0.0
      %1825 = vmatpush1.msra.mxu0 0.0
      %1826 = vmatprep.subr.mxu0 0.0
      %1827 = vmatpush1.msra.mxu0 0.0
      %1828 = vmatprep.subr.mxu0 0.0
      %1829 = vmatpush1.msra.mxu0 0.0
      %1830 = vmatprep.subr.mxu0 0.0
      %1831 = vmatpush1.msra.mxu0 0.0
      %1832 = vmatprep.subr.mxu0 0.0
      %1833 = vmatpush1.msra.mxu0 0.0
      %1834 = vmatprep.subr.mxu0 0.0
      %1835 = vmatpush1.msra.mxu0 0.0
      %1836 = vmatprep.subr.mxu0 0.0
      %1837 = vmatpush1.msra.mxu0 0.0
      %1838 = vmatprep.subr.mxu0 0.0
      %1839 = vmatpush1.msra.mxu0 0.0
      %1840 = vmatprep.subr.mxu0 0.0
      %1841 = vmatpush1.msra.mxu0 0.0
      %1842 = vmatprep.subr.mxu0 0.0
      %1843 = vmatpush1.msra.mxu0 0.0
      %1844 = vmatprep.subr.mxu0 0.0
      %1845 = vmatpush1.msra.mxu0 0.0
      %1846 = vmatprep.subr.mxu0 0.0
      %1847 = vmatpush1.msra.mxu0 0.0
      %1848 = vmatprep.subr.mxu0 0.0
      %1849 = vmatpush1.msra.mxu0 0.0
      %1850 = vmatprep.subr.mxu0 0.0
      %1851 = vmatpush1.msra.mxu0 0.0
      %1852 = vmatprep.subr.mxu0 0.0
      %1853 = vmatpush1.msra.mxu0 0.0
      %1854 = vmatprep.subr.mxu0 0.0
      %1855 = vmatpush1.msra.mxu0 0.0
      %1856 = vmatprep.subr.mxu0 0.0
      %1857 = vmatpush1.msra.mxu0 0.0
      %1858 = vmatprep.subr.mxu0 0.0
      %1859 = vmatpush1.msra.mxu0 0.0
      %1860 = vmatprep.subr.mxu0 0.0
      %1861 = vmatpush1.msra.mxu0 0.0
      %1862 = vmatprep.subr.mxu0 0.0
      %1863 = vmatpush1.msra.mxu0 0.0
      %1864 = vmatprep.subr.mxu0 0.0
      %1865 = vmatpush1.msra.mxu0 0.0
      %1866 = vmatprep.subr.mxu0 0.0
      %1867 = vmatpush1.msra.mxu0 0.0
      %1868 = vmatprep.subr.mxu0 0.0
      %1869 = vmatpush1.msra.mxu0 0.0
      %1870 = vmatprep.mubr.f32.mxu0 0.0
      %1871 = vmatmul.mubr.f32.gmra.mrb[0].mxu0 %v1722
      %v1872 = vpop.f32.mrb[0].mxu0
      %v1873 = vadd.f32 %v1804, %v1872
      %v1874 = vpop.f32.mrb[0].mxu0
      %1875 = vdwg.mxu0
      %v1876 = vld [vmem:[%s8] sm:$0xff]
      %v1877 = vld [vmem:[%s8 + $0x8] sm:$0xff]
      %v1878 = vld [vmem:[%s8 + $0x10] sm:$0xff]
      %v1879 = vld [vmem:[%s8 + $0x18] sm:$0xff]
      %v1881 = vsel %vm1236, 0.0, 0
      %1883 = vmatprep.subr.mxu0 0.0
      %1884 = vmatpush1.msra.mxu0 %v1876
      %1885 = vmatprep.subr.mxu0 0.0
      %1886 = vmatpush1.msra.mxu0 %v1877
      %1887 = vmatprep.subr.mxu0 0.0
      %1888 = vmatpush1.msra.mxu0 %v1878
      %1889 = vmatprep.subr.mxu0 0.0
      %1890 = vmatpush1.msra.mxu0 %v1879
      %1891 = vmatprep.subr.mxu0 0.0
      %1892 = vmatpush1.msra.mxu0 0.0
      %1893 = vmatprep.subr.mxu0 0.0
      %1894 = vmatpush1.msra.mxu0 0.0
      %1895 = vmatprep.subr.mxu0 0.0
      %1896 = vmatpush1.msra.mxu0 0.0
      %1897 = vmatprep.subr.mxu0 0.0
      %1898 = vmatpush1.msra.mxu0 0.0
      %1899 = vmatprep.subr.mxu0 0.0
      %1900 = vmatpush1.msra.mxu0 0.0
      %1901 = vmatprep.subr.mxu0 0.0
      %1902 = vmatpush1.msra.mxu0 0.0
      %1903 = vmatprep.subr.mxu0 0.0
      %1904 = vmatpush1.msra.mxu0 0.0
      %1905 = vmatprep.subr.mxu0 0.0
      %1906 = vmatpush1.msra.mxu0 0.0
      %1907 = vmatprep.subr.mxu0 0.0
      %1908 = vmatpush1.msra.mxu0 0.0
      %1909 = vmatprep.subr.mxu0 0.0
      %1910 = vmatpush1.msra.mxu0 0.0
      %1911 = vmatprep.subr.mxu0 0.0
      %1912 = vmatpush1.msra.mxu0 0.0
      %1913 = vmatprep.subr.mxu0 0.0
      %1914 = vmatpush1.msra.mxu0 0.0
      %1915 = vmatprep.subr.mxu0 0.0
      %1916 = vmatpush1.msra.mxu0 0.0
      %1917 = vmatprep.subr.mxu0 0.0
      %1918 = vmatpush1.msra.mxu0 0.0
      %1919 = vmatprep.subr.mxu0 0.0
      %1920 = vmatpush1.msra.mxu0 0.0
      %1921 = vmatprep.subr.mxu0 0.0
      %1922 = vmatpush1.msra.mxu0 0.0
      %1923 = vmatprep.subr.mxu0 0.0
      %1924 = vmatpush1.msra.mxu0 0.0
      %1925 = vmatprep.subr.mxu0 0.0
      %1926 = vmatpush1.msra.mxu0 0.0
      %1927 = vmatprep.subr.mxu0 0.0
      %1928 = vmatpush1.msra.mxu0 0.0
      %1929 = vmatprep.subr.mxu0 0.0
      %1930 = vmatpush1.msra.mxu0 0.0
      %1931 = vmatprep.subr.mxu0 0.0
      %1932 = vmatpush1.msra.mxu0 0.0
      %1933 = vmatprep.subr.mxu0 0.0
      %1934 = vmatpush1.msra.mxu0 0.0
      %1935 = vmatprep.subr.mxu0 0.0
      %1936 = vmatpush1.msra.mxu0 0.0
      %1937 = vmatprep.subr.mxu0 0.0
      %1938 = vmatpush1.msra.mxu0 0.0
      %1939 = vmatprep.subr.mxu0 0.0
      %1940 = vmatpush1.msra.mxu0 0.0
      %1941 = vmatprep.subr.mxu0 0.0
      %1942 = vmatpush1.msra.mxu0 0.0
      %1943 = vmatprep.subr.mxu0 0.0
      %1944 = vmatpush1.msra.mxu0 0.0
      %1945 = vmatprep.subr.mxu0 0.0
      %1946 = vmatpush1.msra.mxu0 0.0
      %1947 = vmatprep.mubr.f32.mxu0 0.0
      %1948 = vmatmul.mubr.f32.gmra.mrb[0].mxu0 %v1881
      %v1949 = vpop.f32.mrb[0].mxu0
      %v1950 = vadd.f32 0.0, %v1949
      %v1951 = vpop.f32.mrb[0].mxu0
      %1952 = vdwg.mxu0
      %v1953 = vadd.f32 %v1873, %v1950
      %v1955 = vrot.slane %v1950, 4
      %v1957 = vadd.f32 %v1873, %v1955
      %v1958 = vxor.u32 %v1953, 2147483648
      %v1959 = vmul.f32 %v1958, 1.442695
      %v1960 = vpow.pop %v1959
      %v1961 = vadd.f32 %v1960, 1.0
      %v1962 = vrcp.pop %v1961
      %v1963 = vmul.f32 1.0, %v1962
      %v1964 = vtanh.pop %v1953
      %v1965 = vxor.u32 %v1957, 2147483648
      %v1966 = vmul.f32 %v1965, 1.442695
      %v1967 = vpow.pop %v1966
      %v1968 = vadd.f32 %v1967, 1.0
      %v1969 = vrcp.pop %v1968
      %v1970 = vmul.f32 1.0, %v1969
      %v1971 = vtanh.pop %v1957
      %v1972 = vmul.f32 %v1963, 0.0
      %1974 = vrot.lane.b32.xlu0 %v1964, 96
      %v1975 = vpop.permute.xlu0 %1974
      %v1977 = vmul.f32 %v1963, %v1975
      %1979 = vrot.lane.b32.xlu0 %v1977, 16
      %v1980 = vpop.permute.xlu0 %1979
      %v1982 = vadd.f32 %v1972, %v1980
      %v1983 = vtanh.pop %v1982
      %1985 = vrot.lane.b32.xlu0 %v1983, 32
      %v1986 = vpop.permute.xlu0 %1985
      %v1988 = vmul.f32 %v1963, %v1986
      %v1989 = vmul.f32 %v1970, 0.0
      %1991 = vrot.lane.b32.xlu0 %v1971, 96
      %v1992 = vpop.permute.xlu0 %1991
      %v1994 = vmul.f32 %v1970, %v1992
      %1996 = vrot.lane.b32.xlu0 %v1994, 16
      %v1997 = vpop.permute.xlu0 %1996
      %v1999 = vadd.f32 %v1989, %v1997
      %v2000 = vtanh.pop %v1999
      %2002 = vrot.lane.b32.xlu0 %v2000, 32
      %v2003 = vpop.permute.xlu0 %2002
      %v2005 = vmul.f32 %v1970, %v2003
      %2007 = vrot.lane.b32.xlu0 %v1988, 80
      %v2008 = vpop.permute.xlu0 %2007
      %vm2010 = vcmask 122880
      %2011 = vst.msk [vmem:[#allocation4] sm:$0x1] %vm2010, %v2008
      %2013 = vrot.lane.b32.xlu0 %v2005, 32
      %v2014 = vpop.permute.xlu0 %2013
      %vm2016 = vcmask 258180
      %2017 = vst.msk [vmem:[#allocation4] sm:$0x10] %vm2016, %v2014
      %v2018 = vrot.slane %v2005, 4
      %2019 = vrot.lane.b32.xlu0 %v2018, 32
      %v2020 = vpop.permute.xlu0 %2019
      %vm2022 = vcmask 130048
      %v2023 = vsel %vm2022, %v2008, %v2020
      %v2024 = vld [vmem:[%s8] sm:$0xff]
      %v2025 = vld [vmem:[%s8 + $0x8] sm:$0xff]
      %v2026 = vld [vmem:[%s8 + $0x10] sm:$0xff]
      %v2027 = vld [vmem:[%s8 + $0x18] sm:$0xff]
      %v2029 = vsel %vm1236, %v2023, 0
      %2031 = vmatprep.subr.mxu0 0.0
      %2032 = vmatpush1.msra.mxu0 %v2024
      %2033 = vmatprep.subr.mxu0 0.0
      %2034 = vmatpush1.msra.mxu0 %v2025
      %2035 = vmatprep.subr.mxu0 0.0
      %2036 = vmatpush1.msra.mxu0 %v2026
      %2037 = vmatprep.subr.mxu0 0.0
      %2038 = vmatpush1.msra.mxu0 %v2027
      %2039 = vmatprep.subr.mxu0 0.0
      %2040 = vmatpush1.msra.mxu0 0.0
      %2041 = vmatprep.subr.mxu0 0.0
      %2042 = vmatpush1.msra.mxu0 0.0
      %2043 = vmatprep.subr.mxu0 0.0
      %2044 = vmatpush1.msra.mxu0 0.0
      %2045 = vmatprep.subr.mxu0 0.0
      %2046 = vmatpush1.msra.mxu0 0.0
      %2047 = vmatprep.subr.mxu0 0.0
      %2048 = vmatpush1.msra.mxu0 0.0
      %2049 = vmatprep.subr.mxu0 0.0
      %2050 = vmatpush1.msra.mxu0 0.0
      %2051 = vmatprep.subr.mxu0 0.0
      %2052 = vmatpush1.msra.mxu0 0.0
      %2053 = vmatprep.subr.mxu0 0.0
      %2054 = vmatpush1.msra.mxu0 0.0
      %2055 = vmatprep.subr.mxu0 0.0
      %2056 = vmatpush1.msra.mxu0 0.0
      %2057 = vmatprep.subr.mxu0 0.0
      %2058 = vmatpush1.msra.mxu0 0.0
      %2059 = vmatprep.subr.mxu0 0.0
      %2060 = vmatpush1.msra.mxu0 0.0
      %2061 = vmatprep.subr.mxu0 0.0
      %2062 = vmatpush1.msra.mxu0 0.0
      %2063 = vmatprep.subr.mxu0 0.0
      %2064 = vmatpush1.msra.mxu0 0.0
      %2065 = vmatprep.subr.mxu0 0.0
      %2066 = vmatpush1.msra.mxu0 0.0
      %2067 = vmatprep.subr.mxu0 0.0
      %2068 = vmatpush1.msra.mxu0 0.0
      %2069 = vmatprep.subr.mxu0 0.0
      %2070 = vmatpush1.msra.mxu0 0.0
      %2071 = vmatprep.subr.mxu0 0.0
      %2072 = vmatpush1.msra.mxu0 0.0
      %2073 = vmatprep.subr.mxu0 0.0
      %2074 = vmatpush1.msra.mxu0 0.0
      %2075 = vmatprep.subr.mxu0 0.0
      %2076 = vmatpush1.msra.mxu0 0.0
      %2077 = vmatprep.subr.mxu0 0.0
      %2078 = vmatpush1.msra.mxu0 0.0
      %2079 = vmatprep.subr.mxu0 0.0
      %2080 = vmatpush1.msra.mxu0 0.0
      %2081 = vmatprep.subr.mxu0 0.0
      %2082 = vmatpush1.msra.mxu0 0.0
      %2083 = vmatprep.subr.mxu0 0.0
      %2084 = vmatpush1.msra.mxu0 0.0
      %2085 = vmatprep.subr.mxu0 0.0
      %2086 = vmatpush1.msra.mxu0 0.0
      %2087 = vmatprep.subr.mxu0 0.0
      %2088 = vmatpush1.msra.mxu0 0.0
      %2089 = vmatprep.subr.mxu0 0.0
      %2090 = vmatpush1.msra.mxu0 0.0
      %2091 = vmatprep.subr.mxu0 0.0
      %2092 = vmatpush1.msra.mxu0 0.0
      %2093 = vmatprep.subr.mxu0 0.0
      %2094 = vmatpush1.msra.mxu0 0.0
      %2095 = vmatprep.mubr.f32.mxu0 0.0
      %2096 = vmatmul.mubr.f32.gmra.mrb[0].mxu0 %v2029
      %v2097 = vpop.f32.mrb[0].mxu0
      %v2098 = vadd.f32 0.0, %v2097
      %v2099 = vpop.f32.mrb[0].mxu0
      %2100 = vdwg.mxu0
      %v2102 = vrot.slane %v2098, 7
      %v2104 = vadd.f32 %v1873, %v2102
      %v2105 = vrot.slane %v2098, 5
      %v2107 = vadd.f32 %v1873, %v2105
      %v2108 = vxor.u32 %v2104, 2147483648
      %v2109 = vmul.f32 %v2108, 1.442695
      %v2110 = vpow.pop %v2109
      %v2111 = vadd.f32 %v2110, 1.0
      %v2112 = vrcp.pop %v2111
      %v2113 = vmul.f32 1.0, %v2112
      %v2114 = vtanh.pop %v2104
      %v2115 = vxor.u32 %v2107, 2147483648
      %v2116 = vmul.f32 %v2115, 1.442695
      %v2117 = vpow.pop %v2116
      %v2118 = vadd.f32 %v2117, 1.0
      %v2119 = vrcp.pop %v2118
      %v2120 = vmul.f32 1.0, %v2119
      %v2121 = vtanh.pop %v2107
      %v2123 = vrot.slane %v1982, 7
      %v2125 = vmul.f32 %v2113, %v2123
      %2127 = vrot.lane.b32.xlu0 %v2114, 96
      %v2128 = vpop.permute.xlu0 %2127
      %v2130 = vmul.f32 %v2113, %v2128
      %2132 = vrot.lane.b32.xlu0 %v2130, 16
      %v2133 = vpop.permute.xlu0 %2132
      %v2135 = vadd.f32 %v2125, %v2133
      %v2136 = vtanh.pop %v2135
      %2138 = vrot.lane.b32.xlu0 %v2136, 32
      %v2139 = vpop.permute.xlu0 %2138
      %v2141 = vmul.f32 %v2113, %v2139
      %v2143 = vrot.slane %v1999, 1
      %v2145 = vmul.f32 %v2120, %v2143
      %2147 = vrot.lane.b32.xlu0 %v2121, 96
      %v2148 = vpop.permute.xlu0 %2147
      %v2150 = vmul.f32 %v2120, %v2148
      %2152 = vrot.lane.b32.xlu0 %v2150, 16
      %v2153 = vpop.permute.xlu0 %2152
      %v2155 = vadd.f32 %v2145, %v2153
      %v2156 = vtanh.pop %v2155
      %2158 = vrot.lane.b32.xlu0 %v2156, 32
      %v2159 = vpop.permute.xlu0 %2158
      %v2161 = vmul.f32 %v2120, %v2159
      %2163 = vrot.lane.b32.xlu0 %v2141, 80
      %v2164 = vpop.permute.xlu0 %2163
      %vm2166 = vcmask 123905
      %2167 = vst.msk [vmem:[#allocation4] sm:$0x2] %vm2166, %v2164
      %2169 = vrot.lane.b32.xlu0 %v2161, 32
      %v2170 = vpop.permute.xlu0 %2169
      %vm2172 = vcmask 257155
      %2173 = vst.msk [vmem:[#allocation4] sm:$0x8] %vm2172, %v2170
      %v2174 = vrot.slane %v2161, 2
      %2175 = vrot.lane.b32.xlu0 %v2174, 32
      %v2176 = vpop.permute.xlu0 %2175
      %v2178 = vsel %vm2022, %v2164, %v2176
      %v2179 = vld [vmem:[%s8] sm:$0xff]
      %v2180 = vld [vmem:[%s8 + $0x8] sm:$0xff]
      %v2181 = vld [vmem:[%s8 + $0x10] sm:$0xff]
      %v2182 = vld [vmem:[%s8 + $0x18] sm:$0xff]
      %v2184 = vrot.slane %v2178, 1
      %v2185 = vsel %vm1236, %v2184, 0
      %2187 = vmatprep.subr.mxu0 0.0
      %2188 = vmatpush1.msra.mxu0 %v2179
      %2189 = vmatprep.subr.mxu0 0.0
      %2190 = vmatpush1.msra.mxu0 %v2180
      %2191 = vmatprep.subr.mxu0 0.0
      %2192 = vmatpush1.msra.mxu0 %v2181
      %2193 = vmatprep.subr.mxu0 0.0
      %2194 = vmatpush1.msra.mxu0 %v2182
      %2195 = vmatprep.subr.mxu0 0.0
      %2196 = vmatpush1.msra.mxu0 0.0
      %2197 = vmatprep.subr.mxu0 0.0
      %2198 = vmatpush1.msra.mxu0 0.0
      %2199 = vmatprep.subr.mxu0 0.0
      %2200 = vmatpush1.msra.mxu0 0.0
      %2201 = vmatprep.subr.mxu0 0.0
      %2202 = vmatpush1.msra.mxu0 0.0
      %2203 = vmatprep.subr.mxu0 0.0
      %2204 = vmatpush1.msra.mxu0 0.0
      %2205 = vmatprep.subr.mxu0 0.0
      %2206 = vmatpush1.msra.mxu0 0.0
      %2207 = vmatprep.subr.mxu0 0.0
      %2208 = vmatpush1.msra.mxu0 0.0
      %2209 = vmatprep.subr.mxu0 0.0
      %2210 = vmatpush1.msra.mxu0 0.0
      %2211 = vmatprep.subr.mxu0 0.0
      %2212 = vmatpush1.msra.mxu0 0.0
      %2213 = vmatprep.subr.mxu0 0.0
      %2214 = vmatpush1.msra.mxu0 0.0
      %2215 = vmatprep.subr.mxu0 0.0
      %2216 = vmatpush1.msra.mxu0 0.0
      %2217 = vmatprep.subr.mxu0 0.0
      %2218 = vmatpush1.msra.mxu0 0.0
      %2219 = vmatprep.subr.mxu0 0.0
      %2220 = vmatpush1.msra.mxu0 0.0
      %2221 = vmatprep.subr.mxu0 0.0
      %2222 = vmatpush1.msra.mxu0 0.0
      %2223 = vmatprep.subr.mxu0 0.0
      %2224 = vmatpush1.msra.mxu0 0.0
      %2225 = vmatprep.subr.mxu0 0.0
      %2226 = vmatpush1.msra.mxu0 0.0
      %2227 = vmatprep.subr.mxu0 0.0
      %2228 = vmatpush1.msra.mxu0 0.0
      %2229 = vmatprep.subr.mxu0 0.0
      %2230 = vmatpush1.msra.mxu0 0.0
      %2231 = vmatprep.subr.mxu0 0.0
      %2232 = vmatpush1.msra.mxu0 0.0
      %2233 = vmatprep.subr.mxu0 0.0
      %2234 = vmatpush1.msra.mxu0 0.0
      %2235 = vmatprep.subr.mxu0 0.0
      %2236 = vmatpush1.msra.mxu0 0.0
      %2237 = vmatprep.subr.mxu0 0.0
      %2238 = vmatpush1.msra.mxu0 0.0
      %2239 = vmatprep.subr.mxu0 0.0
      %2240 = vmatpush1.msra.mxu0 0.0
      %2241 = vmatprep.subr.mxu0 0.0
      %2242 = vmatpush1.msra.mxu0 0.0
      %2243 = vmatprep.subr.mxu0 0.0
      %2244 = vmatpush1.msra.mxu0 0.0
      %2245 = vmatprep.subr.mxu0 0.0
      %2246 = vmatpush1.msra.mxu0 0.0
      %2247 = vmatprep.subr.mxu0 0.0
      %2248 = vmatpush1.msra.mxu0 0.0
      %2249 = vmatprep.subr.mxu0 0.0
      %2250 = vmatpush1.msra.mxu0 0.0
      %2251 = vmatprep.mubr.f32.mxu0 0.0
      %2252 = vmatmul.mubr.f32.gmra.mrb[0].mxu0 %v2185
      %v2253 = vpop.f32.mrb[0].mxu0
      %v2254 = vadd.f32 0.0, %v2253
      %v2255 = vpop.f32.mrb[0].mxu0
      %2256 = vdwg.mxu0
      %v2258 = vrot.slane %v2254, 6
      %v2260 = vadd.f32 %v1873, %v2258
      %v2261 = vxor.u32 %v2260, 2147483648
      %v2262 = vmul.f32 %v2261, 1.442695
      %v2263 = vpow.pop %v2262
      %v2264 = vadd.f32 %v2263, 1.0
      %v2265 = vrcp.pop %v2264
      %v2266 = vmul.f32 1.0, %v2265
      %v2267 = vtanh.pop %v2260
      %v2269 = vrot.slane %v2135, 7
      %v2271 = vmul.f32 %v2266, %v2269
      %2273 = vrot.lane.b32.xlu0 %v2267, 96
      %v2274 = vpop.permute.xlu0 %2273
      %v2276 = vmul.f32 %v2266, %v2274
      %2278 = vrot.lane.b32.xlu0 %v2276, 16
      %v2279 = vpop.permute.xlu0 %2278
      %v2281 = vadd.f32 %v2271, %v2279
      %v2282 = vtanh.pop %v2281
      %2284 = vrot.lane.b32.xlu0 %v2282, 32
      %v2285 = vpop.permute.xlu0 %2284
      %v2287 = vmul.f32 %v2266, %v2285
      %v2289 = vrot.slane %v2155, 1
      %v2291 = vmul.f32 %v2266, %v2289
      %v2292 = vadd.f32 %v2291, %v2279
      %v2293 = vtanh.pop %v2292
      %2295 = vrot.lane.b32.xlu0 %v2293, 32
      %v2296 = vpop.permute.xlu0 %2295
      %v2298 = vmul.f32 %v2266, %v2296
      %2300 = vrot.lane.b32.xlu0 %v2287, 80
      %v2301 = vpop.permute.xlu0 %2300
      %vm2303 = vcmask 124930
      %2304 = vst.msk [vmem:[#allocation4] sm:$0x4] %vm2303, %v2301
      %2306 = vrot.lane.b32.xlu0 %v2298, 32
      %v2307 = vpop.permute.xlu0 %2306
      %vm2309 = vcmask 256130
      %2310 = vst.msk [vmem:[#allocation4] sm:$0x4] %vm2309, %v2307
      %v2311 = vsel %vm2022, %v2301, %v2307
      %v2312 = vld [vmem:[%s8] sm:$0xff]
      %v2313 = vld [vmem:[%s8 + $0x8] sm:$0xff]
      %v2314 = vld [vmem:[%s8 + $0x10] sm:$0xff]
      %v2315 = vld [vmem:[%s8 + $0x18] sm:$0xff]
      %v2317 = vrot.slane %v2311, 2
      %v2318 = vsel %vm1236, %v2317, 0
      %2320 = vmatprep.subr.mxu0 0.0
      %2321 = vmatpush1.msra.mxu0 %v2312
      %2322 = vmatprep.subr.mxu0 0.0
      %2323 = vmatpush1.msra.mxu0 %v2313
      %2324 = vmatprep.subr.mxu0 0.0
      %2325 = vmatpush1.msra.mxu0 %v2314
      %2326 = vmatprep.subr.mxu0 0.0
      %2327 = vmatpush1.msra.mxu0 %v2315
      %2328 = vmatprep.subr.mxu0 0.0
      %2329 = vmatpush1.msra.mxu0 0.0
      %2330 = vmatprep.subr.mxu0 0.0
      %2331 = vmatpush1.msra.mxu0 0.0
      %2332 = vmatprep.subr.mxu0 0.0
      %2333 = vmatpush1.msra.mxu0 0.0
      %2334 = vmatprep.subr.mxu0 0.0
      %2335 = vmatpush1.msra.mxu0 0.0
      %2336 = vmatprep.subr.mxu0 0.0
      %2337 = vmatpush1.msra.mxu0 0.0
      %2338 = vmatprep.subr.mxu0 0.0
      %2339 = vmatpush1.msra.mxu0 0.0
      %2340 = vmatprep.subr.mxu0 0.0
      %2341 = vmatpush1.msra.mxu0 0.0
      %2342 = vmatprep.subr.mxu0 0.0
      %2343 = vmatpush1.msra.mxu0 0.0
      %2344 = vmatprep.subr.mxu0 0.0
      %2345 = vmatpush1.msra.mxu0 0.0
      %2346 = vmatprep.subr.mxu0 0.0
      %2347 = vmatpush1.msra.mxu0 0.0
      %2348 = vmatprep.subr.mxu0 0.0
      %2349 = vmatpush1.msra.mxu0 0.0
      %2350 = vmatprep.subr.mxu0 0.0
      %2351 = vmatpush1.msra.mxu0 0.0
      %2352 = vmatprep.subr.mxu0 0.0
      %2353 = vmatpush1.msra.mxu0 0.0
      %2354 = vmatprep.subr.mxu0 0.0
      %2355 = vmatpush1.msra.mxu0 0.0
      %2356 = vmatprep.subr.mxu0 0.0
      %2357 = vmatpush1.msra.mxu0 0.0
      %2358 = vmatprep.subr.mxu0 0.0
      %2359 = vmatpush1.msra.mxu0 0.0
      %2360 = vmatprep.subr.mxu0 0.0
      %2361 = vmatpush1.msra.mxu0 0.0
      %2362 = vmatprep.subr.mxu0 0.0
      %2363 = vmatpush1.msra.mxu0 0.0
      %2364 = vmatprep.subr.mxu0 0.0
      %2365 = vmatpush1.msra.mxu0 0.0
      %2366 = vmatprep.subr.mxu0 0.0
      %2367 = vmatpush1.msra.mxu0 0.0
      %2368 = vmatprep.subr.mxu0 0.0
      %2369 = vmatpush1.msra.mxu0 0.0
      %2370 = vmatprep.subr.mxu0 0.0
      %2371 = vmatpush1.msra.mxu0 0.0
      %2372 = vmatprep.subr.mxu0 0.0
      %2373 = vmatpush1.msra.mxu0 0.0
      %2374 = vmatprep.subr.mxu0 0.0
      %2375 = vmatpush1.msra.mxu0 0.0
      %2376 = vmatprep.subr.mxu0 0.0
      %2377 = vmatpush1.msra.mxu0 0.0
      %2378 = vmatprep.subr.mxu0 0.0
      %2379 = vmatpush1.msra.mxu0 0.0
      %2380 = vmatprep.subr.mxu0 0.0
      %2381 = vmatpush1.msra.mxu0 0.0
      %2382 = vmatprep.subr.mxu0 0.0
      %2383 = vmatpush1.msra.mxu0 0.0
      %2384 = vmatprep.mubr.f32.mxu0 0.0
      %2385 = vmatmul.mubr.f32.gmra.mrb[0].mxu0 %v2318
      %v2386 = vpop.f32.mrb[0].mxu0
      %v2387 = vadd.f32 0.0, %v2386
      %v2388 = vpop.f32.mrb[0].mxu0
      %2389 = vdwg.mxu0
      %v2391 = vrot.slane %v2387, 5
      %v2393 = vadd.f32 %v1873, %v2391
      %v2394 = vrot.slane %v2387, 7
      %v2396 = vadd.f32 %v1873, %v2394
      %v2397 = vxor.u32 %v2393, 2147483648
      %v2398 = vmul.f32 %v2397, 1.442695
      %v2399 = vpow.pop %v2398
      %v2400 = vadd.f32 %v2399, 1.0
      %v2401 = vrcp.pop %v2400
      %v2402 = vmul.f32 1.0, %v2401
      %v2403 = vtanh.pop %v2393
      %v2404 = vxor.u32 %v2396, 2147483648
      %v2405 = vmul.f32 %v2404, 1.442695
      %v2406 = vpow.pop %v2405
      %v2407 = vadd.f32 %v2406, 1.0
      %v2408 = vrcp.pop %v2407
      %v2409 = vmul.f32 1.0, %v2408
      %v2410 = vtanh.pop %v2396
      %v2412 = vrot.slane %v2281, 7
      %v2414 = vmul.f32 %v2402, %v2412
      %2416 = vrot.lane.b32.xlu0 %v2403, 96
      %v2417 = vpop.permute.xlu0 %2416
      %v2419 = vmul.f32 %v2402, %v2417
      %2421 = vrot.lane.b32.xlu0 %v2419, 16
      %v2422 = vpop.permute.xlu0 %2421
      %v2424 = vadd.f32 %v2414, %v2422
      %v2425 = vtanh.pop %v2424
      %2427 = vrot.lane.b32.xlu0 %v2425, 32
      %v2428 = vpop.permute.xlu0 %2427
      %v2430 = vmul.f32 %v2402, %v2428
      %v2432 = vrot.slane %v2292, 1
      %v2434 = vmul.f32 %v2409, %v2432
      %2436 = vrot.lane.b32.xlu0 %v2410, 96
      %v2437 = vpop.permute.xlu0 %2436
      %v2439 = vmul.f32 %v2409, %v2437
      %2441 = vrot.lane.b32.xlu0 %v2439, 16
      %v2442 = vpop.permute.xlu0 %2441
      %v2444 = vadd.f32 %v2434, %v2442
      %v2445 = vtanh.pop %v2444
      %2447 = vrot.lane.b32.xlu0 %v2445, 32
      %v2448 = vpop.permute.xlu0 %2447
      %v2450 = vmul.f32 %v2409, %v2448
      %2452 = vrot.lane.b32.xlu0 %v2430, 80
      %v2453 = vpop.permute.xlu0 %2452
      %vm2455 = vcmask 125955
      %2456 = vst.msk [vmem:[#allocation4] sm:$0x8] %vm2455, %v2453
      %2458 = vrot.lane.b32.xlu0 %v2450, 32
      %v2459 = vpop.permute.xlu0 %2458
      %vm2461 = vcmask 255105
      %2462 = vst.msk [vmem:[#allocation4] sm:$0x2] %vm2461, %v2459
      %v2463 = vrot.slane %v2450, 6
      %2464 = vrot.lane.b32.xlu0 %v2463, 32
      %v2465 = vpop.permute.xlu0 %2464
      %v2467 = vsel %vm2022, %v2453, %v2465
      %v2468 = vld [vmem:[%s8] sm:$0xff]
      %v2469 = vld [vmem:[%s8 + $0x8] sm:$0xff]
      %v2470 = vld [vmem:[%s8 + $0x10] sm:$0xff]
      %v2471 = vld [vmem:[%s8 + $0x18] sm:$0xff]
      %v2473 = vrot.slane %v2467, 3
      %v2474 = vsel %vm1236, %v2473, 0
      %2476 = vmatprep.subr.mxu0 0.0
      %2477 = vmatpush1.msra.mxu0 %v2468
      %2478 = vmatprep.subr.mxu0 0.0
      %2479 = vmatpush1.msra.mxu0 %v2469
      %2480 = vmatprep.subr.mxu0 0.0
      %2481 = vmatpush1.msra.mxu0 %v2470
      %2482 = vmatprep.subr.mxu0 0.0
      %2483 = vmatpush1.msra.mxu0 %v2471
      %2484 = vmatprep.subr.mxu0 0.0
      %2485 = vmatpush1.msra.mxu0 0.0
      %2486 = vmatprep.subr.mxu0 0.0
      %2487 = vmatpush1.msra.mxu0 0.0
      %2488 = vmatprep.subr.mxu0 0.0
      %2489 = vmatpush1.msra.mxu0 0.0
      %2490 = vmatprep.subr.mxu0 0.0
      %2491 = vmatpush1.msra.mxu0 0.0
      %2492 = vmatprep.subr.mxu0 0.0
      %2493 = vmatpush1.msra.mxu0 0.0
      %2494 = vmatprep.subr.mxu0 0.0
      %2495 = vmatpush1.msra.mxu0 0.0
      %2496 = vmatprep.subr.mxu0 0.0
      %2497 = vmatpush1.msra.mxu0 0.0
      %2498 = vmatprep.subr.mxu0 0.0
      %2499 = vmatpush1.msra.mxu0 0.0
      %2500 = vmatprep.subr.mxu0 0.0
      %2501 = vmatpush1.msra.mxu0 0.0
      %2502 = vmatprep.subr.mxu0 0.0
      %2503 = vmatpush1.msra.mxu0 0.0
      %2504 = vmatprep.subr.mxu0 0.0
      %2505 = vmatpush1.msra.mxu0 0.0
      %2506 = vmatprep.subr.mxu0 0.0
      %2507 = vmatpush1.msra.mxu0 0.0
      %2508 = vmatprep.subr.mxu0 0.0
      %2509 = vmatpush1.msra.mxu0 0.0
      %2510 = vmatprep.subr.mxu0 0.0
      %2511 = vmatpush1.msra.mxu0 0.0
      %2512 = vmatprep.subr.mxu0 0.0
      %2513 = vmatpush1.msra.mxu0 0.0
      %2514 = vmatprep.subr.mxu0 0.0
      %2515 = vmatpush1.msra.mxu0 0.0
      %2516 = vmatprep.subr.mxu0 0.0
      %2517 = vmatpush1.msra.mxu0 0.0
      %2518 = vmatprep.subr.mxu0 0.0
      %2519 = vmatpush1.msra.mxu0 0.0
      %2520 = vmatprep.subr.mxu0 0.0
      %2521 = vmatpush1.msra.mxu0 0.0
      %2522 = vmatprep.subr.mxu0 0.0
      %2523 = vmatpush1.msra.mxu0 0.0
      %2524 = vmatprep.subr.mxu0 0.0
      %2525 = vmatpush1.msra.mxu0 0.0
      %2526 = vmatprep.subr.mxu0 0.0
      %2527 = vmatpush1.msra.mxu0 0.0
      %2528 = vmatprep.subr.mxu0 0.0
      %2529 = vmatpush1.msra.mxu0 0.0
      %2530 = vmatprep.subr.mxu0 0.0
      %2531 = vmatpush1.msra.mxu0 0.0
      %2532 = vmatprep.subr.mxu0 0.0
      %2533 = vmatpush1.msra.mxu0 0.0
      %2534 = vmatprep.subr.mxu0 0.0
      %2535 = vmatpush1.msra.mxu0 0.0
      %2536 = vmatprep.subr.mxu0 0.0
      %2537 = vmatpush1.msra.mxu0 0.0
      %2538 = vmatprep.subr.mxu0 0.0
      %2539 = vmatpush1.msra.mxu0 0.0
      %2540 = vmatprep.mubr.f32.mxu0 0.0
      %2541 = vmatmul.mubr.f32.gmra.mrb[0].mxu0 %v2474
      %v2542 = vpop.f32.mrb[0].mxu0
      %v2543 = vadd.f32 0.0, %v2542
      %v2544 = vpop.f32.mrb[0].mxu0
      %2545 = vdwg.mxu0
      %v2547 = vrot.slane %v2543, 4
      %v2549 = vadd.f32 %v1873, %v2547
      %v2550 = vadd.f32 %v1873, %v2543
      %v2551 = vxor.u32 %v2549, 2147483648
      %v2552 = vmul.f32 %v2551, 1.442695
      %v2553 = vpow.pop %v2552
      %v2554 = vadd.f32 %v2553, 1.0
      %v2555 = vrcp.pop %v2554
      %v2556 = vmul.f32 1.0, %v2555
      %v2557 = vtanh.pop %v2549
      %v2558 = vxor.u32 %v2550, 2147483648
      %v2559 = vmul.f32 %v2558, 1.442695
      %v2560 = vpow.pop %v2559
      %v2561 = vadd.f32 %v2560, 1.0
      %v2562 = vrcp.pop %v2561
      %v2563 = vmul.f32 1.0, %v2562
      %v2564 = vtanh.pop %v2550
      %v2566 = vrot.slane %v2424, 7
      %v2568 = vmul.f32 %v2556, %v2566
      %2570 = vrot.lane.b32.xlu0 %v2557, 96
      %v2571 = vpop.permute.xlu0 %2570
      %v2573 = vmul.f32 %v2556, %v2571
      %2575 = vrot.lane.b32.xlu0 %v2573, 16
      %v2576 = vpop.permute.xlu0 %2575
      %v2578 = vadd.f32 %v2568, %v2576
      %v2579 = vtanh.pop %v2578
      %2581 = vrot.lane.b32.xlu0 %v2579, 32
      %v2582 = vpop.permute.xlu0 %2581
      %v2584 = vmul.f32 %v2556, %v2582
      %v2586 = vrot.slane %v2444, 1
      %v2588 = vmul.f32 %v2563, %v2586
      %2590 = vrot.lane.b32.xlu0 %v2564, 96
      %v2591 = vpop.permute.xlu0 %2590
      %v2593 = vmul.f32 %v2563, %v2591
      %2595 = vrot.lane.b32.xlu0 %v2593, 16
      %v2596 = vpop.permute.xlu0 %2595
      %v2598 = vadd.f32 %v2588, %v2596
      %v2599 = vtanh.pop %v2598
      %2601 = vrot.lane.b32.xlu0 %v2599, 32
      %v2602 = vpop.permute.xlu0 %2601
      %v2604 = vmul.f32 %v2563, %v2602
      %2606 = vrot.lane.b32.xlu0 %v2584, 80
      %v2607 = vpop.permute.xlu0 %2606
      %vm2609 = vcmask 126980
      %2610 = vst.msk [vmem:[#allocation4] sm:$0x10] %vm2609, %v2607
      %2612 = vrot.lane.b32.xlu0 %v2604, 32
      %v2613 = vpop.permute.xlu0 %2612
      %vm2615 = vcmask 254080
      %2616 = vst.msk [vmem:[#allocation4] sm:$0x1] %vm2615, %v2613
      %v2617 = vld [vmem:[#allocation4] sm:$0x1f]
      %v2618 = vld [vmem:[%s10] sm:$0xff]
      %v2619 = vld [vmem:[%s10 + $0x8] sm:$0xff]
      %v2620 = vld [vmem:[%s10 + $0x10] sm:$0xff]
      %v2621 = vld [vmem:[%s10 + $0x18] sm:$0xff]
      %v2622 = vld [vmem:[%s12] sm:$0x1]
      %v2624 = vlaneseq
      %v2625 = vshrl.u32 %v2624, 7
      %v2626 = vsub.s32 0, %v2625
      %v2627 = vrot.slane %v2622, %v2626
      %v2630 = vsel %vm1236, %v2617, 0
      %2632 = vmatprep.subr.mxu0 0.0
      %2633 = vmatpush1.msra.mxu0 %v2618
      %2634 = vmatprep.subr.mxu0 0.0
      %2635 = vmatpush1.msra.mxu0 %v2619
      %2636 = vmatprep.subr.mxu0 0.0
      %2637 = vmatpush1.msra.mxu0 %v2620
      %2638 = vmatprep.subr.mxu0 0.0
      %2639 = vmatpush1.msra.mxu0 %v2621
      %2640 = vmatprep.subr.mxu0 0.0
      %2641 = vmatpush1.msra.mxu0 0.0
      %2642 = vmatprep.subr.mxu0 0.0
      %2643 = vmatpush1.msra.mxu0 0.0
      %2644 = vmatprep.subr.mxu0 0.0
      %2645 = vmatpush1.msra.mxu0 0.0
      %2646 = vmatprep.subr.mxu0 0.0
      %2647 = vmatpush1.msra.mxu0 0.0
      %2648 = vmatprep.subr.mxu0 0.0
      %2649 = vmatpush1.msra.mxu0 0.0
      %2650 = vmatprep.subr.mxu0 0.0
      %2651 = vmatpush1.msra.mxu0 0.0
      %2652 = vmatprep.subr.mxu0 0.0
      %2653 = vmatpush1.msra.mxu0 0.0
      %2654 = vmatprep.subr.mxu0 0.0
      %2655 = vmatpush1.msra.mxu0 0.0
      %2656 = vmatprep.subr.mxu0 0.0
      %2657 = vmatpush1.msra.mxu0 0.0
      %2658 = vmatprep.subr.mxu0 0.0
      %2659 = vmatpush1.msra.mxu0 0.0
      %2660 = vmatprep.subr.mxu0 0.0
      %2661 = vmatpush1.msra.mxu0 0.0
      %2662 = vmatprep.subr.mxu0 0.0
      %2663 = vmatpush1.msra.mxu0 0.0
      %2664 = vmatprep.subr.mxu0 0.0
      %2665 = vmatpush1.msra.mxu0 0.0
      %2666 = vmatprep.subr.mxu0 0.0
      %2667 = vmatpush1.msra.mxu0 0.0
      %2668 = vmatprep.subr.mxu0 0.0
      %2669 = vmatpush1.msra.mxu0 0.0
      %2670 = vmatprep.subr.mxu0 0.0
      %2671 = vmatpush1.msra.mxu0 0.0
      %2672 = vmatprep.subr.mxu0 0.0
      %2673 = vmatpush1.msra.mxu0 0.0
      %2674 = vmatprep.subr.mxu0 0.0
      %2675 = vmatpush1.msra.mxu0 0.0
      %2676 = vmatprep.subr.mxu0 0.0
      %2677 = vmatpush1.msra.mxu0 0.0
      %2678 = vmatprep.subr.mxu0 0.0
      %2679 = vmatpush1.msra.mxu0 0.0
      %2680 = vmatprep.subr.mxu0 0.0
      %2681 = vmatpush1.msra.mxu0 0.0
      %2682 = vmatprep.subr.mxu0 0.0
      %2683 = vmatpush1.msra.mxu0 0.0
      %2684 = vmatprep.subr.mxu0 0.0
      %2685 = vmatpush1.msra.mxu0 0.0
      %2686 = vmatprep.subr.mxu0 0.0
      %2687 = vmatpush1.msra.mxu0 0.0
      %2688 = vmatprep.subr.mxu0 0.0
      %2689 = vmatpush1.msra.mxu0 0.0
      %2690 = vmatprep.subr.mxu0 0.0
      %2691 = vmatpush1.msra.mxu0 0.0
      %2692 = vmatprep.subr.mxu0 0.0
      %2693 = vmatpush1.msra.mxu0 0.0
      %2694 = vmatprep.subr.mxu0 0.0
      %2695 = vmatpush1.msra.mxu0 0.0
      %2696 = vmatprep.mubr.f32.mxu0 0.0
      %2697 = vmatmul.mubr.f32.gmra.mrb[0].mxu0 %v2630
      %v2698 = vpop.f32.mrb[0].mxu0
      %v2699 = vadd.f32 %v2627, %v2698
      %v2700 = vpop.f32.mrb[0].mxu0
      %2701 = vdwg.mxu0
      %v2702 = vld [vmem:[%s11] sm:$0xff]
      %v2703 = vld [vmem:[%s11 + $0x8] sm:$0xff]
      %v2704 = vld [vmem:[%s11 + $0x10] sm:$0xff]
      %v2705 = vld [vmem:[%s11 + $0x18] sm:$0xff]
      %2706 = vmatprep.subr.mxu0 0.0
      %2707 = vmatpush1.msra.mxu0 %v2702
      %2708 = vmatprep.subr.mxu0 0.0
      %2709 = vmatpush1.msra.mxu0 %v2703
      %2710 = vmatprep.subr.mxu0 0.0
      %2711 = vmatpush1.msra.mxu0 %v2704
      %2712 = vmatprep.subr.mxu0 0.0
      %2713 = vmatpush1.msra.mxu0 %v2705
      %2714 = vmatprep.subr.mxu0 0.0
      %2715 = vmatpush1.msra.mxu0 0.0
      %2716 = vmatprep.subr.mxu0 0.0
      %2717 = vmatpush1.msra.mxu0 0.0
      %2718 = vmatprep.subr.mxu0 0.0
      %2719 = vmatpush1.msra.mxu0 0.0
      %2720 = vmatprep.subr.mxu0 0.0
      %2721 = vmatpush1.msra.mxu0 0.0
      %2722 = vmatprep.subr.mxu0 0.0
      %2723 = vmatpush1.msra.mxu0 0.0
      %2724 = vmatprep.subr.mxu0 0.0
      %2725 = vmatpush1.msra.mxu0 0.0
      %2726 = vmatprep.subr.mxu0 0.0
      %2727 = vmatpush1.msra.mxu0 0.0
      %2728 = vmatprep.subr.mxu0 0.0
      %2729 = vmatpush1.msra.mxu0 0.0
      %2730 = vmatprep.subr.mxu0 0.0
      %2731 = vmatpush1.msra.mxu0 0.0
      %2732 = vmatprep.subr.mxu0 0.0
      %2733 = vmatpush1.msra.mxu0 0.0
      %2734 = vmatprep.subr.mxu0 0.0
      %2735 = vmatpush1.msra.mxu0 0.0
      %2736 = vmatprep.subr.mxu0 0.0
      %2737 = vmatpush1.msra.mxu0 0.0
      %2738 = vmatprep.subr.mxu0 0.0
      %2739 = vmatpush1.msra.mxu0 0.0
      %2740 = vmatprep.subr.mxu0 0.0
      %2741 = vmatpush1.msra.mxu0 0.0
      %2742 = vmatprep.subr.mxu0 0.0
      %2743 = vmatpush1.msra.mxu0 0.0
      %2744 = vmatprep.subr.mxu0 0.0
      %2745 = vmatpush1.msra.mxu0 0.0
      %2746 = vmatprep.subr.mxu0 0.0
      %2747 = vmatpush1.msra.mxu0 0.0
      %2748 = vmatprep.subr.mxu0 0.0
      %2749 = vmatpush1.msra.mxu0 0.0
      %2750 = vmatprep.subr.mxu0 0.0
      %2751 = vmatpush1.msra.mxu0 0.0
      %2752 = vmatprep.subr.mxu0 0.0
      %2753 = vmatpush1.msra.mxu0 0.0
      %2754 = vmatprep.subr.mxu0 0.0
      %2755 = vmatpush1.msra.mxu0 0.0
      %2756 = vmatprep.subr.mxu0 0.0
      %2757 = vmatpush1.msra.mxu0 0.0
      %2758 = vmatprep.subr.mxu0 0.0
      %2759 = vmatpush1.msra.mxu0 0.0
      %2760 = vmatprep.subr.mxu0 0.0
      %2761 = vmatpush1.msra.mxu0 0.0
      %2762 = vmatprep.subr.mxu0 0.0
      %2763 = vmatpush1.msra.mxu0 0.0
      %2764 = vmatprep.subr.mxu0 0.0
      %2765 = vmatpush1.msra.mxu0 0.0
      %2766 = vmatprep.subr.mxu0 0.0
      %2767 = vmatpush1.msra.mxu0 0.0
      %2768 = vmatprep.subr.mxu0 0.0
      %2769 = vmatpush1.msra.mxu0 0.0
      %2770 = vmatprep.mubr.f32.mxu0 0.0
      %2771 = vmatmul.mubr.f32.gmra.mrb[0].mxu0 %v1881
      %v2772 = vpop.f32.mrb[0].mxu0
      %v2773 = vadd.f32 0.0, %v2772
      %v2774 = vpop.f32.mrb[0].mxu0
      %2775 = vdwg.mxu0
      %v2776 = vadd.f32 %v2699, %v2773
      %v2778 = vrot.slane %v2773, 4
      %v2780 = vadd.f32 %v2699, %v2778
      %v2781 = vxor.u32 %v2776, 2147483648
      %v2782 = vmul.f32 %v2781, 1.442695
      %v2783 = vpow.pop %v2782
      %v2784 = vadd.f32 %v2783, 1.0
      %v2785 = vrcp.pop %v2784
      %v2786 = vmul.f32 1.0, %v2785
      %v2787 = vtanh.pop %v2776
      %v2788 = vxor.u32 %v2780, 2147483648
      %v2789 = vmul.f32 %v2788, 1.442695
      %v2790 = vpow.pop %v2789
      %v2791 = vadd.f32 %v2790, 1.0
      %v2792 = vrcp.pop %v2791
      %v2793 = vmul.f32 1.0, %v2792
      %v2794 = vtanh.pop %v2780
      %v2795 = vmul.f32 %v2786, 0.0
      %2797 = vrot.lane.b32.xlu0 %v2787, 96
      %v2798 = vpop.permute.xlu0 %2797
      %v2800 = vmul.f32 %v2786, %v2798
      %2802 = vrot.lane.b32.xlu0 %v2800, 16
      %v2803 = vpop.permute.xlu0 %2802
      %v2805 = vadd.f32 %v2795, %v2803
      %v2806 = vtanh.pop %v2805
      %2808 = vrot.lane.b32.xlu0 %v2806, 32
      %v2809 = vpop.permute.xlu0 %2808
      %v2811 = vmul.f32 %v2786, %v2809
      %v2812 = vmul.f32 %v2793, 0.0
      %2814 = vrot.lane.b32.xlu0 %v2794, 96
      %v2815 = vpop.permute.xlu0 %2814
      %v2817 = vmul.f32 %v2793, %v2815
      %2819 = vrot.lane.b32.xlu0 %v2817, 16
      %v2820 = vpop.permute.xlu0 %2819
      %v2822 = vadd.f32 %v2812, %v2820
      %v2823 = vtanh.pop %v2822
      %2825 = vrot.lane.b32.xlu0 %v2823, 32
      %v2826 = vpop.permute.xlu0 %2825
      %v2828 = vmul.f32 %v2793, %v2826
      %2830 = vrot.lane.b32.xlu0 %v2811, 80
      %v2831 = vpop.permute.xlu0 %2830
      %2833 = vst.msk [vmem:[#allocation5] sm:$0x1] %vm2010, %v2831
      %2835 = vrot.lane.b32.xlu0 %v2828, 32
      %v2836 = vpop.permute.xlu0 %2835
      %2838 = vst.msk [vmem:[#allocation5] sm:$0x10] %vm2016, %v2836
      %v2839 = vrot.slane %v2828, 4
      %2840 = vrot.lane.b32.xlu0 %v2839, 32
      %v2841 = vpop.permute.xlu0 %2840
      %v2843 = vsel %vm2022, %v2831, %v2841
      %v2844 = vld [vmem:[%s11] sm:$0xff]
      %v2845 = vld [vmem:[%s11 + $0x8] sm:$0xff]
      %v2846 = vld [vmem:[%s11 + $0x10] sm:$0xff]
      %v2847 = vld [vmem:[%s11 + $0x18] sm:$0xff]
      %v2849 = vsel %vm1236, %v2843, 0
      %2851 = vmatprep.subr.mxu0 0.0
      %2852 = vmatpush1.msra.mxu0 %v2844
      %2853 = vmatprep.subr.mxu0 0.0
      %2854 = vmatpush1.msra.mxu0 %v2845
      %2855 = vmatprep.subr.mxu0 0.0
      %2856 = vmatpush1.msra.mxu0 %v2846
      %2857 = vmatprep.subr.mxu0 0.0
      %2858 = vmatpush1.msra.mxu0 %v2847
      %2859 = vmatprep.subr.mxu0 0.0
      %2860 = vmatpush1.msra.mxu0 0.0
      %2861 = vmatprep.subr.mxu0 0.0
      %2862 = vmatpush1.msra.mxu0 0.0
      %2863 = vmatprep.subr.mxu0 0.0
      %2864 = vmatpush1.msra.mxu0 0.0
      %2865 = vmatprep.subr.mxu0 0.0
      %2866 = vmatpush1.msra.mxu0 0.0
      %2867 = vmatprep.subr.mxu0 0.0
      %2868 = vmatpush1.msra.mxu0 0.0
      %2869 = vmatprep.subr.mxu0 0.0
      %2870 = vmatpush1.msra.mxu0 0.0
      %2871 = vmatprep.subr.mxu0 0.0
      %2872 = vmatpush1.msra.mxu0 0.0
      %2873 = vmatprep.subr.mxu0 0.0
      %2874 = vmatpush1.msra.mxu0 0.0
      %2875 = vmatprep.subr.mxu0 0.0
      %2876 = vmatpush1.msra.mxu0 0.0
      %2877 = vmatprep.subr.mxu0 0.0
      %2878 = vmatpush1.msra.mxu0 0.0
      %2879 = vmatprep.subr.mxu0 0.0
      %2880 = vmatpush1.msra.mxu0 0.0
      %2881 = vmatprep.subr.mxu0 0.0
      %2882 = vmatpush1.msra.mxu0 0.0
      %2883 = vmatprep.subr.mxu0 0.0
      %2884 = vmatpush1.msra.mxu0 0.0
      %2885 = vmatprep.subr.mxu0 0.0
      %2886 = vmatpush1.msra.mxu0 0.0
      %2887 = vmatprep.subr.mxu0 0.0
      %2888 = vmatpush1.msra.mxu0 0.0
      %2889 = vmatprep.subr.mxu0 0.0
      %2890 = vmatpush1.msra.mxu0 0.0
      %2891 = vmatprep.subr.mxu0 0.0
      %2892 = vmatpush1.msra.mxu0 0.0
      %2893 = vmatprep.subr.mxu0 0.0
      %2894 = vmatpush1.msra.mxu0 0.0
      %2895 = vmatprep.subr.mxu0 0.0
      %2896 = vmatpush1.msra.mxu0 0.0
      %2897 = vmatprep.subr.mxu0 0.0
      %2898 = vmatpush1.msra.mxu0 0.0
      %2899 = vmatprep.subr.mxu0 0.0
      %2900 = vmatpush1.msra.mxu0 0.0
      %2901 = vmatprep.subr.mxu0 0.0
      %2902 = vmatpush1.msra.mxu0 0.0
      %2903 = vmatprep.subr.mxu0 0.0
      %2904 = vmatpush1.msra.mxu0 0.0
      %2905 = vmatprep.subr.mxu0 0.0
      %2906 = vmatpush1.msra.mxu0 0.0
      %2907 = vmatprep.subr.mxu0 0.0
      %2908 = vmatpush1.msra.mxu0 0.0
      %2909 = vmatprep.subr.mxu0 0.0
      %2910 = vmatpush1.msra.mxu0 0.0
      %2911 = vmatprep.subr.mxu0 0.0
      %2912 = vmatpush1.msra.mxu0 0.0
      %2913 = vmatprep.subr.mxu0 0.0
      %2914 = vmatpush1.msra.mxu0 0.0
      %2915 = vmatprep.mubr.f32.mxu0 0.0
      %2916 = vmatmul.mubr.f32.gmra.mrb[0].mxu0 %v2849
      %v2917 = vpop.f32.mrb[0].mxu0
      %v2918 = vadd.f32 0.0, %v2917
      %v2919 = vpop.f32.mrb[0].mxu0
      %2920 = vdwg.mxu0
      %v2922 = vrot.slane %v2918, 7
      %v2924 = vadd.f32 %v2699, %v2922
      %v2925 = vrot.slane %v2918, 5
      %v2927 = vadd.f32 %v2699, %v2925
      %v2928 = vxor.u32 %v2924, 2147483648
      %v2929 = vmul.f32 %v2928, 1.442695
      %v2930 = vpow.pop %v2929
      %v2931 = vadd.f32 %v2930, 1.0
      %v2932 = vrcp.pop %v2931
      %v2933 = vmul.f32 1.0, %v2932
      %v2934 = vtanh.pop %v2924
      %v2935 = vxor.u32 %v2927, 2147483648
      %v2936 = vmul.f32 %v2935, 1.442695
      %v2937 = vpow.pop %v2936
      %v2938 = vadd.f32 %v2937, 1.0
      %v2939 = vrcp.pop %v2938
      %v2940 = vmul.f32 1.0, %v2939
      %v2941 = vtanh.pop %v2927
      %v2943 = vrot.slane %v2805, 7
      %v2945 = vmul.f32 %v2933, %v2943
      %2947 = vrot.lane.b32.xlu0 %v2934, 96
      %v2948 = vpop.permute.xlu0 %2947
      %v2950 = vmul.f32 %v2933, %v2948
      %2952 = vrot.lane.b32.xlu0 %v2950, 16
      %v2953 = vpop.permute.xlu0 %2952
      %v2955 = vadd.f32 %v2945, %v2953
      %v2956 = vtanh.pop %v2955
      %2958 = vrot.lane.b32.xlu0 %v2956, 32
      %v2959 = vpop.permute.xlu0 %2958
      %v2961 = vmul.f32 %v2933, %v2959
      %v2963 = vrot.slane %v2822, 1
      %v2965 = vmul.f32 %v2940, %v2963
      %2967 = vrot.lane.b32.xlu0 %v2941, 96
      %v2968 = vpop.permute.xlu0 %2967
      %v2970 = vmul.f32 %v2940, %v2968
      %2972 = vrot.lane.b32.xlu0 %v2970, 16
      %v2973 = vpop.permute.xlu0 %2972
      %v2975 = vadd.f32 %v2965, %v2973
      %v2976 = vtanh.pop %v2975
      %2978 = vrot.lane.b32.xlu0 %v2976, 32
      %v2979 = vpop.permute.xlu0 %2978
      %v2981 = vmul.f32 %v2940, %v2979
      %2983 = vrot.lane.b32.xlu0 %v2961, 80
      %v2984 = vpop.permute.xlu0 %2983
      %2986 = vst.msk [vmem:[#allocation5] sm:$0x2] %vm2166, %v2984
      %2988 = vrot.lane.b32.xlu0 %v2981, 32
      %v2989 = vpop.permute.xlu0 %2988
      %2991 = vst.msk [vmem:[#allocation5] sm:$0x8] %vm2172, %v2989
      %v2992 = vrot.slane %v2981, 2
      %2993 = vrot.lane.b32.xlu0 %v2992, 32
      %v2994 = vpop.permute.xlu0 %2993
      %v2996 = vsel %vm2022, %v2984, %v2994
      %v2997 = vld [vmem:[%s11] sm:$0xff]
      %v2998 = vld [vmem:[%s11 + $0x8] sm:$0xff]
      %v2999 = vld [vmem:[%s11 + $0x10] sm:$0xff]
      %v3000 = vld [vmem:[%s11 + $0x18] sm:$0xff]
      %v3002 = vrot.slane %v2996, 1
      %v3003 = vsel %vm1236, %v3002, 0
      %3005 = vmatprep.subr.mxu0 0.0
      %3006 = vmatpush1.msra.mxu0 %v2997
      %3007 = vmatprep.subr.mxu0 0.0
      %3008 = vmatpush1.msra.mxu0 %v2998
      %3009 = vmatprep.subr.mxu0 0.0
      %3010 = vmatpush1.msra.mxu0 %v2999
      %3011 = vmatprep.subr.mxu0 0.0
      %3012 = vmatpush1.msra.mxu0 %v3000
      %3013 = vmatprep.subr.mxu0 0.0
      %3014 = vmatpush1.msra.mxu0 0.0
      %3015 = vmatprep.subr.mxu0 0.0
      %3016 = vmatpush1.msra.mxu0 0.0
      %3017 = vmatprep.subr.mxu0 0.0
      %3018 = vmatpush1.msra.mxu0 0.0
      %3019 = vmatprep.subr.mxu0 0.0
      %3020 = vmatpush1.msra.mxu0 0.0
      %3021 = vmatprep.subr.mxu0 0.0
      %3022 = vmatpush1.msra.mxu0 0.0
      %3023 = vmatprep.subr.mxu0 0.0
      %3024 = vmatpush1.msra.mxu0 0.0
      %3025 = vmatprep.subr.mxu0 0.0
      %3026 = vmatpush1.msra.mxu0 0.0
      %3027 = vmatprep.subr.mxu0 0.0
      %3028 = vmatpush1.msra.mxu0 0.0
      %3029 = vmatprep.subr.mxu0 0.0
      %3030 = vmatpush1.msra.mxu0 0.0
      %3031 = vmatprep.subr.mxu0 0.0
      %3032 = vmatpush1.msra.mxu0 0.0
      %3033 = vmatprep.subr.mxu0 0.0
      %3034 = vmatpush1.msra.mxu0 0.0
      %3035 = vmatprep.subr.mxu0 0.0
      %3036 = vmatpush1.msra.mxu0 0.0
      %3037 = vmatprep.subr.mxu0 0.0
      %3038 = vmatpush1.msra.mxu0 0.0
      %3039 = vmatprep.subr.mxu0 0.0
      %3040 = vmatpush1.msra.mxu0 0.0
      %3041 = vmatprep.subr.mxu0 0.0
      %3042 = vmatpush1.msra.mxu0 0.0
      %3043 = vmatprep.subr.mxu0 0.0
      %3044 = vmatpush1.msra.mxu0 0.0
      %3045 = vmatprep.subr.mxu0 0.0
      %3046 = vmatpush1.msra.mxu0 0.0
      %3047 = vmatprep.subr.mxu0 0.0
      %3048 = vmatpush1.msra.mxu0 0.0
      %3049 = vmatprep.subr.mxu0 0.0
      %3050 = vmatpush1.msra.mxu0 0.0
      %3051 = vmatprep.subr.mxu0 0.0
      %3052 = vmatpush1.msra.mxu0 0.0
      %3053 = vmatprep.subr.mxu0 0.0
      %3054 = vmatpush1.msra.mxu0 0.0
      %3055 = vmatprep.subr.mxu0 0.0
      %3056 = vmatpush1.msra.mxu0 0.0
      %3057 = vmatprep.subr.mxu0 0.0
      %3058 = vmatpush1.msra.mxu0 0.0
      %3059 = vmatprep.subr.mxu0 0.0
      %3060 = vmatpush1.msra.mxu0 0.0
      %3061 = vmatprep.subr.mxu0 0.0
      %3062 = vmatpush1.msra.mxu0 0.0
      %3063 = vmatprep.subr.mxu0 0.0
      %3064 = vmatpush1.msra.mxu0 0.0
      %3065 = vmatprep.subr.mxu0 0.0
      %3066 = vmatpush1.msra.mxu0 0.0
      %3067 = vmatprep.subr.mxu0 0.0
      %3068 = vmatpush1.msra.mxu0 0.0
      %3069 = vmatprep.mubr.f32.mxu0 0.0
      %3070 = vmatmul.mubr.f32.gmra.mrb[0].mxu0 %v3003
      %v3071 = vpop.f32.mrb[0].mxu0
      %v3072 = vadd.f32 0.0, %v3071
      %v3073 = vpop.f32.mrb[0].mxu0
      %3074 = vdwg.mxu0
      %v3076 = vrot.slane %v3072, 6
      %v3078 = vadd.f32 %v2699, %v3076
      %v3079 = vxor.u32 %v3078, 2147483648
      %v3080 = vmul.f32 %v3079, 1.442695
      %v3081 = vpow.pop %v3080
      %v3082 = vadd.f32 %v3081, 1.0
      %v3083 = vrcp.pop %v3082
      %v3084 = vmul.f32 1.0, %v3083
      %v3085 = vtanh.pop %v3078
      %v3087 = vrot.slane %v2955, 7
      %v3089 = vmul.f32 %v3084, %v3087
      %3091 = vrot.lane.b32.xlu0 %v3085, 96
      %v3092 = vpop.permute.xlu0 %3091
      %v3094 = vmul.f32 %v3084, %v3092
      %3096 = vrot.lane.b32.xlu0 %v3094, 16
      %v3097 = vpop.permute.xlu0 %3096
      %v3099 = vadd.f32 %v3089, %v3097
      %v3100 = vtanh.pop %v3099
      %3102 = vrot.lane.b32.xlu0 %v3100, 32
      %v3103 = vpop.permute.xlu0 %3102
      %v3105 = vmul.f32 %v3084, %v3103
      %v3107 = vrot.slane %v2975, 1
      %v3109 = vmul.f32 %v3084, %v3107
      %v3110 = vadd.f32 %v3109, %v3097
      %v3111 = vtanh.pop %v3110
      %3113 = vrot.lane.b32.xlu0 %v3111, 32
      %v3114 = vpop.permute.xlu0 %3113
      %v3116 = vmul.f32 %v3084, %v3114
      %3118 = vrot.lane.b32.xlu0 %v3105, 80
      %v3119 = vpop.permute.xlu0 %3118
      %3121 = vst.msk [vmem:[#allocation5] sm:$0x4] %vm2303, %v3119
      %3123 = vrot.lane.b32.xlu0 %v3116, 32
      %v3124 = vpop.permute.xlu0 %3123
      %3126 = vst.msk [vmem:[#allocation5] sm:$0x4] %vm2309, %v3124
      %v3127 = vsel %vm2022, %v3119, %v3124
      %v3128 = vld [vmem:[%s11] sm:$0xff]
      %v3129 = vld [vmem:[%s11 + $0x8] sm:$0xff]
      %v3130 = vld [vmem:[%s11 + $0x10] sm:$0xff]
      %v3131 = vld [vmem:[%s11 + $0x18] sm:$0xff]
      %v3133 = vrot.slane %v3127, 2
      %v3134 = vsel %vm1236, %v3133, 0
      %3136 = vmatprep.subr.mxu0 0.0
      %3137 = vmatpush1.msra.mxu0 %v3128
      %3138 = vmatprep.subr.mxu0 0.0
      %3139 = vmatpush1.msra.mxu0 %v3129
      %3140 = vmatprep.subr.mxu0 0.0
      %3141 = vmatpush1.msra.mxu0 %v3130
      %3142 = vmatprep.subr.mxu0 0.0
      %3143 = vmatpush1.msra.mxu0 %v3131
      %3144 = vmatprep.subr.mxu0 0.0
      %3145 = vmatpush1.msra.mxu0 0.0
      %3146 = vmatprep.subr.mxu0 0.0
      %3147 = vmatpush1.msra.mxu0 0.0
      %3148 = vmatprep.subr.mxu0 0.0
      %3149 = vmatpush1.msra.mxu0 0.0
      %3150 = vmatprep.subr.mxu0 0.0
      %3151 = vmatpush1.msra.mxu0 0.0
      %3152 = vmatprep.subr.mxu0 0.0
      %3153 = vmatpush1.msra.mxu0 0.0
      %3154 = vmatprep.subr.mxu0 0.0
      %3155 = vmatpush1.msra.mxu0 0.0
      %3156 = vmatprep.subr.mxu0 0.0
      %3157 = vmatpush1.msra.mxu0 0.0
      %3158 = vmatprep.subr.mxu0 0.0
      %3159 = vmatpush1.msra.mxu0 0.0
      %3160 = vmatprep.subr.mxu0 0.0
      %3161 = vmatpush1.msra.mxu0 0.0
      %3162 = vmatprep.subr.mxu0 0.0
      %3163 = vmatpush1.msra.mxu0 0.0
      %3164 = vmatprep.subr.mxu0 0.0
      %3165 = vmatpush1.msra.mxu0 0.0
      %3166 = vmatprep.subr.mxu0 0.0
      %3167 = vmatpush1.msra.mxu0 0.0
      %3168 = vmatprep.subr.mxu0 0.0
      %3169 = vmatpush1.msra.mxu0 0.0
      %3170 = vmatprep.subr.mxu0 0.0
      %3171 = vmatpush1.msra.mxu0 0.0
      %3172 = vmatprep.subr.mxu0 0.0
      %3173 = vmatpush1.msra.mxu0 0.0
      %3174 = vmatprep.subr.mxu0 0.0
      %3175 = vmatpush1.msra.mxu0 0.0
      %3176 = vmatprep.subr.mxu0 0.0
      %3177 = vmatpush1.msra.mxu0 0.0
      %3178 = vmatprep.subr.mxu0 0.0
      %3179 = vmatpush1.msra.mxu0 0.0
      %3180 = vmatprep.subr.mxu0 0.0
      %3181 = vmatpush1.msra.mxu0 0.0
      %3182 = vmatprep.subr.mxu0 0.0
      %3183 = vmatpush1.msra.mxu0 0.0
      %3184 = vmatprep.subr.mxu0 0.0
      %3185 = vmatpush1.msra.mxu0 0.0
      %3186 = vmatprep.subr.mxu0 0.0
      %3187 = vmatpush1.msra.mxu0 0.0
      %3188 = vmatprep.subr.mxu0 0.0
      %3189 = vmatpush1.msra.mxu0 0.0
      %3190 = vmatprep.subr.mxu0 0.0
      %3191 = vmatpush1.msra.mxu0 0.0
      %3192 = vmatprep.subr.mxu0 0.0
      %3193 = vmatpush1.msra.mxu0 0.0
      %3194 = vmatprep.subr.mxu0 0.0
      %3195 = vmatpush1.msra.mxu0 0.0
      %3196 = vmatprep.subr.mxu0 0.0
      %3197 = vmatpush1.msra.mxu0 0.0
      %3198 = vmatprep.subr.mxu0 0.0
      %3199 = vmatpush1.msra.mxu0 0.0
      %3200 = vmatprep.mubr.f32.mxu0 0.0
      %3201 = vmatmul.mubr.f32.gmra.mrb[0].mxu0 %v3134
      %v3202 = vpop.f32.mrb[0].mxu0
      %v3203 = vadd.f32 0.0, %v3202
      %v3204 = vpop.f32.mrb[0].mxu0
      %3205 = vdwg.mxu0
      %v3207 = vrot.slane %v3203, 5
      %v3209 = vadd.f32 %v2699, %v3207
      %v3210 = vrot.slane %v3203, 7
      %v3212 = vadd.f32 %v2699, %v3210
      %v3213 = vxor.u32 %v3209, 2147483648
      %v3214 = vmul.f32 %v3213, 1.442695
      %v3215 = vpow.pop %v3214
      %v3216 = vadd.f32 %v3215, 1.0
      %v3217 = vrcp.pop %v3216
      %v3218 = vmul.f32 1.0, %v3217
      %v3219 = vtanh.pop %v3209
      %v3220 = vxor.u32 %v3212, 2147483648
      %v3221 = vmul.f32 %v3220, 1.442695
      %v3222 = vpow.pop %v3221
      %v3223 = vadd.f32 %v3222, 1.0
      %v3224 = vrcp.pop %v3223
      %v3225 = vmul.f32 1.0, %v3224
      %v3226 = vtanh.pop %v3212
      %v3228 = vrot.slane %v3099, 7
      %v3230 = vmul.f32 %v3218, %v3228
      %3232 = vrot.lane.b32.xlu0 %v3219, 96
      %v3233 = vpop.permute.xlu0 %3232
      %v3235 = vmul.f32 %v3218, %v3233
      %3237 = vrot.lane.b32.xlu0 %v3235, 16
      %v3238 = vpop.permute.xlu0 %3237
      %v3240 = vadd.f32 %v3230, %v3238
      %v3241 = vtanh.pop %v3240
      %3243 = vrot.lane.b32.xlu0 %v3241, 32
      %v3244 = vpop.permute.xlu0 %3243
      %v3246 = vmul.f32 %v3218, %v3244
      %v3248 = vrot.slane %v3110, 1
      %v3250 = vmul.f32 %v3225, %v3248
      %3252 = vrot.lane.b32.xlu0 %v3226, 96
      %v3253 = vpop.permute.xlu0 %3252
      %v3255 = vmul.f32 %v3225, %v3253
      %3257 = vrot.lane.b32.xlu0 %v3255, 16
      %v3258 = vpop.permute.xlu0 %3257
      %v3260 = vadd.f32 %v3250, %v3258
      %v3261 = vtanh.pop %v3260
      %3263 = vrot.lane.b32.xlu0 %v3261, 32
      %v3264 = vpop.permute.xlu0 %3263
      %v3266 = vmul.f32 %v3225, %v3264
      %3268 = vrot.lane.b32.xlu0 %v3246, 80
      %v3269 = vpop.permute.xlu0 %3268
      %3271 = vst.msk [vmem:[#allocation5] sm:$0x8] %vm2455, %v3269
      %3273 = vrot.lane.b32.xlu0 %v3266, 32
      %v3274 = vpop.permute.xlu0 %3273
      %3276 = vst.msk [vmem:[#allocation5] sm:$0x2] %vm2461, %v3274
      %v3277 = vrot.slane %v3266, 6
      %3278 = vrot.lane.b32.xlu0 %v3277, 32
      %v3279 = vpop.permute.xlu0 %3278
      %v3281 = vsel %vm2022, %v3269, %v3279
      %v3282 = vld [vmem:[%s11] sm:$0xff]
      %v3283 = vld [vmem:[%s11 + $0x8] sm:$0xff]
      %v3284 = vld [vmem:[%s11 + $0x10] sm:$0xff]
      %v3285 = vld [vmem:[%s11 + $0x18] sm:$0xff]
      %v3287 = vrot.slane %v3281, 3
      %v3288 = vsel %vm1236, %v3287, 0
      %3290 = vmatprep.subr.mxu0 0.0
      %3291 = vmatpush1.msra.mxu0 %v3282
      %3292 = vmatprep.subr.mxu0 0.0
      %3293 = vmatpush1.msra.mxu0 %v3283
      %3294 = vmatprep.subr.mxu0 0.0
      %3295 = vmatpush1.msra.mxu0 %v3284
      %3296 = vmatprep.subr.mxu0 0.0
      %3297 = vmatpush1.msra.mxu0 %v3285
      %3298 = vmatprep.subr.mxu0 0.0
      %3299 = vmatpush1.msra.mxu0 0.0
      %3300 = vmatprep.subr.mxu0 0.0
      %3301 = vmatpush1.msra.mxu0 0.0
      %3302 = vmatprep.subr.mxu0 0.0
      %3303 = vmatpush1.msra.mxu0 0.0
      %3304 = vmatprep.subr.mxu0 0.0
      %3305 = vmatpush1.msra.mxu0 0.0
      %3306 = vmatprep.subr.mxu0 0.0
      %3307 = vmatpush1.msra.mxu0 0.0
      %3308 = vmatprep.subr.mxu0 0.0
      %3309 = vmatpush1.msra.mxu0 0.0
      %3310 = vmatprep.subr.mxu0 0.0
      %3311 = vmatpush1.msra.mxu0 0.0
      %3312 = vmatprep.subr.mxu0 0.0
      %3313 = vmatpush1.msra.mxu0 0.0
      %3314 = vmatprep.subr.mxu0 0.0
      %3315 = vmatpush1.msra.mxu0 0.0
      %3316 = vmatprep.subr.mxu0 0.0
      %3317 = vmatpush1.msra.mxu0 0.0
      %3318 = vmatprep.subr.mxu0 0.0
      %3319 = vmatpush1.msra.mxu0 0.0
      %3320 = vmatprep.subr.mxu0 0.0
      %3321 = vmatpush1.msra.mxu0 0.0
      %3322 = vmatprep.subr.mxu0 0.0
      %3323 = vmatpush1.msra.mxu0 0.0
      %3324 = vmatprep.subr.mxu0 0.0
      %3325 = vmatpush1.msra.mxu0 0.0
      %3326 = vmatprep.subr.mxu0 0.0
      %3327 = vmatpush1.msra.mxu0 0.0
      %3328 = vmatprep.subr.mxu0 0.0
      %3329 = vmatpush1.msra.mxu0 0.0
      %3330 = vmatprep.subr.mxu0 0.0
      %3331 = vmatpush1.msra.mxu0 0.0
      %3332 = vmatprep.subr.mxu0 0.0
      %3333 = vmatpush1.msra.mxu0 0.0
      %3334 = vmatprep.subr.mxu0 0.0
      %3335 = vmatpush1.msra.mxu0 0.0
      %3336 = vmatprep.subr.mxu0 0.0
      %3337 = vmatpush1.msra.mxu0 0.0
      %3338 = vmatprep.subr.mxu0 0.0
      %3339 = vmatpush1.msra.mxu0 0.0
      %3340 = vmatprep.subr.mxu0 0.0
      %3341 = vmatpush1.msra.mxu0 0.0
      %3342 = vmatprep.subr.mxu0 0.0
      %3343 = vmatpush1.msra.mxu0 0.0
      %3344 = vmatprep.subr.mxu0 0.0
      %3345 = vmatpush1.msra.mxu0 0.0
      %3346 = vmatprep.subr.mxu0 0.0
      %3347 = vmatpush1.msra.mxu0 0.0
      %3348 = vmatprep.subr.mxu0 0.0
      %3349 = vmatpush1.msra.mxu0 0.0
      %3350 = vmatprep.subr.mxu0 0.0
      %3351 = vmatpush1.msra.mxu0 0.0
      %3352 = vmatprep.subr.mxu0 0.0
      %3353 = vmatpush1.msra.mxu0 0.0
      %3354 = vmatprep.mubr.f32.mxu0 0.0
      %3355 = vmatmul.mubr.f32.gmra.mrb[0].mxu0 %v3288
      %v3356 = vpop.f32.mrb[0].mxu0
      %v3357 = vadd.f32 0.0, %v3356
      %v3358 = vpop.f32.mrb[0].mxu0
      %3359 = vdwg.mxu0
      %v3361 = vrot.slane %v3357, 4
      %v3363 = vadd.f32 %v2699, %v3361
      %v3364 = vadd.f32 %v2699, %v3357
      %v3365 = vxor.u32 %v3363, 2147483648
      %v3366 = vmul.f32 %v3365, 1.442695
      %v3367 = vpow.pop %v3366
      %v3368 = vadd.f32 %v3367, 1.0
      %v3369 = vrcp.pop %v3368
      %v3370 = vmul.f32 1.0, %v3369
      %v3371 = vtanh.pop %v3363
      %v3372 = vxor.u32 %v3364, 2147483648
      %v3373 = vmul.f32 %v3372, 1.442695
      %v3374 = vpow.pop %v3373
      %v3375 = vadd.f32 %v3374, 1.0
      %v3376 = vrcp.pop %v3375
      %v3377 = vmul.f32 1.0, %v3376
      %v3378 = vtanh.pop %v3364
      %v3380 = vrot.slane %v3240, 7
      %v3382 = vmul.f32 %v3370, %v3380
      %3384 = vrot.lane.b32.xlu0 %v3371, 96
      %v3385 = vpop.permute.xlu0 %3384
      %v3387 = vmul.f32 %v3370, %v3385
      %3389 = vrot.lane.b32.xlu0 %v3387, 16
      %v3390 = vpop.permute.xlu0 %3389
      %v3392 = vadd.f32 %v3382, %v3390
      %v3393 = vtanh.pop %v3392
      %3395 = vrot.lane.b32.xlu0 %v3393, 32
      %v3396 = vpop.permute.xlu0 %3395
      %v3398 = vmul.f32 %v3370, %v3396
      %v3400 = vrot.slane %v3260, 1
      %v3402 = vmul.f32 %v3377, %v3400
      %3404 = vrot.lane.b32.xlu0 %v3378, 96
      %v3405 = vpop.permute.xlu0 %3404
      %v3407 = vmul.f32 %v3377, %v3405
      %3409 = vrot.lane.b32.xlu0 %v3407, 16
      %v3410 = vpop.permute.xlu0 %3409
      %v3412 = vadd.f32 %v3402, %v3410
      %v3413 = vtanh.pop %v3412
      %3415 = vrot.lane.b32.xlu0 %v3413, 32
      %v3416 = vpop.permute.xlu0 %3415
      %v3418 = vmul.f32 %v3377, %v3416
      %3420 = vrot.lane.b32.xlu0 %v3398, 80
      %v3421 = vpop.permute.xlu0 %3420
      %3423 = vst.msk [vmem:[#allocation5] sm:$0x10] %vm2609, %v3421
      %3425 = vrot.lane.b32.xlu0 %v3418, 32
      %v3426 = vpop.permute.xlu0 %3425
      %3428 = vst.msk [vmem:[#allocation5] sm:$0x1] %vm2615, %v3426
      %v3429 = vld [vmem:[#allocation5] sm:$0x1f]
      %v3430 = vld [vmem:[%s13] sm:$0xff]
      %v3431 = vld [vmem:[%s13 + $0x8] sm:$0xff]
      %v3432 = vld [vmem:[%s13 + $0x10] sm:$0xff]
      %v3433 = vld [vmem:[%s13 + $0x18] sm:$0xff]
      %v3434 = vld [vmem:[%s14] sm:$0x1]
      %v3436 = vlaneseq
      %v3437 = vshrl.u32 %v3436, 7
      %v3438 = vsub.s32 0, %v3437
      %v3439 = vrot.slane %v3434, %v3438
      %v3442 = vsel %vm1236, %v3429, 0
      %3444 = vmatprep.subr.mxu0 0.0
      %3445 = vmatpush1.msra.mxu0 %v3430
      %3446 = vmatprep.subr.mxu0 0.0
      %3447 = vmatpush1.msra.mxu0 %v3431
      %3448 = vmatprep.subr.mxu0 0.0
      %3449 = vmatpush1.msra.mxu0 %v3432
      %3450 = vmatprep.subr.mxu0 0.0
      %3451 = vmatpush1.msra.mxu0 %v3433
      %3452 = vmatprep.subr.mxu0 0.0
      %3453 = vmatpush1.msra.mxu0 0.0
      %3454 = vmatprep.subr.mxu0 0.0
      %3455 = vmatpush1.msra.mxu0 0.0
      %3456 = vmatprep.subr.mxu0 0.0
      %3457 = vmatpush1.msra.mxu0 0.0
      %3458 = vmatprep.subr.mxu0 0.0
      %3459 = vmatpush1.msra.mxu0 0.0
      %3460 = vmatprep.subr.mxu0 0.0
      %3461 = vmatpush1.msra.mxu0 0.0
      %3462 = vmatprep.subr.mxu0 0.0
      %3463 = vmatpush1.msra.mxu0 0.0
      %3464 = vmatprep.subr.mxu0 0.0
      %3465 = vmatpush1.msra.mxu0 0.0
      %3466 = vmatprep.subr.mxu0 0.0
      %3467 = vmatpush1.msra.mxu0 0.0
      %3468 = vmatprep.subr.mxu0 0.0
      %3469 = vmatpush1.msra.mxu0 0.0
      %3470 = vmatprep.subr.mxu0 0.0
      %3471 = vmatpush1.msra.mxu0 0.0
      %3472 = vmatprep.subr.mxu0 0.0
      %3473 = vmatpush1.msra.mxu0 0.0
      %3474 = vmatprep.subr.mxu0 0.0
      %3475 = vmatpush1.msra.mxu0 0.0
      %3476 = vmatprep.subr.mxu0 0.0
      %3477 = vmatpush1.msra.mxu0 0.0
      %3478 = vmatprep.subr.mxu0 0.0
      %3479 = vmatpush1.msra.mxu0 0.0
      %3480 = vmatprep.subr.mxu0 0.0
      %3481 = vmatpush1.msra.mxu0 0.0
      %3482 = vmatprep.subr.mxu0 0.0
      %3483 = vmatpush1.msra.mxu0 0.0
      %3484 = vmatprep.subr.mxu0 0.0
      %3485 = vmatpush1.msra.mxu0 0.0
      %3486 = vmatprep.subr.mxu0 0.0
      %3487 = vmatpush1.msra.mxu0 0.0
      %3488 = vmatprep.subr.mxu0 0.0
      %3489 = vmatpush1.msra.mxu0 0.0
      %3490 = vmatprep.subr.mxu0 0.0
      %3491 = vmatpush1.msra.mxu0 0.0
      %3492 = vmatprep.subr.mxu0 0.0
      %3493 = vmatpush1.msra.mxu0 0.0
      %3494 = vmatprep.subr.mxu0 0.0
      %3495 = vmatpush1.msra.mxu0 0.0
      %3496 = vmatprep.subr.mxu0 0.0
      %3497 = vmatpush1.msra.mxu0 0.0
      %3498 = vmatprep.subr.mxu0 0.0
      %3499 = vmatpush1.msra.mxu0 0.0
      %3500 = vmatprep.subr.mxu0 0.0
      %3501 = vmatpush1.msra.mxu0 0.0
      %3502 = vmatprep.subr.mxu0 0.0
      %3503 = vmatpush1.msra.mxu0 0.0
      %3504 = vmatprep.subr.mxu0 0.0
      %3505 = vmatpush1.msra.mxu0 0.0
      %3506 = vmatprep.subr.mxu0 0.0
      %3507 = vmatpush1.msra.mxu0 0.0
      %3508 = vmatprep.mubr.f32.mxu0 0.0
      %3509 = vmatmul.mubr.f32.gmra.mrb[0].mxu0 %v3442
      %v3510 = vpop.f32.mrb[0].mxu0
      %v3511 = vadd.f32 %v3439, %v3510
      %v3512 = vpop.f32.mrb[0].mxu0
      %3513 = vdwg.mxu0
      %3514 = vst [vmem:[%s654] sm:$0x1f] %v3511
      %v3515 = vld [vmem:[%s15] sm:$0xff]
      %v3516 = vld [vmem:[%s15 + $0x8] sm:$0xff]
      %v3517 = vld [vmem:[%s15 + $0x10] sm:$0xff]
      %v3518 = vld [vmem:[%s15 + $0x18] sm:$0xff]
      %v3519 = vld [vmem:[%s16] sm:$0x1]
      %v3521 = vlaneseq
      %v3522 = vshrl.u32 %v3521, 7
      %v3523 = vsub.s32 0, %v3522
      %v3524 = vrot.slane %v3519, %v3523
      %3526 = vmatprep.subr.mxu0 0.0
      %3527 = vmatpush1.msra.mxu0 %v3515
      %3528 = vmatprep.subr.mxu0 0.0
      %3529 = vmatpush1.msra.mxu0 %v3516
      %3530 = vmatprep.subr.mxu0 0.0
      %3531 = vmatpush1.msra.mxu0 %v3517
      %3532 = vmatprep.subr.mxu0 0.0
      %3533 = vmatpush1.msra.mxu0 %v3518
      %3534 = vmatprep.subr.mxu0 0.0
      %3535 = vmatpush1.msra.mxu0 0.0
      %3536 = vmatprep.subr.mxu0 0.0
      %3537 = vmatpush1.msra.mxu0 0.0
      %3538 = vmatprep.subr.mxu0 0.0
      %3539 = vmatpush1.msra.mxu0 0.0
      %3540 = vmatprep.subr.mxu0 0.0
      %3541 = vmatpush1.msra.mxu0 0.0
      %3542 = vmatprep.subr.mxu0 0.0
      %3543 = vmatpush1.msra.mxu0 0.0
      %3544 = vmatprep.subr.mxu0 0.0
      %3545 = vmatpush1.msra.mxu0 0.0
      %3546 = vmatprep.subr.mxu0 0.0
      %3547 = vmatpush1.msra.mxu0 0.0
      %3548 = vmatprep.subr.mxu0 0.0
      %3549 = vmatpush1.msra.mxu0 0.0
      %3550 = vmatprep.subr.mxu0 0.0
      %3551 = vmatpush1.msra.mxu0 0.0
      %3552 = vmatprep.subr.mxu0 0.0
      %3553 = vmatpush1.msra.mxu0 0.0
      %3554 = vmatprep.subr.mxu0 0.0
      %3555 = vmatpush1.msra.mxu0 0.0
      %3556 = vmatprep.subr.mxu0 0.0
      %3557 = vmatpush1.msra.mxu0 0.0
      %3558 = vmatprep.subr.mxu0 0.0
      %3559 = vmatpush1.msra.mxu0 0.0
      %3560 = vmatprep.subr.mxu0 0.0
      %3561 = vmatpush1.msra.mxu0 0.0
      %3562 = vmatprep.subr.mxu0 0.0
      %3563 = vmatpush1.msra.mxu0 0.0
      %3564 = vmatprep.subr.mxu0 0.0
      %3565 = vmatpush1.msra.mxu0 0.0
      %3566 = vmatprep.subr.mxu0 0.0
      %3567 = vmatpush1.msra.mxu0 0.0
      %3568 = vmatprep.subr.mxu0 0.0
      %3569 = vmatpush1.msra.mxu0 0.0
      %3570 = vmatprep.subr.mxu0 0.0
      %3571 = vmatpush1.msra.mxu0 0.0
      %3572 = vmatprep.subr.mxu0 0.0
      %3573 = vmatpush1.msra.mxu0 0.0
      %3574 = vmatprep.subr.mxu0 0.0
      %3575 = vmatpush1.msra.mxu0 0.0
      %3576 = vmatprep.subr.mxu0 0.0
      %3577 = vmatpush1.msra.mxu0 0.0
      %3578 = vmatprep.subr.mxu0 0.0
      %3579 = vmatpush1.msra.mxu0 0.0
      %3580 = vmatprep.subr.mxu0 0.0
      %3581 = vmatpush1.msra.mxu0 0.0
      %3582 = vmatprep.subr.mxu0 0.0
      %3583 = vmatpush1.msra.mxu0 0.0
      %3584 = vmatprep.subr.mxu0 0.0
      %3585 = vmatpush1.msra.mxu0 0.0
      %3586 = vmatprep.subr.mxu0 0.0
      %3587 = vmatpush1.msra.mxu0 0.0
      %3588 = vmatprep.subr.mxu0 0.0
      %3589 = vmatpush1.msra.mxu0 0.0
      %3590 = vmatprep.mubr.f32.mxu0 0.0
      %3591 = vmatmul.mubr.f32.gmra.mrb[0].mxu0 %v3442
      %v3592 = vpop.f32.mrb[0].mxu0
      %v3593 = vadd.f32 %v3524, %v3592
      %v3594 = vpop.f32.mrb[0].mxu0
      %3595 = vdwg.mxu0
      %3596 = vst [vmem:[%s658] sm:$0x1f] %v3593
      %p3597 = scmp.lt.s32.totalorder %s32, 1
      %s3598 = scalar_select %p3597, %s32, 1
      %s3599 = smul.addr %s3598, 8
      %s3600 = scalar_lea.vmem %s17, %s3599
      %p3601 = scmp.lt.s32.totalorder %s32, 1
      %s3602 = scalar_select %p3601, %s32, 1
      %s3603 = smul.addr %s3602, 8
      %s3604 = scalar_lea.vmem %s18, %s3603
      %p3605 = scmp.lt.s32.totalorder %s32, 1
      %s3606 = scalar_select %p3605, %s32, 1
      %s3607 = smul.addr %s3606, 8
      %s3608 = scalar_lea.vmem %s19, %s3607
      %p3609 = scmp.lt.s32.totalorder %s32, 1
      %s3610 = scalar_select %p3609, %s32, 1
      %s3611 = smul.addr %s3610, 8
      %s3612 = scalar_lea.vmem %s20, %s3611
      // Predicated region
      $region89: #{tpu_custom_call.1} parent=87 // pred_check
        %p3613 = pneg %p412
      $region90: #{tpu_custom_call.1} parent=87 // pred_check_branch
        %3615 = sbr.rel (%p3613) target = $region92
      $region91: #{tpu_custom_call.1} parent=87 // pred_region
        _
      $region92: #{tpu_custom_call.1} parent=87 // pred_fallthru
        _
      // Predicated region
      $region93: #{tpu_custom_call.1} parent=87 // pred_check
        %p3616 = pneg %p438
      $region94: #{tpu_custom_call.1} parent=87 // pred_check_branch
        %3618 = sbr.rel (%p3616) target = $region96
      $region95: #{tpu_custom_call.1} parent=87 // pred_region
        _
      $region96: #{tpu_custom_call.1} parent=87 // pred_fallthru
        _
      // Predicated region
      $region97: #{tpu_custom_call.1} parent=87 // pred_check
        %p3619 = pneg %p464
      $region98: #{tpu_custom_call.1} parent=87 // pred_check_branch
        %3621 = sbr.rel (%p3619) target = $region100
      $region99: #{tpu_custom_call.1} parent=87 // pred_region
        _
      $region100: #{tpu_custom_call.1} parent=87 // pred_fallthru
        _
      // Predicated region
      $region101: #{tpu_custom_call.1} parent=87 // pred_check
        %p3622 = pneg %p490
      $region102: #{tpu_custom_call.1} parent=87 // pred_check_branch
        %3624 = sbr.rel (%p3622) target = $region104
      $region103: #{tpu_custom_call.1} parent=87 // pred_region
        _
      $region104: #{tpu_custom_call.1} parent=87 // pred_fallthru
        _
    $region88: #{tpu_custom_call.1} parent=5 // pred_fallthru
      _
    %p3625 = scmp.le.s32.totalorder 2, %s27
    // Predicated region
    $region105: #{tpu_custom_call.1} parent=5 // pred_check
      %p3626 = pneg %p3625
    $region106: #{tpu_custom_call.1} parent=5 // pred_check_branch
      %3628 = sbr.rel (%p3626) target = $region108
    $region107: #{tpu_custom_call.1} parent=5 // pred_region
      %s3629 = ssub.s32 %s27, 2
      // Predicated region
      $region109: #{tpu_custom_call.1} parent=107 // pred_check
        %p3630 = pneg %p418
      $region110: #{tpu_custom_call.1} parent=107 // pred_check_branch
        %3632 = sbr.rel (%p3630) target = $region112
      $region111: #{tpu_custom_call.1} parent=107 // pred_region
        %p3633 = scmp.lt.s32.totalorder %s33, 1
        %s3634 = scalar_select %p3633, %s33, 1
        %s3635 = smul.addr %s3634, 8
        %s3636 = scalar_lea.vmem %s17, %s3635
      $region112: #{tpu_custom_call.1} parent=107 // pred_fallthru
        _
      // Predicated region
      $region113: #{tpu_custom_call.1} parent=107 // pred_check
        %p3637 = pneg %p444
      $region114: #{tpu_custom_call.1} parent=107 // pred_check_branch
        %3639 = sbr.rel (%p3637) target = $region116
      $region115: #{tpu_custom_call.1} parent=107 // pred_region
        %p3640 = scmp.lt.s32.totalorder %s33, 1
        %s3641 = scalar_select %p3640, %s33, 1
        %s3642 = smul.addr %s3641, 8
        %s3643 = scalar_lea.vmem %s18, %s3642
      $region116: #{tpu_custom_call.1} parent=107 // pred_fallthru
        _
      // Predicated region
      $region117: #{tpu_custom_call.1} parent=107 // pred_check
        %p3644 = pneg %p470
      $region118: #{tpu_custom_call.1} parent=107 // pred_check_branch
        %3646 = sbr.rel (%p3644) target = $region120
      $region119: #{tpu_custom_call.1} parent=107 // pred_region
        %p3647 = scmp.lt.s32.totalorder %s33, 1
        %s3648 = scalar_select %p3647, %s33, 1
        %s3649 = smul.addr %s3648, 8
        %s3650 = scalar_lea.vmem %s19, %s3649
      $region120: #{tpu_custom_call.1} parent=107 // pred_fallthru
        _
      // Predicated region
      $region121: #{tpu_custom_call.1} parent=107 // pred_check
        %p3651 = pneg %p496
      $region122: #{tpu_custom_call.1} parent=107 // pred_check_branch
        %3653 = sbr.rel (%p3651) target = $region124
      $region123: #{tpu_custom_call.1} parent=107 // pred_region
        %p3654 = scmp.lt.s32.totalorder %s33, 1
        %s3655 = scalar_select %p3654, %s33, 1
        %s3656 = smul.addr %s3655, 8
        %s3657 = scalar_lea.vmem %s20, %s3656
      $region124: #{tpu_custom_call.1} parent=107 // pred_fallthru
        _
    $region108: #{tpu_custom_call.1} parent=5 // pred_fallthru
      _
  $region6: #{tpu_custom_call.1} parent=0 // loop_footer
    %s31 = sadd.s32 1, %s27
  $region7: #{tpu_custom_call.1} parent=0 // loop_footer_branch
    %26 = sbr.rel target = $region3
  $region8: #{tpu_custom_call.1} parent=0 // loop_exit
    _

</llo_original>
